<compile_context>
chip_gen: v7x
topology: tpu7x:2x2x1
jax: 0.10.0
libtpu: 0.0.40
codegen_flags: <defaults>
</compile_context>

<pallas_src>
import jax
import jax.numpy as jnp
from jax.experimental import pallas as pl
from jax.experimental.pallas import tpu as pltpu

_BN_EPS = 1e-5


def _round_up(v, m):
    return ((v + m - 1) // m) * m


# --------------------------------------------------------------------------
# Fused BasicBlock kernel (one grid step == one image)
# --------------------------------------------------------------------------
def _make_block_kernel(*, has_sc_w, conv1_taps, conv2_shifts, sc_plane, sc_off,
                       L, Cin, Cp):
    """Builds the kernel body for one block configuration (all params static).

    refs (in order):
      x_ref    : (P, R, Cin)     bf16  flat padded input plane(s)
      w1_ref   : (9*Cin, Cp)     bf16  conv1 K-concat weights (bn1 folded)
      w2_ref   : (9*Cp, Cp)      bf16  conv2 K-concat weights (bn2 folded)
      [ws_ref] : (Cin, Cp)       bf16  1x1 projection / identity shortcut weight
      b1_ref   : (1, Cp)         f32
      b2_ref   : (1, Cp)         f32
      [bs_ref] : (1, Cp)         f32
      mask_ref : (L, 1)          f32   1.0 on valid wide-layout columns
      o_ref    : (L, Cp)         bf16  wide-layout block output
      xcat_ref : (L, 9*Cin)      bf16  scratch: conv1 K-concat staging
      ycat_ref : (L, 9*Cp)       bf16  scratch: conv2 K-concat staging
    """

    def kernel(*refs):
        if has_sc_w:
            (x_ref, w1_ref, w2_ref, ws_ref, b1_ref, b2_ref, bs_ref,
             mask_ref, o_ref, xcat_ref, ycat_ref) = refs
        else:
            (x_ref, w1_ref, w2_ref, b1_ref, b2_ref,
             mask_ref, o_ref, xcat_ref, ycat_ref) = refs

        # ---- conv1 (+ folded bn1) as ONE matmul with K = 9*Cin --------------
        # Stage the 9 shifted tap slices side by side along the lane axis;
        # every element of xcat is rewritten each step (no zeroing needed).
        for t, (plane, off) in enumerate(conv1_taps):
            xcat_ref[:, t * Cin:(t + 1) * Cin] = x_ref[plane, off:off + L, :]
        acc1 = jnp.dot(xcat_ref[...], w1_ref[...],
                       preferred_element_type=jnp.float32)
        # relu + zero the WP-Wo wide-layout garbage columns (these zeros double
        # as conv2's left/right spatial padding).
        y1 = jnp.maximum(acc1 + b1_ref[...], 0.0) * mask_ref[...]
        y1 = y1.astype(jnp.bfloat16)

        # ---- conv2 (+ folded bn2) as ONE matmul with K = 9*Cp ---------------
        # Lane block t holds y1 shifted by s rows; rows outside [lo, hi) are
        # the top/bottom spatial zero padding (zeroed cheaply every step —
        # only |s| <= WP+1 rows per tap).
        for t, s in enumerate(conv2_shifts):
            lo, hi = max(0, -s), min(L, L - s)
            c0, c1 = t * Cp, (t + 1) * Cp
            if lo > 0:
                ycat_ref[0:lo, c0:c1] = jnp.zeros((lo, Cp), jnp.bfloat16)
            if hi < L:
                ycat_ref[hi:L, c0:c1] = jnp.zeros((L - hi, Cp), jnp.bfloat16)
            ycat_ref[lo:hi, c0:c1] = y1[lo + s:hi + s, :]
        y2 = jnp.dot(ycat_ref[...], w2_ref[...],
                     preferred_element_type=jnp.float32) + b2_ref[...]

        # ---- shortcut + residual add + relu, lane-dense bf16 store ----------
        xs = x_ref[sc_plane, sc_off:sc_off + L, :]
        if has_sc_w:
            sc = jnp.dot(xs, ws_ref[...],
                         preferred_element_type=jnp.float32) + bs_ref[...]
        else:
            sc = xs.astype(jnp.float32)          # identity path (Cin == Cp)
        o_ref[...] = jnp.maximum(y2 + sc, 0.0).astype(o_ref.dtype)

    return kernel


# --------------------------------------------------------------------------
# Host-side preparation (cheap, single bf16 pass over input / weights)
# --------------------------------------------------------------------------
def _prep_planes(x_nhwc, stride):
    """Flat, spatially padded (parity-split for stride 2) bf16 input planes."""
    N, H, W, C = x_nhwc.shape
    Ho = (H - 1) // stride + 1
    Wo = (W - 1) // stride + 1
    HP = Ho + 2
    WP = _round_up(Wo + 2, 8)                     # sublane-aligned row stride

    if stride == 1:
        xp = jnp.pad(x_nhwc, ((0, 0), (1, 1), (1, WP - 1 - W), (0, 0)))
        planes = xp[:, None]                                  # (N,1,HP,WP,C)
    else:
        xp = jnp.pad(x_nhwc, ((0, 0), (1, 1), (1, 1), (0, 0)))
        ps = []
        for a in range(2):
            for b in range(2):
                plane = xp[:, a::2, b::2, :]                  # parity sub-plane
                ph = HP - plane.shape[1]
                pw = WP - plane.shape[2]
                ps.append(jnp.pad(plane, ((0, 0), (0, ph), (0, pw), (0, 0))))
        planes = jnp.stack(ps, axis=1)                        # (N,4,HP,WP,C)

    P = planes.shape[1]
    flat = planes.reshape(N, P, HP * WP, C)
    flat = jnp.pad(flat, ((0, 0), (0, 0), (0, WP), (0, 0)))   # safe over-read rows
    return flat, (Ho, Wo, HP, WP)


def _fold_bn(bn):
    scale = bn["gamma"] * jax.lax.rsqrt(bn["var"] + _BN_EPS)
    bias = bn["beta"] - bn["mean"] * scale
    return scale.astype(jnp.float32), bias.astype(jnp.float32)


def _prep_w3x3(w_oihw, bn_scale, cin_pad_to, cout_pad_to):
    """(Cout, Cin, 3, 3) -> (9*cin_pad_to, cout_pad_to) bf16 K-concat layout."""
    cout, cin = w_oihw.shape[0], w_oihw.shape[1]
    w = jnp.transpose(w_oihw, (2, 3, 1, 0)) * bn_scale[None, None, None, :]
    w = jnp.pad(w, ((0, 0), (0, 0), (0, cin_pad_to - cin),
                    (0, cout_pad_to - cout)))
    return w.reshape(9 * cin_pad_to, cout_pad_to).astype(jnp.bfloat16)


def _pad_bias(b, cp):
    return jnp.pad(b, (0, cp - b.shape[0])).reshape(1, cp).astype(jnp.float32)


# --------------------------------------------------------------------------
# BasicBlock forward (Pallas-backed)
# --------------------------------------------------------------------------
def basic_block_forward(x_nchw, params, stride):
    # bf16 cast BEFORE the transpose / padding so the layout passes are half-width.
    xb = jnp.transpose(x_nchw.astype(jnp.bfloat16), (0, 2, 3, 1))   # NHWC bf16
    N, H, W, Cin = xb.shape
    Cout = params["w1"].shape[0]
    Cp = _round_up(max(Cout, 128), 128)          # lane-dense output channels

    planes, (Ho, Wo, HP, WP) = _prep_planes(xb, stride)
    P, R = planes.shape[1], planes.shape[2]
    L = Ho * WP                                  # wide-layout rows

    # Fold BN scales into the conv weights; only biases go to the kernel.
    s1, b1 = _fold_bn(params["bn1"])
    s2, b2 = _fold_bn(params["bn2"])
    w1 = _prep_w3x3(params["w1"], s1, Cin, Cp)   # (9*Cin, Cp)
    w2 = _prep_w3x3(params["w2"], s2, Cp, Cp)    # (9*Cp,  Cp)
    b1p, b2p = _pad_bias(b1, Cp), _pad_bias(b2, Cp)

    has_proj = "ws" in params
    needs_eye = (not has_proj) and (Cin != Cp)   # widen residual to Cp lanes
    has_sc_w = has_proj or needs_eye
    ws = bsp = None
    if has_proj:
        ss, bs = _fold_bn(params["bns"])
        ws = jnp.transpose(params["ws"][:, :, 0, 0], (1, 0)) * ss[None, :]
        ws = jnp.pad(ws, ((0, 0), (0, Cp - Cout))).astype(jnp.bfloat16)
        bsp = _pad_bias(bs, Cp)
    elif needs_eye:
        ws = jnp.eye(Cin, Cp, dtype=jnp.float32).astype(jnp.bfloat16)
        bsp = jnp.zeros((1, Cp), jnp.float32)

    # Static tap schedule (plane index, flat row offset) for conv1 + shortcut.
    if stride == 1:
        conv1_taps = tuple((0, kh * WP + kw) for kh in range(3) for kw in range(3))
        sc_plane, sc_off = 0, WP + 1
    else:  # stride 2: parity planes, unit offsets
        conv1_taps = tuple((2 * (kh % 2) + (kw % 2), (kh // 2) * WP + (kw // 2))
                           for kh in range(3) for kw in range(3))
        sc_plane, sc_off = 3, 0
    # conv2 row shift of lane block t relative to the output row.
    conv2_shifts = tuple(kh * WP + kw - (WP + 1)
                         for kh in range(3) for kw in range(3))

    # Valid-column mask for the wide layout (zero the WP-Wo garbage columns).
    col_mask = ((jnp.arange(L, dtype=jnp.int32) % WP) < Wo)
    col_mask = col_mask.astype(jnp.float32).reshape(L, 1)

    kernel = _make_block_kernel(
        has_sc_w=has_sc_w, conv1_taps=conv1_taps, conv2_shifts=conv2_shifts,
        sc_plane=sc_plane, sc_off=sc_off, L=L, Cin=Cin, Cp=Cp)

    in_specs = [
        pl.BlockSpec((None, P, R, Cin), lambda n: (n, 0, 0, 0)),  # input planes
        pl.BlockSpec((9 * Cin, Cp), lambda n: (0, 0)),            # w1 (K-concat)
        pl.BlockSpec((9 * Cp, Cp), lambda n: (0, 0)),             # w2 (K-concat)
    ]
    args = [planes, w1, w2]
    if has_sc_w:
        in_specs.append(pl.BlockSpec((Cin, Cp), lambda n: (0, 0)))  # shortcut w
        args.append(ws)
    in_specs += [pl.BlockSpec((1, Cp), lambda n: (0, 0)),           # bias1
                 pl.BlockSpec((1, Cp), lambda n: (0, 0))]           # bias2
    args += [b1p, b2p]
    if has_sc_w:
        in_specs.append(pl.BlockSpec((1, Cp), lambda n: (0, 0)))    # shortcut b
        args.append(bsp)
    in_specs.append(pl.BlockSpec((L, 1), lambda n: (0, 0)))         # column mask
    args.append(col_mask)

    # Explicit VMEM budget: double-buffered I/O blocks + weights + staging
    # scratch + f32 temporaries, with margin (clamped to a safe per-gen range).
    est = (2 * P * R * Cin * 2 + 2 * L * Cp * 2
           + (9 * Cin * Cp + 9 * Cp * Cp + Cin * Cp + 3 * Cp) * 2
           + L * 9 * Cin * 2 + L * 9 * Cp * 2
           + 8 * L * Cp * 4)
    vmem_limit = int(min(max(est, 32 * 1024 * 1024), 64 * 1024 * 1024))

    out_wide = pl.pallas_call(
        kernel,
        out_shape=jax.ShapeDtypeStruct((N, L, Cp), jnp.bfloat16),
        grid=(N,),
        in_specs=in_specs,
        out_specs=pl.BlockSpec((None, L, Cp), lambda n: (n, 0, 0)),
        scratch_shapes=[pltpu.VMEM((L, 9 * Cin), jnp.bfloat16),   # conv1 staging
                        pltpu.VMEM((L, 9 * Cp), jnp.bfloat16)],   # conv2 staging
        compiler_params=pltpu.CompilerParams(
            dimension_semantics=("parallel",),
            vmem_limit_bytes=vmem_limit),
    )(*args)

    # Drop wide garbage columns and channel padding, return NCHW f32.
    out = out_wide.reshape(N, Ho, WP, Cp)[:, :, :Wo, :Cout]
    return jnp.transpose(out, (0, 3, 1, 2)).astype(jnp.float32)


# --------------------------------------------------------------------------
# Parameter init + pure-JAX f32 reference (numerical sanity check)
# --------------------------------------------------------------------------
def init_basic_block_params(key, in_channels, out_channels, stride):
    ks = jax.random.split(key, 8)

    def conv_init(k, cout, cin, ksz):
        scale = (2.0 / (cin * ksz * ksz)) ** 0.5        # Kaiming-like fan-in
        return scale * jax.random.normal(k, (cout, cin, ksz, ksz), jnp.float32)

    def bn_init(k, c):
        k1, k2, k3, k4 = jax.random.split(k, 4)
        return dict(
            gamma=1.0 + 0.1 * jax.random.normal(k1, (c,), jnp.float32),
            beta=0.1 * jax.random.normal(k2, (c,), jnp.float32),
            mean=0.1 * jax.random.normal(k3, (c,), jnp.float32),
            var=0.5 + jax.random.uniform(k4, (c,), jnp.float32),
        )

    params = {
        "w1": conv_init(ks[0], out_channels, in_channels, 3),
        "bn1": bn_init(ks[1], out_channels),
        "w2": conv_init(ks[2], out_channels, out_channels, 3),
        "bn2": bn_init(ks[3], out_channels),
    }
    if stride != 1 or in_channels != out_channels:
        params["ws"] = conv_init(ks[4], out_channels, in_channels, 1)
        params["bns"] = bn_init(ks[5], out_channels)
    return params


def basic_block_reference(x_nchw, params, stride):
    x = jnp.transpose(x_nchw, (0, 2, 3, 1)).astype(jnp.float32)

    def conv(xx, w_oihw, s, pad):
        w = jnp.transpose(w_oihw, (2, 3, 1, 0))  # HWIO
        return jax.lax.conv_general_dilated(
            xx, w, (s, s), pad, dimension_numbers=("NHWC", "HWIO", "NHWC"),
            precision=jax.lax.Precision.HIGHEST)

    def bn(y, p):
        return (y - p["mean"]) / jnp.sqrt(p["var"] + _BN_EPS) * p["gamma"] + p["beta"]

    y = jax.nn.relu(bn(conv(x, params["w1"], stride, [(1, 1), (1, 1)]), params["bn1"]))
    y = bn(conv(y, params["w2"], 1, [(1, 1), (1, 1)]), params["bn2"])
    if "ws" in params:
        sc = bn(conv(x, params["ws"], stride, [(0, 0), (0, 0)]), params["bns"])
    else:
        sc = x
    return jnp.transpose(jax.nn.relu(y + sc), (0, 3, 1, 2))


if __name__ == "__main__":
    fwd = jax.jit(basic_block_forward, static_argnames=("stride",))

    key = jax.random.PRNGKey(0)
    kx, kx3, kp1, kp2, kp3 = jax.random.split(key, 5)
    x = jax.random.normal(kx, (2, 4, 16, 16), jnp.float32)

    # Tolerance reflects bf16 matmul operands (f32 accumulation / affine math).
    RTOL, ATOL = 3e-2, 5e-2

    def check(out, ref, shape, name):
        assert out.shape == shape, (name, out.shape)
        err = float(jnp.max(jnp.abs(out - ref)))
        assert jnp.allclose(out, ref, rtol=RTOL, atol=ATOL), (name, err)

    # Case 1: downsampling block with projection shortcut (in=4, out=8, stride=2).
    p_ds = init_basic_block_params(kp1, in_channels=4, out_channels=8, stride=2)
    out_ds = jax.block_until_ready(fwd(x, p_ds, stride=2))
    check(out_ds, basic_block_reference(x, p_ds, 2), (2, 8, 8, 8), "proj/stride2")

    # Case 2: identity shortcut below the 128-lane pad (in=out=4, stride=1).
    p_id = init_basic_block_params(kp2, in_channels=4, out_channels=4, stride=1)
    out_id = jax.block_until_ready(fwd(x, p_id, stride=1))
    check(out_id, basic_block_reference(x, p_id, 1), (2, 4, 16, 16), "eye/stride1")

    # Case 3: identity shortcut at full 128-lane width (direct residual add path).
    x3 = jax.random.normal(kx3, (2, 128, 8, 8), jnp.float32)
    p_128 = init_basic_block_params(kp3, in_channels=128, out_channels=128, stride=1)
    out_128 = jax.block_until_ready(fwd(x3, p_128, stride=1))
    check(out_128, basic_block_reference(x3, p_128, 1), (2, 128, 8, 8), "id/stride1")

    print("KERNEL_OK")
</pallas_src>

<mosaic_0001>
module attributes {stable_mosaic.version = 11 : i64} {
  func.func @kernel(%arg0: i32, %arg1: memref<1x4x176x4xbf16, #tpu.memory_space<vmem>>, %arg2: memref<36x128xbf16, #tpu.memory_space<vmem>>, %arg3: memref<1152x128xbf16, #tpu.memory_space<vmem>>, %arg4: memref<4x128xbf16, #tpu.memory_space<vmem>>, %arg5: memref<1x128xf32, #tpu.memory_space<vmem>>, %arg6: memref<1x128xf32, #tpu.memory_space<vmem>>, %arg7: memref<1x128xf32, #tpu.memory_space<vmem>>, %arg8: memref<128x1xf32, #tpu.memory_space<vmem>>, %arg9: memref<1x128x128xbf16, #tpu.memory_space<vmem>>, %arg10: memref<128x36xbf16, #tpu.memory_space<vmem>>, %arg11: memref<128x1152xbf16, #tpu.memory_space<vmem>>) attributes {dimension_semantics = [#tpu.dimension_semantics<parallel>], iteration_bounds = array<i64: 2>, scalar_prefetch = 0 : i64, scratch_operands = 2 : i64, tpu.core_type = #tpu.core_type<tc>, window_params = [{transform_indices = @transform_0, window_bounds = array<i64: 1, 4, 176, 4>}, {pipeline_mode = #tpu.pipeline_mode<synchronous>, transform_indices = @transform_1, window_bounds = array<i64: 36, 128>}, {pipeline_mode = #tpu.pipeline_mode<synchronous>, transform_indices = @transform_2, window_bounds = array<i64: 1152, 128>}, {pipeline_mode = #tpu.pipeline_mode<synchronous>, transform_indices = @transform_3, window_bounds = array<i64: 4, 128>}, {pipeline_mode = #tpu.pipeline_mode<synchronous>, transform_indices = @transform_4, window_bounds = array<i64: 1, 128>}, {pipeline_mode = #tpu.pipeline_mode<synchronous>, transform_indices = @transform_5, window_bounds = array<i64: 1, 128>}, {pipeline_mode = #tpu.pipeline_mode<synchronous>, transform_indices = @transform_6, window_bounds = array<i64: 1, 128>}, {pipeline_mode = #tpu.pipeline_mode<synchronous>, transform_indices = @transform_7, window_bounds = array<i64: 128, 1>}, {transform_indices = @transform_8, window_bounds = array<i64: 1, 128, 128>}]} {
    %c0 = arith.constant 0 : index
    %c0_0 = arith.constant 0 : index
    %c0_1 = arith.constant 0 : index
    %c0_2 = arith.constant 0 : index
    %0 = vector.load %arg1[%c0, %c0_0, %c0_1, %c0_2] : memref<1x4x176x4xbf16, #tpu.memory_space<vmem>>, vector<1x1x128x4xbf16>
    %1 = vector.shape_cast %0 : vector<1x1x128x4xbf16> to vector<128x4xbf16>
    %c0_3 = arith.constant 0 : index
    %c0_4 = arith.constant 0 : index
    %2 = vector.load %arg10[%c0_3, %c0_4] : memref<128x36xbf16, #tpu.memory_space<vmem>>, vector<128x4xbf16>
    tpu.vector_store %arg10[%c0_3, %c0_4], %1 {strides = array<i32>} : memref<128x36xbf16, #tpu.memory_space<vmem>>, vector<128x4xbf16>,
    %c0_5 = arith.constant 0 : index
    %c1 = arith.constant 1 : index
    %c0_6 = arith.constant 0 : index
    %c0_7 = arith.constant 0 : index
    %3 = vector.load %arg1[%c0_5, %c1, %c0_6, %c0_7] : memref<1x4x176x4xbf16, #tpu.memory_space<vmem>>, vector<1x1x128x4xbf16>
    %4 = vector.shape_cast %3 : vector<1x1x128x4xbf16> to vector<128x4xbf16>
    %c0_8 = arith.constant 0 : index
    %c4 = arith.constant 4 : index
    %5 = vector.load %arg10[%c0_8, %c4] : memref<128x36xbf16, #tpu.memory_space<vmem>>, vector<128x4xbf16>
    tpu.vector_store %arg10[%c0_8, %c4], %4 {strides = array<i32>} : memref<128x36xbf16, #tpu.memory_space<vmem>>, vector<128x4xbf16>,
    %c0_9 = arith.constant 0 : index
    %c0_10 = arith.constant 0 : index
    %c1_11 = arith.constant 1 : index
    %c0_12 = arith.constant 0 : index
    %6 = vector.load %arg1[%c0_9, %c0_10, %c1_11, %c0_12] : memref<1x4x176x4xbf16, #tpu.memory_space<vmem>>, vector<1x1x128x4xbf16>
    %7 = vector.shape_cast %6 : vector<1x1x128x4xbf16> to vector<128x4xbf16>
    %c0_13 = arith.constant 0 : index
    %c8 = arith.constant 8 : index
    %8 = vector.load %arg10[%c0_13, %c8] : memref<128x36xbf16, #tpu.memory_space<vmem>>, vector<128x4xbf16>
    tpu.vector_store %arg10[%c0_13, %c8], %7 {strides = array<i32>} : memref<128x36xbf16, #tpu.memory_space<vmem>>, vector<128x4xbf16>,
    %c0_14 = arith.constant 0 : index
    %c2 = arith.constant 2 : index
    %c0_15 = arith.constant 0 : index
    %c0_16 = arith.constant 0 : index
    %9 = vector.load %arg1[%c0_14, %c2, %c0_15, %c0_16] : memref<1x4x176x4xbf16, #tpu.memory_space<vmem>>, vector<1x1x128x4xbf16>
    %10 = vector.shape_cast %9 : vector<1x1x128x4xbf16> to vector<128x4xbf16>
    %c0_17 = arith.constant 0 : index
    %c12 = arith.constant 12 : index
    %11 = vector.load %arg10[%c0_17, %c12] : memref<128x36xbf16, #tpu.memory_space<vmem>>, vector<128x4xbf16>
    tpu.vector_store %arg10[%c0_17, %c12], %10 {strides = array<i32>} : memref<128x36xbf16, #tpu.memory_space<vmem>>, vector<128x4xbf16>,
    %c0_18 = arith.constant 0 : index
    %c3 = arith.constant 3 : index
    %c0_19 = arith.constant 0 : index
    %c0_20 = arith.constant 0 : index
    %12 = vector.load %arg1[%c0_18, %c3, %c0_19, %c0_20] : memref<1x4x176x4xbf16, #tpu.memory_space<vmem>>, vector<1x1x128x4xbf16>
    %13 = vector.shape_cast %12 : vector<1x1x128x4xbf16> to vector<128x4xbf16>
    %c0_21 = arith.constant 0 : index
    %c16 = arith.constant 16 : index
    %14 = vector.load %arg10[%c0_21, %c16] : memref<128x36xbf16, #tpu.memory_space<vmem>>, vector<128x4xbf16>
    tpu.vector_store %arg10[%c0_21, %c16], %13 {strides = array<i32>} : memref<128x36xbf16, #tpu.memory_space<vmem>>, vector<128x4xbf16>,
    %c0_22 = arith.constant 0 : index
    %c2_23 = arith.constant 2 : index
    %c1_24 = arith.constant 1 : index
    %c0_25 = arith.constant 0 : index
    %15 = vector.load %arg1[%c0_22, %c2_23, %c1_24, %c0_25] : memref<1x4x176x4xbf16, #tpu.memory_space<vmem>>, vector<1x1x128x4xbf16>
    %16 = vector.shape_cast %15 : vector<1x1x128x4xbf16> to vector<128x4xbf16>
    %c0_26 = arith.constant 0 : index
    %c20 = arith.constant 20 : index
    %17 = vector.load %arg10[%c0_26, %c20] : memref<128x36xbf16, #tpu.memory_space<vmem>>, vector<128x4xbf16>
    tpu.vector_store %arg10[%c0_26, %c20], %16 {strides = array<i32>} : memref<128x36xbf16, #tpu.memory_space<vmem>>, vector<128x4xbf16>,
    %c0_27 = arith.constant 0 : index
    %c0_28 = arith.constant 0 : index
    %c16_29 = arith.constant 16 : index
    %c0_30 = arith.constant 0 : index
    %18 = vector.load %arg1[%c0_27, %c0_28, %c16_29, %c0_30] : memref<1x4x176x4xbf16, #tpu.memory_space<vmem>>, vector<1x1x128x4xbf16>
    %19 = vector.shape_cast %18 : vector<1x1x128x4xbf16> to vector<128x4xbf16>
    %c0_31 = arith.constant 0 : index
    %c24 = arith.constant 24 : index
    %20 = vector.load %arg10[%c0_31, %c24] : memref<128x36xbf16, #tpu.memory_space<vmem>>, vector<128x4xbf16>
    tpu.vector_store %arg10[%c0_31, %c24], %19 {strides = array<i32>} : memref<128x36xbf16, #tpu.memory_space<vmem>>, vector<128x4xbf16>,
    %c0_32 = arith.constant 0 : index
    %c1_33 = arith.constant 1 : index
    %c16_34 = arith.constant 16 : index
    %c0_35 = arith.constant 0 : index
    %21 = vector.load %arg1[%c0_32, %c1_33, %c16_34, %c0_35] : memref<1x4x176x4xbf16, #tpu.memory_space<vmem>>, vector<1x1x128x4xbf16>
    %22 = vector.shape_cast %21 : vector<1x1x128x4xbf16> to vector<128x4xbf16>
    %c0_36 = arith.constant 0 : index
    %c28 = arith.constant 28 : index
    %23 = vector.load %arg10[%c0_36, %c28] : memref<128x36xbf16, #tpu.memory_space<vmem>>, vector<128x4xbf16>
    tpu.vector_store %arg10[%c0_36, %c28], %22 {strides = array<i32>} : memref<128x36xbf16, #tpu.memory_space<vmem>>, vector<128x4xbf16>,
    %c0_37 = arith.constant 0 : index
    %c0_38 = arith.constant 0 : index
    %c17 = arith.constant 17 : index
    %c0_39 = arith.constant 0 : index
    %24 = vector.load %arg1[%c0_37, %c0_38, %c17, %c0_39] : memref<1x4x176x4xbf16, #tpu.memory_space<vmem>>, vector<1x1x128x4xbf16>
    %25 = vector.shape_cast %24 : vector<1x1x128x4xbf16> to vector<128x4xbf16>
    %c0_40 = arith.constant 0 : index
    %c32 = arith.constant 32 : index
    %26 = vector.load %arg10[%c0_40, %c32] : memref<128x36xbf16, #tpu.memory_space<vmem>>, vector<128x4xbf16>
    tpu.vector_store %arg10[%c0_40, %c32], %25 {strides = array<i32>} : memref<128x36xbf16, #tpu.memory_space<vmem>>, vector<128x4xbf16>,
    %c0_41 = arith.constant 0 : index
    %c0_42 = arith.constant 0 : index
    %27 = vector.load %arg10[%c0_41, %c0_42] : memref<128x36xbf16, #tpu.memory_space<vmem>>, vector<128x36xbf16>
    %c0_43 = arith.constant 0 : index
    %c0_44 = arith.constant 0 : index
    %28 = vector.load %arg2[%c0_43, %c0_44] : memref<36x128xbf16, #tpu.memory_space<vmem>>, vector<36x128xbf16>
    %cst = arith.constant dense<0.000000e+00> : vector<128x128xf32>
    %29 = tpu.matmul %27, %28, %cst {dimension_numbers = #tpu.dot_dimension_numbers<[1], [0], [0], [1], [0, 0, 1, 1], [], []>} : vector<128x36xbf16>, vector<36x128xbf16>, vector<128x128xf32> -> vector<128x128xf32>
    %c0_45 = arith.constant 0 : index
    %c0_46 = arith.constant 0 : index
    %30 = vector.load %arg5[%c0_45, %c0_46] : memref<1x128xf32, #tpu.memory_space<vmem>>, vector<1x128xf32>
    %31 = vector.broadcast %30 : vector<1x128xf32> to vector<128x128xf32>
    %32 = arith.addf %29, %31 : vector<128x128xf32>
    %cst_47 = arith.constant 0.000000e+00 : f32
    %33 = vector.broadcast %cst_47 : f32 to vector<128x128xf32>
    %34 = arith.maximumf %32, %33 : vector<128x128xf32>
    %c0_48 = arith.constant 0 : index
    %c0_49 = arith.constant 0 : index
    %35 = vector.load %arg8[%c0_48, %c0_49] : memref<128x1xf32, #tpu.memory_space<vmem>>, vector<128x1xf32>
    %36 = vector.broadcast %35 : vector<128x1xf32> to vector<128x128xf32>
    %37 = arith.mulf %34, %36 : vector<128x128xf32>
    %38 = arith.truncf %37 : vector<128x128xf32> to vector<128x128xbf16>
    %cst_50 = arith.constant 0.000000e+00 : bf16
    %39 = vector.broadcast %cst_50 : bf16 to vector<17x128xbf16>
    %c0_51 = arith.constant 0 : index
    %c0_52 = arith.constant 0 : index
    %40 = vector.load %arg11[%c0_51, %c0_52] : memref<128x1152xbf16, #tpu.memory_space<vmem>>, vector<17x128xbf16>
    tpu.vector_store %arg11[%c0_51, %c0_52], %39 {strides = array<i32>} : memref<128x1152xbf16, #tpu.memory_space<vmem>>, vector<17x128xbf16>,
    %41 = vector.extract_strided_slice %38 {offsets = [0, 0], sizes = [111, 128], strides = [1, 1]} : vector<128x128xbf16> to vector<111x128xbf16>
    %c17_53 = arith.constant 17 : index
    %c0_54 = arith.constant 0 : index
    %42 = vector.load %arg11[%c17_53, %c0_54] : memref<128x1152xbf16, #tpu.memory_space<vmem>>, vector<111x128xbf16>
    tpu.vector_store %arg11[%c17_53, %c0_54], %41 {strides = array<i32>} : memref<128x1152xbf16, #tpu.memory_space<vmem>>, vector<111x128xbf16>,
    %cst_55 = arith.constant 0.000000e+00 : bf16
    %43 = vector.broadcast %cst_55 : bf16 to vector<16x128xbf16>
    %c0_56 = arith.constant 0 : index
    %c128 = arith.constant 128 : index
    %44 = vector.load %arg11[%c0_56, %c128] : memref<128x1152xbf16, #tpu.memory_space<vmem>>, vector<16x128xbf16>
    tpu.vector_store %arg11[%c0_56, %c128], %43 {strides = array<i32>} : memref<128x1152xbf16, #tpu.memory_space<vmem>>, vector<16x128xbf16>,
    %45 = vector.extract_strided_slice %38 {offsets = [0, 0], sizes = [112, 128], strides = [1, 1]} : vector<128x128xbf16> to vector<112x128xbf16>
    %c16_57 = arith.constant 16 : index
    %c128_58 = arith.constant 128 : index
    %46 = vector.load %arg11[%c16_57, %c128_58] : memref<128x1152xbf16, #tpu.memory_space<vmem>>, vector<112x128xbf16>
    tpu.vector_store %arg11[%c16_57, %c128_58], %45 {strides = array<i32>} : memref<128x1152xbf16, #tpu.memory_space<vmem>>, vector<112x128xbf16>,
    %cst_59 = arith.constant 0.000000e+00 : bf16
    %47 = vector.broadcast %cst_59 : bf16 to vector<15x128xbf16>
    %c0_60 = arith.constant 0 : index
    %c256 = arith.constant 256 : index
    %48 = vector.load %arg11[%c0_60, %c256] : memref<128x1152xbf16, #tpu.memory_space<vmem>>, vector<15x128xbf16>
    tpu.vector_store %arg11[%c0_60, %c256], %47 {strides = array<i32>} : memref<128x1152xbf16, #tpu.memory_space<vmem>>, vector<15x128xbf16>,
    %49 = vector.extract_strided_slice %38 {offsets = [0, 0], sizes = [113, 128], strides = [1, 1]} : vector<128x128xbf16> to vector<113x128xbf16>
    %c15 = arith.constant 15 : index
    %c256_61 = arith.constant 256 : index
    %50 = vector.load %arg11[%c15, %c256_61] : memref<128x1152xbf16, #tpu.memory_space<vmem>>, vector<113x128xbf16>
    tpu.vector_store %arg11[%c15, %c256_61], %49 {strides = array<i32>} : memref<128x1152xbf16, #tpu.memory_space<vmem>>, vector<113x128xbf16>,
    %cst_62 = arith.constant 0.000000e+00 : bf16
    %51 = vector.broadcast %cst_62 : bf16 to vector<1x128xbf16>
    %c0_63 = arith.constant 0 : index
    %c384 = arith.constant 384 : index
    %52 = vector.load %arg11[%c0_63, %c384] : memref<128x1152xbf16, #tpu.memory_space<vmem>>, vector<1x128xbf16>
    tpu.vector_store %arg11[%c0_63, %c384], %51 {strides = array<i32>} : memref<128x1152xbf16, #tpu.memory_space<vmem>>, vector<1x128xbf16>,
    %53 = vector.extract_strided_slice %38 {offsets = [0, 0], sizes = [127, 128], strides = [1, 1]} : vector<128x128xbf16> to vector<127x128xbf16>
    %c1_64 = arith.constant 1 : index
    %c384_65 = arith.constant 384 : index
    %54 = vector.load %arg11[%c1_64, %c384_65] : memref<128x1152xbf16, #tpu.memory_space<vmem>>, vector<127x128xbf16>
    tpu.vector_store %arg11[%c1_64, %c384_65], %53 {strides = array<i32>} : memref<128x1152xbf16, #tpu.memory_space<vmem>>, vector<127x128xbf16>,
    %c0_66 = arith.constant 0 : index
    %c512 = arith.constant 512 : index
    %55 = vector.load %arg11[%c0_66, %c512] : memref<128x1152xbf16, #tpu.memory_space<vmem>>, vector<128x128xbf16>
    tpu.vector_store %arg11[%c0_66, %c512], %38 {strides = array<i32>} : memref<128x1152xbf16, #tpu.memory_space<vmem>>, vector<128x128xbf16>,
    %cst_67 = arith.constant 0.000000e+00 : bf16
    %56 = vector.broadcast %cst_67 : bf16 to vector<1x128xbf16>
    %c127 = arith.constant 127 : index
    %c640 = arith.constant 640 : index
    %57 = vector.load %arg11[%c127, %c640] : memref<128x1152xbf16, #tpu.memory_space<vmem>>, vector<1x128xbf16>
    tpu.vector_store %arg11[%c127, %c640], %56 {strides = array<i32>} : memref<128x1152xbf16, #tpu.memory_space<vmem>>, vector<1x128xbf16>,
    %58 = vector.extract_strided_slice %38 {offsets = [1, 0], sizes = [127, 128], strides = [1, 1]} : vector<128x128xbf16> to vector<127x128xbf16>
    %c0_68 = arith.constant 0 : index
    %c640_69 = arith.constant 640 : index
    %59 = vector.load %arg11[%c0_68, %c640_69] : memref<128x1152xbf16, #tpu.memory_space<vmem>>, vector<127x128xbf16>
    tpu.vector_store %arg11[%c0_68, %c640_69], %58 {strides = array<i32>} : memref<128x1152xbf16, #tpu.memory_space<vmem>>, vector<127x128xbf16>,
    %cst_70 = arith.constant 0.000000e+00 : bf16
    %60 = vector.broadcast %cst_70 : bf16 to vector<15x128xbf16>
    %c113 = arith.constant 113 : index
    %c768 = arith.constant 768 : index
    %61 = vector.load %arg11[%c113, %c768] : memref<128x1152xbf16, #tpu.memory_space<vmem>>, vector<15x128xbf16>
    tpu.vector_store %arg11[%c113, %c768], %60 {strides = array<i32>} : memref<128x1152xbf16, #tpu.memory_space<vmem>>, vector<15x128xbf16>,
    %62 = vector.extract_strided_slice %38 {offsets = [15, 0], sizes = [113, 128], strides = [1, 1]} : vector<128x128xbf16> to vector<113x128xbf16>
    %c0_71 = arith.constant 0 : index
    %c768_72 = arith.constant 768 : index
    %63 = vector.load %arg11[%c0_71, %c768_72] : memref<128x1152xbf16, #tpu.memory_space<vmem>>, vector<113x128xbf16>
    tpu.vector_store %arg11[%c0_71, %c768_72], %62 {strides = array<i32>} : memref<128x1152xbf16, #tpu.memory_space<vmem>>, vector<113x128xbf16>,
    %cst_73 = arith.constant 0.000000e+00 : bf16
    %64 = vector.broadcast %cst_73 : bf16 to vector<16x128xbf16>
    %c112 = arith.constant 112 : index
    %c896 = arith.constant 896 : index
    %65 = vector.load %arg11[%c112, %c896] : memref<128x1152xbf16, #tpu.memory_space<vmem>>, vector<16x128xbf16>
    tpu.vector_store %arg11[%c112, %c896], %64 {strides = array<i32>} : memref<128x1152xbf16, #tpu.memory_space<vmem>>, vector<16x128xbf16>,
    %66 = vector.extract_strided_slice %38 {offsets = [16, 0], sizes = [112, 128], strides = [1, 1]} : vector<128x128xbf16> to vector<112x128xbf16>
    %c0_74 = arith.constant 0 : index
    %c896_75 = arith.constant 896 : index
    %67 = vector.load %arg11[%c0_74, %c896_75] : memref<128x1152xbf16, #tpu.memory_space<vmem>>, vector<112x128xbf16>
    tpu.vector_store %arg11[%c0_74, %c896_75], %66 {strides = array<i32>} : memref<128x1152xbf16, #tpu.memory_space<vmem>>, vector<112x128xbf16>,
    %cst_76 = arith.constant 0.000000e+00 : bf16
    %68 = vector.broadcast %cst_76 : bf16 to vector<17x128xbf16>
    %c111 = arith.constant 111 : index
    %c1024 = arith.constant 1024 : index
    %69 = vector.load %arg11[%c111, %c1024] : memref<128x1152xbf16, #tpu.memory_space<vmem>>, vector<17x128xbf16>
    tpu.vector_store %arg11[%c111, %c1024], %68 {strides = array<i32>} : memref<128x1152xbf16, #tpu.memory_space<vmem>>, vector<17x128xbf16>,
    %70 = vector.extract_strided_slice %38 {offsets = [17, 0], sizes = [111, 128], strides = [1, 1]} : vector<128x128xbf16> to vector<111x128xbf16>
    %c0_77 = arith.constant 0 : index
    %c1024_78 = arith.constant 1024 : index
    %71 = vector.load %arg11[%c0_77, %c1024_78] : memref<128x1152xbf16, #tpu.memory_space<vmem>>, vector<111x128xbf16>
    tpu.vector_store %arg11[%c0_77, %c1024_78], %70 {strides = array<i32>} : memref<128x1152xbf16, #tpu.memory_space<vmem>>, vector<111x128xbf16>,
    %c0_79 = arith.constant 0 : index
    %c0_80 = arith.constant 0 : index
    %72 = vector.load %arg11[%c0_79, %c0_80] : memref<128x1152xbf16, #tpu.memory_space<vmem>>, vector<128x1152xbf16>
    %c0_81 = arith.constant 0 : index
    %c0_82 = arith.constant 0 : index
    %73 = vector.load %arg3[%c0_81, %c0_82] : memref<1152x128xbf16, #tpu.memory_space<vmem>>, vector<1152x128xbf16>
    %cst_83 = arith.constant dense<0.000000e+00> : vector<128x128xf32>
    %74 = tpu.matmul %72, %73, %cst_83 {dimension_numbers = #tpu.dot_dimension_numbers<[1], [0], [0], [1], [0, 0, 1, 1], [], []>} : vector<128x1152xbf16>, vector<1152x128xbf16>, vector<128x128xf32> -> vector<128x128xf32>
    %c0_84 = arith.constant 0 : index
    %c0_85 = arith.constant 0 : index
    %75 = vector.load %arg6[%c0_84, %c0_85] : memref<1x128xf32, #tpu.memory_space<vmem>>, vector<1x128xf32>
    %76 = vector.broadcast %75 : vector<1x128xf32> to vector<128x128xf32>
    %77 = arith.addf %74, %76 : vector<128x128xf32>
    %c0_86 = arith.constant 0 : index
    %c3_87 = arith.constant 3 : index
    %c0_88 = arith.constant 0 : index
    %c0_89 = arith.constant 0 : index
    %78 = vector.load %arg1[%c0_86, %c3_87, %c0_88, %c0_89] : memref<1x4x176x4xbf16, #tpu.memory_space<vmem>>, vector<1x1x128x4xbf16>
    %79 = vector.shape_cast %78 : vector<1x1x128x4xbf16> to vector<128x4xbf16>
    %c0_90 = arith.constant 0 : index
    %c0_91 = arith.constant 0 : index
    %80 = vector.load %arg4[%c0_90, %c0_91] : memref<4x128xbf16, #tpu.memory_space<vmem>>, vector<4x128xbf16>
    %cst_92 = arith.constant dense<0.000000e+00> : vector<128x128xf32>
    %81 = tpu.matmul %79, %80, %cst_92 {dimension_numbers = #tpu.dot_dimension_numbers<[1], [0], [0], [1], [0, 0, 1, 1], [], []>} : vector<128x4xbf16>, vector<4x128xbf16>, vector<128x128xf32> -> vector<128x128xf32>
    %c0_93 = arith.constant 0 : index
    %c0_94 = arith.constant 0 : index
    %82 = vector.load %arg7[%c0_93, %c0_94] : memref<1x128xf32, #tpu.memory_space<vmem>>, vector<1x128xf32>
    %83 = vector.broadcast %82 : vector<1x128xf32> to vector<128x128xf32>
    %84 = arith.addf %81, %83 : vector<128x128xf32>
    %85 = arith.addf %77, %84 : vector<128x128xf32>
    %cst_95 = arith.constant 0.000000e+00 : f32
    %86 = vector.broadcast %cst_95 : f32 to vector<128x128xf32>
    %87 = arith.maximumf %85, %86 : vector<128x128xf32>
    %88 = arith.truncf %87 : vector<128x128xf32> to vector<128x128xbf16>
    %c0_96 = arith.constant 0 : index
    %c0_97 = arith.constant 0 : index
    %c0_98 = arith.constant 0 : index
    %89 = vector.load %arg9[%c0_96, %c0_97, %c0_98] : memref<1x128x128xbf16, #tpu.memory_space<vmem>>, vector<1x128x128xbf16>
    %90 = vector.shape_cast %89 : vector<1x128x128xbf16> to vector<128x128xbf16>
    %91 = vector.shape_cast %88 : vector<128x128xbf16> to vector<1x128x128xbf16>
    tpu.vector_store %arg9[%c0_96, %c0_97, %c0_98], %91 {strides = array<i32>} : memref<1x128x128xbf16, #tpu.memory_space<vmem>>, vector<1x128x128xbf16>,
    return
  }
  func.func @transform_0(%arg0: i32) -> (i32, i32, i32, i32) {
    %c0_i32 = arith.constant 0 : i32
    %c0_i32_0 = arith.constant 0 : i32
    %c0_i32_1 = arith.constant 0 : i32
    %c0_i32_2 = arith.constant 0 : i32
    return %arg0, %c0_i32, %c0_i32_0, %c0_i32_1 : i32, i32, i32, i32
  }
  func.func @transform_1(%arg0: i32) -> (i32, i32) {
    %c0_i32 = arith.constant 0 : i32
    %c0_i32_0 = arith.constant 0 : i32
    %c0_i32_1 = arith.constant 0 : i32
    return %c0_i32, %c0_i32_0 : i32, i32
  }
  func.func @transform_2(%arg0: i32) -> (i32, i32) {
    %c0_i32 = arith.constant 0 : i32
    %c0_i32_0 = arith.constant 0 : i32
    %c0_i32_1 = arith.constant 0 : i32
    return %c0_i32, %c0_i32_0 : i32, i32
  }
  func.func @transform_3(%arg0: i32) -> (i32, i32) {
    %c0_i32 = arith.constant 0 : i32
    %c0_i32_0 = arith.constant 0 : i32
    %c0_i32_1 = arith.constant 0 : i32
    return %c0_i32, %c0_i32_0 : i32, i32
  }
  func.func @transform_4(%arg0: i32) -> (i32, i32) {
    %c0_i32 = arith.constant 0 : i32
    %c0_i32_0 = arith.constant 0 : i32
    %c0_i32_1 = arith.constant 0 : i32
    return %c0_i32, %c0_i32_0 : i32, i32
  }
  func.func @transform_5(%arg0: i32) -> (i32, i32) {
    %c0_i32 = arith.constant 0 : i32
    %c0_i32_0 = arith.constant 0 : i32
    %c0_i32_1 = arith.constant 0 : i32
    return %c0_i32, %c0_i32_0 : i32, i32
  }
  func.func @transform_6(%arg0: i32) -> (i32, i32) {
    %c0_i32 = arith.constant 0 : i32
    %c0_i32_0 = arith.constant 0 : i32
    %c0_i32_1 = arith.constant 0 : i32
    return %c0_i32, %c0_i32_0 : i32, i32
  }
  func.func @transform_7(%arg0: i32) -> (i32, i32) {
    %c0_i32 = arith.constant 0 : i32
    %c0_i32_0 = arith.constant 0 : i32
    %c0_i32_1 = arith.constant 0 : i32
    return %c0_i32, %c0_i32_0 : i32, i32
  }
  func.func @transform_8(%arg0: i32) -> (i32, i32, i32) {
    %c0_i32 = arith.constant 0 : i32
    %c0_i32_0 = arith.constant 0 : i32
    %c0_i32_1 = arith.constant 0 : i32
    return %arg0, %c0_i32, %c0_i32_0 : i32, i32, i32
  }
}

</mosaic_0001>

<llo_original>
// kernel: basic_block_forward.1
$region0: #{basic_block_forward.1}
  #allocation0 [shape = 'u32[]', space=smem, size = 0x4, offset = 0x4, fixed_abs, tag = 'smem constant byte address 0x4 - core index']
  #allocation1 [shape = 'u32[144,128]{1,0:T(1,128)}', space=vmem, size = 0x12000, scoped, tag = 'internal scratch']
  #allocation2 [shape = 'bf16[128,36]{1,0:T(16,128)(2,1)}', space=vmem, size = 0x8000, scoped, tag = 'scratch operand']
  #allocation3 [shape = 'bf16[128,1152]{1,0:T(16,128)(2,1)}', space=vmem, size = 0x48000, scoped, tag = 'scratch operand']
  %s0 = inlined_call_operand.vmem [shape: bf16[2,4,176,4], index: 0, kind: input, shape index: {}]
  %s1 = inlined_call_operand.vmem [shape: bf16[36,128], index: 1, kind: input, shape index: {}]
  %s2 = inlined_call_operand.vmem [shape: bf16[1152,128], index: 2, kind: input, shape index: {}]
  %s3 = inlined_call_operand.vmem [shape: bf16[4,128], index: 3, kind: input, shape index: {}]
  %s4 = inlined_call_operand.vmem [shape: f32[1,128], index: 4, kind: input, shape index: {}]
  %s5 = inlined_call_operand.vmem [shape: f32[1,128], index: 5, kind: input, shape index: {}]
  %s6 = inlined_call_operand.vmem [shape: f32[1,128], index: 6, kind: input, shape index: {}]
  %s7 = inlined_call_operand.vmem [shape: f32[128,1], index: 7, kind: input, shape index: {}]
  %s8 = inlined_call_operand.vmem [shape: bf16[2,128,128], index: 8, kind: output, shape index: {}]
  %s9 = sld [smem:[#allocation0]]
  $region65: #{basic_block_forward.1} parent=0
    _
  %s11 = ssub.s32 1, %s9
  %s12 = scalar_select 0, %s11, %s9
  loop: start=0, step=1, limit=4
  $region2: #{basic_block_forward.1} parent=0 // loop_pre_header
    _
  $region3: #{basic_block_forward.1} parent=0 // loop_header
    %s14 = sphi 0, %s18
    %p15 = scmp.ge.s32.totalorder %s14, 4
    %s24 = sphi 0, %s26
    %s27 = sphi 0, %s24
    %s28 = sphi 0, %s27
    %s44 = sphi 0, %s28
    %s48 = sphi 0, %s48
    %s50 = sphi 0, %s48
    %s51 = sphi 0, %s50
    %s65 = sphi 0, %s51
    %s69 = sphi 0, %s69
    %s71 = sphi 0, %s69
    %s72 = sphi 0, %s71
    %s86 = sphi 0, %s72
    %s90 = sphi 0, %s90
    %s92 = sphi 0, %s90
    %s93 = sphi 0, %s92
    %s107 = sphi 0, %s93
    %s111 = sphi 0, %s111
    %s113 = sphi 0, %s111
    %s114 = sphi 0, %s113
    %s128 = sphi 0, %s114
    %s132 = sphi 0, %s132
    %s134 = sphi 0, %s132
    %s135 = sphi 0, %s134
    %s149 = sphi 0, %s135
    %s153 = sphi 0, %s153
    %s155 = sphi 0, %s153
    %s156 = sphi 0, %s155
    %s170 = sphi 0, %s156
    %s174 = sphi 0, %s174
    %s176 = sphi 0, %s174
    %s177 = sphi 0, %s176
    %s191 = sphi 0, %s177
    %s197 = sphi 0, %s199
    %s200 = sphi 0, %s197
    %s201 = sphi 0, %s200
    %s217 = sphi 0, %s201
  $region4: #{basic_block_forward.1} parent=0 // loop_header_branch
    %17 = sbr.rel (%p15) target = $region8
  $region5: #{basic_block_forward.1} parent=0 // loop_body
    %s19 = ssub.s32 %s14, 1
    %s20 = ssub.s32 %s14, 2
    %s21 = sadd.s32 %s14, 1
    %s22 = ssub.s32 %s14, %s21
    %p23 = scmp.eq.s32.totalorder %s22, 0
    %s25 = sadd.s32 %s24, 1
    %s26 = scalar_select %p23, %s24, %s25
    %p29 = pneg %p23
    %p30 = scmp.eq.s32.totalorder %s14, 1
    %p31 = por %p29, %p30
    %p32 = scmp.ne.s32.totalorder %s24, %s27
    %p33 = scmp.eq.s32.totalorder %s14, 0
    %p34 = por %p32, %p33
    %p35 = scmp.ne.s32.totalorder %s24, %s27
    %p36 = scmp.eq.s32.totalorder %s19, 1
    %p37 = por %p35, %p36
    %p38 = scmp.ne.s32.totalorder %s27, %s28
    %p39 = scmp.eq.s32.totalorder %s19, 0
    %p40 = por %p38, %p39
    %p41 = scmp.ne.s32.totalorder %s27, %s28
    %p42 = scmp.eq.s32.totalorder %s20, 1
    %p43 = por %p41, %p42
    %p45 = scmp.ne.s32.totalorder %s28, %s44
    %p46 = scmp.eq.s32.totalorder %s20, 0
    %p47 = por %p45, %p46
    %s49 = sadd.s32 %s48, 1
    %p52 = scmp.eq.s32.totalorder %s14, 1
    %p53 = scmp.ne.s32.totalorder %s48, %s50
    %p54 = scmp.eq.s32.totalorder %s14, 0
    %p55 = por %p53, %p54
    %p56 = scmp.ne.s32.totalorder %s48, %s50
    %p57 = scmp.eq.s32.totalorder %s19, 1
    %p58 = por %p56, %p57
    %p59 = scmp.ne.s32.totalorder %s50, %s51
    %p60 = scmp.eq.s32.totalorder %s19, 0
    %p61 = por %p59, %p60
    %p62 = scmp.ne.s32.totalorder %s50, %s51
    %p63 = scmp.eq.s32.totalorder %s20, 1
    %p64 = por %p62, %p63
    %p66 = scmp.ne.s32.totalorder %s51, %s65
    %p67 = scmp.eq.s32.totalorder %s20, 0
    %p68 = por %p66, %p67
    %s70 = sadd.s32 %s69, 1
    %p73 = scmp.eq.s32.totalorder %s14, 1
    %p74 = scmp.ne.s32.totalorder %s69, %s71
    %p75 = scmp.eq.s32.totalorder %s14, 0
    %p76 = por %p74, %p75
    %p77 = scmp.ne.s32.totalorder %s69, %s71
    %p78 = scmp.eq.s32.totalorder %s19, 1
    %p79 = por %p77, %p78
    %p80 = scmp.ne.s32.totalorder %s71, %s72
    %p81 = scmp.eq.s32.totalorder %s19, 0
    %p82 = por %p80, %p81
    %p83 = scmp.ne.s32.totalorder %s71, %s72
    %p84 = scmp.eq.s32.totalorder %s20, 1
    %p85 = por %p83, %p84
    %p87 = scmp.ne.s32.totalorder %s72, %s86
    %p88 = scmp.eq.s32.totalorder %s20, 0
    %p89 = por %p87, %p88
    %s91 = sadd.s32 %s90, 1
    %p94 = scmp.eq.s32.totalorder %s14, 1
    %p95 = scmp.ne.s32.totalorder %s90, %s92
    %p96 = scmp.eq.s32.totalorder %s14, 0
    %p97 = por %p95, %p96
    %p98 = scmp.ne.s32.totalorder %s90, %s92
    %p99 = scmp.eq.s32.totalorder %s19, 1
    %p100 = por %p98, %p99
    %p101 = scmp.ne.s32.totalorder %s92, %s93
    %p102 = scmp.eq.s32.totalorder %s19, 0
    %p103 = por %p101, %p102
    %p104 = scmp.ne.s32.totalorder %s92, %s93
    %p105 = scmp.eq.s32.totalorder %s20, 1
    %p106 = por %p104, %p105
    %p108 = scmp.ne.s32.totalorder %s93, %s107
    %p109 = scmp.eq.s32.totalorder %s20, 0
    %p110 = por %p108, %p109
    %s112 = sadd.s32 %s111, 1
    %p115 = scmp.eq.s32.totalorder %s14, 1
    %p116 = scmp.ne.s32.totalorder %s111, %s113
    %p117 = scmp.eq.s32.totalorder %s14, 0
    %p118 = por %p116, %p117
    %p119 = scmp.ne.s32.totalorder %s111, %s113
    %p120 = scmp.eq.s32.totalorder %s19, 1
    %p121 = por %p119, %p120
    %p122 = scmp.ne.s32.totalorder %s113, %s114
    %p123 = scmp.eq.s32.totalorder %s19, 0
    %p124 = por %p122, %p123
    %p125 = scmp.ne.s32.totalorder %s113, %s114
    %p126 = scmp.eq.s32.totalorder %s20, 1
    %p127 = por %p125, %p126
    %p129 = scmp.ne.s32.totalorder %s114, %s128
    %p130 = scmp.eq.s32.totalorder %s20, 0
    %p131 = por %p129, %p130
    %s133 = sadd.s32 %s132, 1
    %p136 = scmp.eq.s32.totalorder %s14, 1
    %p137 = scmp.ne.s32.totalorder %s132, %s134
    %p138 = scmp.eq.s32.totalorder %s14, 0
    %p139 = por %p137, %p138
    %p140 = scmp.ne.s32.totalorder %s132, %s134
    %p141 = scmp.eq.s32.totalorder %s19, 1
    %p142 = por %p140, %p141
    %p143 = scmp.ne.s32.totalorder %s134, %s135
    %p144 = scmp.eq.s32.totalorder %s19, 0
    %p145 = por %p143, %p144
    %p146 = scmp.ne.s32.totalorder %s134, %s135
    %p147 = scmp.eq.s32.totalorder %s20, 1
    %p148 = por %p146, %p147
    %p150 = scmp.ne.s32.totalorder %s135, %s149
    %p151 = scmp.eq.s32.totalorder %s20, 0
    %p152 = por %p150, %p151
    %s154 = sadd.s32 %s153, 1
    %p157 = scmp.eq.s32.totalorder %s14, 1
    %p158 = scmp.ne.s32.totalorder %s153, %s155
    %p159 = scmp.eq.s32.totalorder %s14, 0
    %p160 = por %p158, %p159
    %p161 = scmp.ne.s32.totalorder %s153, %s155
    %p162 = scmp.eq.s32.totalorder %s19, 1
    %p163 = por %p161, %p162
    %p164 = scmp.ne.s32.totalorder %s155, %s156
    %p165 = scmp.eq.s32.totalorder %s19, 0
    %p166 = por %p164, %p165
    %p167 = scmp.ne.s32.totalorder %s155, %s156
    %p168 = scmp.eq.s32.totalorder %s20, 1
    %p169 = por %p167, %p168
    %p171 = scmp.ne.s32.totalorder %s156, %s170
    %p172 = scmp.eq.s32.totalorder %s20, 0
    %p173 = por %p171, %p172
    %s175 = sadd.s32 %s174, 1
    %p178 = scmp.eq.s32.totalorder %s14, 1
    %p179 = scmp.ne.s32.totalorder %s174, %s176
    %p180 = scmp.eq.s32.totalorder %s14, 0
    %p181 = por %p179, %p180
    %p182 = scmp.ne.s32.totalorder %s174, %s176
    %p183 = scmp.eq.s32.totalorder %s19, 1
    %p184 = por %p182, %p183
    %p185 = scmp.ne.s32.totalorder %s176, %s177
    %p186 = scmp.eq.s32.totalorder %s19, 0
    %p187 = por %p185, %p186
    %p188 = scmp.ne.s32.totalorder %s176, %s177
    %p189 = scmp.eq.s32.totalorder %s20, 1
    %p190 = por %p188, %p189
    %p192 = scmp.ne.s32.totalorder %s177, %s191
    %p193 = scmp.eq.s32.totalorder %s20, 0
    %p194 = por %p192, %p193
    %s195 = ssub.s32 %s14, %s21
    %p196 = scmp.eq.s32.totalorder %s195, 0
    %s198 = sadd.s32 %s197, 1
    %s199 = scalar_select %p196, %s197, %s198
    %p202 = pneg %p196
    %p203 = scmp.eq.s32.totalorder %s14, 1
    %p204 = por %p202, %p203
    %p205 = scmp.ne.s32.totalorder %s197, %s200
    %p206 = scmp.eq.s32.totalorder %s14, 0
    %p207 = por %p205, %p206
    %p208 = scmp.ne.s32.totalorder %s197, %s200
    %p209 = scmp.eq.s32.totalorder %s19, 1
    %p210 = por %p208, %p209
    %p211 = scmp.ne.s32.totalorder %s200, %s201
    %p212 = scmp.eq.s32.totalorder %s19, 0
    %p213 = por %p211, %p212
    %p214 = scmp.ne.s32.totalorder %s200, %s201
    %p215 = scmp.eq.s32.totalorder %s20, 1
    %p216 = por %p214, %p215
    %p218 = scmp.ne.s32.totalorder %s201, %s217
    %p219 = scmp.eq.s32.totalorder %s20, 0
    %p220 = por %p218, %p219
    %p221 = scmp.le.s32.totalorder 1, %s14
    %p222 = scmp.lt.s32.totalorder %s14, 3
    %p223 = pnand %p221, %p222
    %p224 = pneg %p223
    // Predicated region
    $region9: #{basic_block_forward.1} parent=5 // pred_check
      _
    $region10: #{basic_block_forward.1} parent=5 // pred_check_branch
      %226 = sbr.rel (%p223) target = $region12
    $region11: #{basic_block_forward.1} parent=5 // pred_region
      %s227 = ssub.s32 %s14, 1
      // Predicated region
      $region13: #{basic_block_forward.1} parent=11 // pred_check
        %p228 = pneg %p61
      $region14: #{basic_block_forward.1} parent=11 // pred_check_branch
        %230 = sbr.rel (%p228) target = $region16
      $region15: #{basic_block_forward.1} parent=11 // pred_region
        _
      $region16: #{basic_block_forward.1} parent=11 // pred_fallthru
        _
      // Predicated region
      $region17: #{basic_block_forward.1} parent=11 // pred_check
        %p231 = pneg %p82
      $region18: #{basic_block_forward.1} parent=11 // pred_check_branch
        %233 = sbr.rel (%p231) target = $region20
      $region19: #{basic_block_forward.1} parent=11 // pred_region
        _
      $region20: #{basic_block_forward.1} parent=11 // pred_fallthru
        _
      // Predicated region
      $region21: #{basic_block_forward.1} parent=11 // pred_check
        %p234 = pneg %p103
      $region22: #{basic_block_forward.1} parent=11 // pred_check_branch
        %236 = sbr.rel (%p234) target = $region24
      $region23: #{basic_block_forward.1} parent=11 // pred_region
        _
      $region24: #{basic_block_forward.1} parent=11 // pred_fallthru
        _
      // Predicated region
      $region25: #{basic_block_forward.1} parent=11 // pred_check
        %p237 = pneg %p124
      $region26: #{basic_block_forward.1} parent=11 // pred_check_branch
        %239 = sbr.rel (%p237) target = $region28
      $region27: #{basic_block_forward.1} parent=11 // pred_region
        _
      $region28: #{basic_block_forward.1} parent=11 // pred_fallthru
        _
      // Predicated region
      $region29: #{basic_block_forward.1} parent=11 // pred_check
        %p240 = pneg %p145
      $region30: #{basic_block_forward.1} parent=11 // pred_check_branch
        %242 = sbr.rel (%p240) target = $region32
      $region31: #{basic_block_forward.1} parent=11 // pred_region
        _
      $region32: #{basic_block_forward.1} parent=11 // pred_fallthru
        _
      // Predicated region
      $region33: #{basic_block_forward.1} parent=11 // pred_check
        %p243 = pneg %p166
      $region34: #{basic_block_forward.1} parent=11 // pred_check_branch
        %245 = sbr.rel (%p243) target = $region36
      $region35: #{basic_block_forward.1} parent=11 // pred_region
        _
      $region36: #{basic_block_forward.1} parent=11 // pred_fallthru
        _
      // Predicated region
      $region37: #{basic_block_forward.1} parent=11 // pred_check
        %p246 = pneg %p187
      $region38: #{basic_block_forward.1} parent=11 // pred_check_branch
        %248 = sbr.rel (%p246) target = $region40
      $region39: #{basic_block_forward.1} parent=11 // pred_region
        _
      $region40: #{basic_block_forward.1} parent=11 // pred_fallthru
        _
    $region12: #{basic_block_forward.1} parent=5 // pred_fallthru
      _
    %p249 = scmp.lt.s32.totalorder %s14, 2
    // Predicated region
    $region41: #{basic_block_forward.1} parent=5 // pred_check
      %p250 = pneg %p249
    $region42: #{basic_block_forward.1} parent=5 // pred_check_branch
      %252 = sbr.rel (%p250) target = $region44
    $region43: #{basic_block_forward.1} parent=5 // pred_region
      // Predicated region
      $region45: #{basic_block_forward.1} parent=43 // pred_check
        %p253 = pneg %p34
      $region46: #{basic_block_forward.1} parent=43 // pred_check_branch
        %255 = sbr.rel (%p253) target = $region48
      $region47: #{basic_block_forward.1} parent=43 // pred_region
        %p256 = scmp.lt.s32.totalorder %s14, 1
        %s257 = scalar_select %p256, %s14, 1
        %s258 = smul.addr %s257, 88
        %s259 = smul.addr %s258, 4
        %s260 = scalar_lea.vmem %s0, %s259
      $region48: #{basic_block_forward.1} parent=43 // pred_fallthru
        _
    $region44: #{basic_block_forward.1} parent=5 // pred_fallthru
      _
    %p261 = scmp.le.s32.totalorder 1, %s14
    %p262 = scmp.lt.s32.totalorder %s14, 3
    %p263 = pnand %p261, %p262
    %p264 = pneg %p263
    // Predicated region
    $region49: #{basic_block_forward.1} parent=5 // pred_check
      _
    $region50: #{basic_block_forward.1} parent=5 // pred_check_branch
      %266 = sbr.rel (%p263) target = $region52
    $region51: #{basic_block_forward.1} parent=5 // pred_region
      %s267 = ssub.s32 %s14, 1
      %p268 = scmp.lt.s32.totalorder %s19, 1
      %s269 = scalar_select %p268, %s19, 1
      %s270 = smul.addr %s269, 88
      %s271 = smul.addr %s270, 4
      %s272 = scalar_lea.vmem %s0, %s271
      %p273 = pneg %p40
      %p274 = pneg %p37
      %p275 = pneg %p61
      %p276 = pneg %p58
      %p277 = pneg %p82
      %p278 = pneg %p79
      %p279 = pneg %p103
      %p280 = pneg %p100
      %p281 = pneg %p124
      %p282 = pneg %p121
      %p283 = pneg %p145
      %p284 = pneg %p142
      %p285 = pneg %p166
      %p286 = pneg %p163
      %p287 = pneg %p187
      %p288 = pneg %p184
      %p289 = pneg %p213
      %p290 = pneg %p210
      %p291 = scmp.lt.s32.totalorder %s19, 1
      %s292 = scalar_select %p291, %s19, 1
      %s293 = smul.addr %s292, 16
      %s294 = smul.addr %s293, 4
      %s295 = scalar_lea.vmem %s8, %s294
      %p296 = scmp.lt.s32.totalorder %s19, 1
      %s297 = scalar_select %p296, %s19, 1
      %s298 = smul.addr %s297, 88
      %s299 = smul.addr %s298, 4
      %s300 = scalar_lea.vmem %s0, %s299
      %p301 = scmp.lt.s32.totalorder %s19, 1
      %s302 = scalar_select %p301, %s19, 1
      %s303 = smul.addr %s302, 16
      %s304 = smul.addr %s303, 4
      %s305 = scalar_lea.vmem %s8, %s304
      %v307 = vld [vmem:[%s300] sm:$0xf]
      %v308 = vld [vmem:[%s300 + $0x4] sm:$0xf]
      %v309 = vld [vmem:[%s300 + $0x8] sm:$0xf]
      %v310 = vld [vmem:[%s300 + $0xc] sm:$0xf]
      %v311 = vld [vmem:[%s300 + $0x10] sm:$0xf]
      %v312 = vld [vmem:[%s300 + $0x14] sm:$0xf]
      %v313 = vld [vmem:[%s300 + $0x18] sm:$0xf]
      %v314 = vld [vmem:[%s300 + $0x1c] sm:$0xf]
      %v315 = vld [vmem:[%s300 + $0x20] sm:$0xf]
      %v316 = vld [vmem:[%s300 + $0x24] sm:$0xf]
      %v317 = vld [vmem:[%s300 + $0x28] sm:$0xf]
      %v318 = vld [vmem:[%s300 + $0x2c] sm:$0xf]
      %v319 = vld [vmem:[%s300 + $0x30] sm:$0xf]
      %v320 = vld [vmem:[%s300 + $0x34] sm:$0xf]
      %v321 = vld [vmem:[%s300 + $0x38] sm:$0xf]
      %v322 = vld [vmem:[%s300 + $0x3c] sm:$0xf]
      %v339 = vunpack.c.l.b16 %v307
      %v340 = vunpack.c.l.b16 %v308
      %v341 = vunpack.c.l.b16 %v309
      %v342 = vunpack.c.l.b16 %v310
      %v343 = vunpack.c.l.b16 %v311
      %v344 = vunpack.c.l.b16 %v312
      %v345 = vunpack.c.l.b16 %v313
      %v346 = vunpack.c.l.b16 %v314
      %v347 = vunpack.c.l.b16 %v315
      %v348 = vunpack.c.l.b16 %v316
      %v349 = vunpack.c.l.b16 %v317
      %v350 = vunpack.c.l.b16 %v318
      %v351 = vunpack.c.l.b16 %v319
      %v352 = vunpack.c.l.b16 %v320
      %v353 = vunpack.c.l.b16 %v321
      %v354 = vunpack.c.l.b16 %v322
      %v355 = vpack.c.b16 %v340, %v339
      %v356 = vpack.c.b16 %v342, %v341
      %v357 = vpack.c.b16 %v344, %v343
      %v358 = vpack.c.b16 %v346, %v345
      %v359 = vpack.c.b16 %v348, %v347
      %v360 = vpack.c.b16 %v350, %v349
      %v361 = vpack.c.b16 %v352, %v351
      %v362 = vpack.c.b16 %v354, %v353
      %vm371 = vcmask 31744
      %372 = vst.msk [vmem:[#allocation2] sm:$0xff] %vm371, %v355
      %373 = vst.msk [vmem:[#allocation2 + $0x8] sm:$0xff] %vm371, %v356
      %374 = vst.msk [vmem:[#allocation2 + $0x10] sm:$0xff] %vm371, %v357
      %375 = vst.msk [vmem:[#allocation2 + $0x18] sm:$0xff] %vm371, %v358
      %376 = vst.msk [vmem:[#allocation2 + $0x20] sm:$0xff] %vm371, %v359
      %377 = vst.msk [vmem:[#allocation2 + $0x28] sm:$0xff] %vm371, %v360
      %378 = vst.msk [vmem:[#allocation2 + $0x30] sm:$0xff] %vm371, %v361
      %379 = vst.msk [vmem:[#allocation2 + $0x38] sm:$0xff] %vm371, %v362
      %s380 = scalar_lea.vmem %s300, 88
      %v381 = vld [vmem:[%s380] sm:$0xf]
      %v382 = vld [vmem:[%s380 + $0x4] sm:$0xf]
      %v383 = vld [vmem:[%s380 + $0x8] sm:$0xf]
      %v384 = vld [vmem:[%s380 + $0xc] sm:$0xf]
      %v385 = vld [vmem:[%s380 + $0x10] sm:$0xf]
      %v386 = vld [vmem:[%s380 + $0x14] sm:$0xf]
      %v387 = vld [vmem:[%s380 + $0x18] sm:$0xf]
      %v388 = vld [vmem:[%s380 + $0x1c] sm:$0xf]
      %v389 = vld [vmem:[%s380 + $0x20] sm:$0xf]
      %v390 = vld [vmem:[%s380 + $0x24] sm:$0xf]
      %v391 = vld [vmem:[%s380 + $0x28] sm:$0xf]
      %v392 = vld [vmem:[%s380 + $0x2c] sm:$0xf]
      %v393 = vld [vmem:[%s380 + $0x30] sm:$0xf]
      %v394 = vld [vmem:[%s380 + $0x34] sm:$0xf]
      %v395 = vld [vmem:[%s380 + $0x38] sm:$0xf]
      %v396 = vld [vmem:[%s380 + $0x3c] sm:$0xf]
      %v413 = vunpack.c.l.b16 %v381
      %v414 = vunpack.c.l.b16 %v382
      %v415 = vunpack.c.l.b16 %v383
      %v416 = vunpack.c.l.b16 %v384
      %v417 = vunpack.c.l.b16 %v385
      %v418 = vunpack.c.l.b16 %v386
      %v419 = vunpack.c.l.b16 %v387
      %v420 = vunpack.c.l.b16 %v388
      %v421 = vunpack.c.l.b16 %v389
      %v422 = vunpack.c.l.b16 %v390
      %v423 = vunpack.c.l.b16 %v391
      %v424 = vunpack.c.l.b16 %v392
      %v425 = vunpack.c.l.b16 %v393
      %v426 = vunpack.c.l.b16 %v394
      %v427 = vunpack.c.l.b16 %v395
      %v428 = vunpack.c.l.b16 %v396
      %v429 = vpack.c.b16 %v414, %v413
      %v430 = vpack.c.b16 %v416, %v415
      %v431 = vpack.c.b16 %v418, %v417
      %v432 = vpack.c.b16 %v420, %v419
      %v433 = vpack.c.b16 %v422, %v421
      %v434 = vpack.c.b16 %v424, %v423
      %v435 = vpack.c.b16 %v426, %v425
      %v436 = vpack.c.b16 %v428, %v427
      %437 = vrot.lane.b32.xlu0 %v429, 4
      %v438 = vpop.permute.xlu0 %437
      %439 = vrot.lane.b32.xlu0 %v430, 4
      %v440 = vpop.permute.xlu0 %439
      %441 = vrot.lane.b32.xlu0 %v431, 4
      %v442 = vpop.permute.xlu0 %441
      %443 = vrot.lane.b32.xlu0 %v432, 4
      %v444 = vpop.permute.xlu0 %443
      %445 = vrot.lane.b32.xlu0 %v433, 4
      %v446 = vpop.permute.xlu0 %445
      %447 = vrot.lane.b32.xlu0 %v434, 4
      %v448 = vpop.permute.xlu0 %447
      %449 = vrot.lane.b32.xlu0 %v435, 4
      %v450 = vpop.permute.xlu0 %449
      %451 = vrot.lane.b32.xlu0 %v436, 4
      %v452 = vpop.permute.xlu0 %451
      %vm461 = vcmask 64544
      %462 = vst.msk [vmem:[#allocation2] sm:$0xff] %vm461, %v438
      %463 = vst.msk [vmem:[#allocation2 + $0x8] sm:$0xff] %vm461, %v440
      %464 = vst.msk [vmem:[#allocation2 + $0x10] sm:$0xff] %vm461, %v442
      %465 = vst.msk [vmem:[#allocation2 + $0x18] sm:$0xff] %vm461, %v444
      %466 = vst.msk [vmem:[#allocation2 + $0x20] sm:$0xff] %vm461, %v446
      %467 = vst.msk [vmem:[#allocation2 + $0x28] sm:$0xff] %vm461, %v448
      %468 = vst.msk [vmem:[#allocation2 + $0x30] sm:$0xff] %vm461, %v450
      %469 = vst.msk [vmem:[#allocation2 + $0x38] sm:$0xff] %vm461, %v452
      %v470 = vld [vmem:[%s300] sm:$0xf]
      %v471 = vld [vmem:[%s300 + $0x4] sm:$0xf]
      %v472 = vld [vmem:[%s300 + $0x8] sm:$0xf]
      %v473 = vld [vmem:[%s300 + $0xc] sm:$0xf]
      %v474 = vld [vmem:[%s300 + $0x10] sm:$0xf]
      %v475 = vld [vmem:[%s300 + $0x14] sm:$0xf]
      %v476 = vld [vmem:[%s300 + $0x18] sm:$0xf]
      %v477 = vld [vmem:[%s300 + $0x1c] sm:$0xf]
      %v478 = vld [vmem:[%s300 + $0x20] sm:$0xf]
      %v479 = vld [vmem:[%s300 + $0x24] sm:$0xf]
      %v480 = vld [vmem:[%s300 + $0x28] sm:$0xf]
      %v481 = vld [vmem:[%s300 + $0x2c] sm:$0xf]
      %v482 = vld [vmem:[%s300 + $0x30] sm:$0xf]
      %v483 = vld [vmem:[%s300 + $0x34] sm:$0xf]
      %v484 = vld [vmem:[%s300 + $0x38] sm:$0xf]
      %v485 = vld [vmem:[%s300 + $0x3c] sm:$0xf]
      %v486 = vld [vmem:[%s300 + $0x40] sm:$0x1]
      %v504 = vunpack.c.l.b16 %v470
      %v505 = vunpack.c.l.b16 %v471
      %v506 = vunpack.c.l.b16 %v472
      %v507 = vunpack.c.l.b16 %v473
      %v508 = vunpack.c.l.b16 %v474
      %v509 = vunpack.c.l.b16 %v475
      %v510 = vunpack.c.l.b16 %v476
      %v511 = vunpack.c.l.b16 %v477
      %v512 = vunpack.c.l.b16 %v478
      %v513 = vunpack.c.l.b16 %v479
      %v514 = vunpack.c.l.b16 %v480
      %v515 = vunpack.c.l.b16 %v481
      %v516 = vunpack.c.l.b16 %v482
      %v517 = vunpack.c.l.b16 %v483
      %v518 = vunpack.c.l.b16 %v484
      %v519 = vunpack.c.l.b16 %v485
      %v520 = vunpack.c.l.b16 %v486
      %v521 = vpack.c.b16 %v505, %v504
      %v522 = vpack.c.b16 %v507, %v506
      %v523 = vpack.c.b16 %v509, %v508
      %v524 = vpack.c.b16 %v511, %v510
      %v525 = vpack.c.b16 %v513, %v512
      %v526 = vpack.c.b16 %v515, %v514
      %v527 = vpack.c.b16 %v517, %v516
      %v528 = vpack.c.b16 %v519, %v518
      %v529 = vpack.c.b16 %v520, %v520
      %vm530 = vsmask.f32 7424
      %v532 = vshrl.u32 %v521, 16
      %v534 = vshll.u32 %v521, 16
      %v536 = vrot.slane %v534, 1
      %v537 = vor.u32 %v532, %v536
      %v539 = vshll.u32 %v522, 16
      %v541 = vrot.slane %v539, 1
      %v542 = vsel %vm530, %v537, %v541
      %v543 = vshrl.u32 %v522, 16
      %v545 = vor.u32 %v543, %v541
      %v547 = vshll.u32 %v523, 16
      %v549 = vrot.slane %v547, 1
      %v550 = vsel %vm530, %v545, %v549
      %v551 = vshrl.u32 %v523, 16
      %v553 = vor.u32 %v551, %v549
      %v555 = vshll.u32 %v524, 16
      %v557 = vrot.slane %v555, 1
      %v558 = vsel %vm530, %v553, %v557
      %v559 = vshrl.u32 %v524, 16
      %v561 = vor.u32 %v559, %v557
      %v563 = vshll.u32 %v525, 16
      %v565 = vrot.slane %v563, 1
      %v566 = vsel %vm530, %v561, %v565
      %v567 = vshrl.u32 %v525, 16
      %v569 = vor.u32 %v567, %v565
      %v571 = vshll.u32 %v526, 16
      %v573 = vrot.slane %v571, 1
      %v574 = vsel %vm530, %v569, %v573
      %v575 = vshrl.u32 %v526, 16
      %v577 = vor.u32 %v575, %v573
      %v579 = vshll.u32 %v527, 16
      %v581 = vrot.slane %v579, 1
      %v582 = vsel %vm530, %v577, %v581
      %v583 = vshrl.u32 %v527, 16
      %v585 = vor.u32 %v583, %v581
      %v587 = vshll.u32 %v528, 16
      %v589 = vrot.slane %v587, 1
      %v590 = vsel %vm530, %v585, %v589
      %v591 = vshrl.u32 %v528, 16
      %v593 = vor.u32 %v591, %v589
      %v595 = vshll.u32 %v529, 16
      %v597 = vrot.slane %v595, 1
      %v598 = vsel %vm530, %v593, %v597
      %599 = vrot.lane.b32.xlu0 %v542, 8
      %v600 = vpop.permute.xlu0 %599
      %601 = vrot.lane.b32.xlu0 %v550, 8
      %v602 = vpop.permute.xlu0 %601
      %603 = vrot.lane.b32.xlu0 %v558, 8
      %v604 = vpop.permute.xlu0 %603
      %605 = vrot.lane.b32.xlu0 %v566, 8
      %v606 = vpop.permute.xlu0 %605
      %607 = vrot.lane.b32.xlu0 %v574, 8
      %v608 = vpop.permute.xlu0 %607
      %609 = vrot.lane.b32.xlu0 %v582, 8
      %v610 = vpop.permute.xlu0 %609
      %611 = vrot.lane.b32.xlu0 %v590, 8
      %v612 = vpop.permute.xlu0 %611
      %613 = vrot.lane.b32.xlu0 %v598, 8
      %v614 = vpop.permute.xlu0 %613
      %vm623 = vcmask 97344
      %624 = vst.msk [vmem:[#allocation2] sm:$0xff] %vm623, %v600
      %625 = vst.msk [vmem:[#allocation2 + $0x8] sm:$0xff] %vm623, %v602
      %626 = vst.msk [vmem:[#allocation2 + $0x10] sm:$0xff] %vm623, %v604
      %627 = vst.msk [vmem:[#allocation2 + $0x18] sm:$0xff] %vm623, %v606
      %628 = vst.msk [vmem:[#allocation2 + $0x20] sm:$0xff] %vm623, %v608
      %629 = vst.msk [vmem:[#allocation2 + $0x28] sm:$0xff] %vm623, %v610
      %630 = vst.msk [vmem:[#allocation2 + $0x30] sm:$0xff] %vm623, %v612
      %631 = vst.msk [vmem:[#allocation2 + $0x38] sm:$0xff] %vm623, %v614
      %s632 = scalar_lea.vmem %s300, 176
      %v633 = vld [vmem:[%s632] sm:$0xf]
      %v634 = vld [vmem:[%s632 + $0x4] sm:$0xf]
      %v635 = vld [vmem:[%s632 + $0x8] sm:$0xf]
      %v636 = vld [vmem:[%s632 + $0xc] sm:$0xf]
      %v637 = vld [vmem:[%s632 + $0x10] sm:$0xf]
      %v638 = vld [vmem:[%s632 + $0x14] sm:$0xf]
      %v639 = vld [vmem:[%s632 + $0x18] sm:$0xf]
      %v640 = vld [vmem:[%s632 + $0x1c] sm:$0xf]
      %v641 = vld [vmem:[%s632 + $0x20] sm:$0xf]
      %v642 = vld [vmem:[%s632 + $0x24] sm:$0xf]
      %v643 = vld [vmem:[%s632 + $0x28] sm:$0xf]
      %v644 = vld [vmem:[%s632 + $0x2c] sm:$0xf]
      %v645 = vld [vmem:[%s632 + $0x30] sm:$0xf]
      %v646 = vld [vmem:[%s632 + $0x34] sm:$0xf]
      %v647 = vld [vmem:[%s632 + $0x38] sm:$0xf]
      %v648 = vld [vmem:[%s632 + $0x3c] sm:$0xf]
      %v665 = vunpack.c.l.b16 %v633
      %v666 = vunpack.c.l.b16 %v634
      %v667 = vunpack.c.l.b16 %v635
      %v668 = vunpack.c.l.b16 %v636
      %v669 = vunpack.c.l.b16 %v637
      %v670 = vunpack.c.l.b16 %v638
      %v671 = vunpack.c.l.b16 %v639
      %v672 = vunpack.c.l.b16 %v640
      %v673 = vunpack.c.l.b16 %v641
      %v674 = vunpack.c.l.b16 %v642
      %v675 = vunpack.c.l.b16 %v643
      %v676 = vunpack.c.l.b16 %v644
      %v677 = vunpack.c.l.b16 %v645
      %v678 = vunpack.c.l.b16 %v646
      %v679 = vunpack.c.l.b16 %v647
      %v680 = vunpack.c.l.b16 %v648
      %v681 = vpack.c.b16 %v666, %v665
      %v682 = vpack.c.b16 %v668, %v667
      %v683 = vpack.c.b16 %v670, %v669
      %v684 = vpack.c.b16 %v672, %v671
      %v685 = vpack.c.b16 %v674, %v673
      %v686 = vpack.c.b16 %v676, %v675
      %v687 = vpack.c.b16 %v678, %v677
      %v688 = vpack.c.b16 %v680, %v679
      %689 = vrot.lane.b32.xlu0 %v681, 12
      %v690 = vpop.permute.xlu0 %689
      %691 = vrot.lane.b32.xlu0 %v682, 12
      %v692 = vpop.permute.xlu0 %691
      %693 = vrot.lane.b32.xlu0 %v683, 12
      %v694 = vpop.permute.xlu0 %693
      %695 = vrot.lane.b32.xlu0 %v684, 12
      %v696 = vpop.permute.xlu0 %695
      %697 = vrot.lane.b32.xlu0 %v685, 12
      %v698 = vpop.permute.xlu0 %697
      %699 = vrot.lane.b32.xlu0 %v686, 12
      %v700 = vpop.permute.xlu0 %699
      %701 = vrot.lane.b32.xlu0 %v687, 12
      %v702 = vpop.permute.xlu0 %701
      %703 = vrot.lane.b32.xlu0 %v688, 12
      %v704 = vpop.permute.xlu0 %703
      %vm713 = vcmask 130144
      %714 = vst.msk [vmem:[#allocation2] sm:$0xff] %vm713, %v690
      %715 = vst.msk [vmem:[#allocation2 + $0x8] sm:$0xff] %vm713, %v692
      %716 = vst.msk [vmem:[#allocation2 + $0x10] sm:$0xff] %vm713, %v694
      %717 = vst.msk [vmem:[#allocation2 + $0x18] sm:$0xff] %vm713, %v696
      %718 = vst.msk [vmem:[#allocation2 + $0x20] sm:$0xff] %vm713, %v698
      %719 = vst.msk [vmem:[#allocation2 + $0x28] sm:$0xff] %vm713, %v700
      %720 = vst.msk [vmem:[#allocation2 + $0x30] sm:$0xff] %vm713, %v702
      %721 = vst.msk [vmem:[#allocation2 + $0x38] sm:$0xff] %vm713, %v704
      %s722 = scalar_lea.vmem %s300, 264
      %v723 = vld [vmem:[%s722] sm:$0xf]
      %v724 = vld [vmem:[%s722 + $0x4] sm:$0xf]
      %v725 = vld [vmem:[%s722 + $0x8] sm:$0xf]
      %v726 = vld [vmem:[%s722 + $0xc] sm:$0xf]
      %v727 = vld [vmem:[%s722 + $0x10] sm:$0xf]
      %v728 = vld [vmem:[%s722 + $0x14] sm:$0xf]
      %v729 = vld [vmem:[%s722 + $0x18] sm:$0xf]
      %v730 = vld [vmem:[%s722 + $0x1c] sm:$0xf]
      %v731 = vld [vmem:[%s722 + $0x20] sm:$0xf]
      %v732 = vld [vmem:[%s722 + $0x24] sm:$0xf]
      %v733 = vld [vmem:[%s722 + $0x28] sm:$0xf]
      %v734 = vld [vmem:[%s722 + $0x2c] sm:$0xf]
      %v735 = vld [vmem:[%s722 + $0x30] sm:$0xf]
      %v736 = vld [vmem:[%s722 + $0x34] sm:$0xf]
      %v737 = vld [vmem:[%s722 + $0x38] sm:$0xf]
      %v738 = vld [vmem:[%s722 + $0x3c] sm:$0xf]
      %v755 = vunpack.c.l.b16 %v723
      %v756 = vunpack.c.l.b16 %v724
      %v757 = vunpack.c.l.b16 %v725
      %v758 = vunpack.c.l.b16 %v726
      %v759 = vunpack.c.l.b16 %v727
      %v760 = vunpack.c.l.b16 %v728
      %v761 = vunpack.c.l.b16 %v729
      %v762 = vunpack.c.l.b16 %v730
      %v763 = vunpack.c.l.b16 %v731
      %v764 = vunpack.c.l.b16 %v732
      %v765 = vunpack.c.l.b16 %v733
      %v766 = vunpack.c.l.b16 %v734
      %v767 = vunpack.c.l.b16 %v735
      %v768 = vunpack.c.l.b16 %v736
      %v769 = vunpack.c.l.b16 %v737
      %v770 = vunpack.c.l.b16 %v738
      %v771 = vpack.c.b16 %v756, %v755
      %v772 = vpack.c.b16 %v758, %v757
      %v773 = vpack.c.b16 %v760, %v759
      %v774 = vpack.c.b16 %v762, %v761
      %v775 = vpack.c.b16 %v764, %v763
      %v776 = vpack.c.b16 %v766, %v765
      %v777 = vpack.c.b16 %v768, %v767
      %v778 = vpack.c.b16 %v770, %v769
      %779 = vrot.lane.b32.xlu0 %v771, 16
      %v780 = vpop.permute.xlu0 %779
      %781 = vrot.lane.b32.xlu0 %v772, 16
      %v782 = vpop.permute.xlu0 %781
      %783 = vrot.lane.b32.xlu0 %v773, 16
      %v784 = vpop.permute.xlu0 %783
      %785 = vrot.lane.b32.xlu0 %v774, 16
      %v786 = vpop.permute.xlu0 %785
      %787 = vrot.lane.b32.xlu0 %v775, 16
      %v788 = vpop.permute.xlu0 %787
      %789 = vrot.lane.b32.xlu0 %v776, 16
      %v790 = vpop.permute.xlu0 %789
      %791 = vrot.lane.b32.xlu0 %v777, 16
      %v792 = vpop.permute.xlu0 %791
      %793 = vrot.lane.b32.xlu0 %v778, 16
      %v794 = vpop.permute.xlu0 %793
      %vm803 = vcmask 162944
      %804 = vst.msk [vmem:[#allocation2] sm:$0xff] %vm803, %v780
      %805 = vst.msk [vmem:[#allocation2 + $0x8] sm:$0xff] %vm803, %v782
      %806 = vst.msk [vmem:[#allocation2 + $0x10] sm:$0xff] %vm803, %v784
      %807 = vst.msk [vmem:[#allocation2 + $0x18] sm:$0xff] %vm803, %v786
      %808 = vst.msk [vmem:[#allocation2 + $0x20] sm:$0xff] %vm803, %v788
      %809 = vst.msk [vmem:[#allocation2 + $0x28] sm:$0xff] %vm803, %v790
      %810 = vst.msk [vmem:[#allocation2 + $0x30] sm:$0xff] %vm803, %v792
      %811 = vst.msk [vmem:[#allocation2 + $0x38] sm:$0xff] %vm803, %v794
      %v812 = vld [vmem:[%s632] sm:$0xf]
      %v813 = vld [vmem:[%s632 + $0x4] sm:$0xf]
      %v814 = vld [vmem:[%s632 + $0x8] sm:$0xf]
      %v815 = vld [vmem:[%s632 + $0xc] sm:$0xf]
      %v816 = vld [vmem:[%s632 + $0x10] sm:$0xf]
      %v817 = vld [vmem:[%s632 + $0x14] sm:$0xf]
      %v818 = vld [vmem:[%s632 + $0x18] sm:$0xf]
      %v819 = vld [vmem:[%s632 + $0x1c] sm:$0xf]
      %v820 = vld [vmem:[%s632 + $0x20] sm:$0xf]
      %v821 = vld [vmem:[%s632 + $0x24] sm:$0xf]
      %v822 = vld [vmem:[%s632 + $0x28] sm:$0xf]
      %v823 = vld [vmem:[%s632 + $0x2c] sm:$0xf]
      %v824 = vld [vmem:[%s632 + $0x30] sm:$0xf]
      %v825 = vld [vmem:[%s632 + $0x34] sm:$0xf]
      %v826 = vld [vmem:[%s632 + $0x38] sm:$0xf]
      %v827 = vld [vmem:[%s632 + $0x3c] sm:$0xf]
      %v828 = vld [vmem:[%s632 + $0x40] sm:$0x1]
      %v846 = vunpack.c.l.b16 %v812
      %v847 = vunpack.c.l.b16 %v813
      %v848 = vunpack.c.l.b16 %v814
      %v849 = vunpack.c.l.b16 %v815
      %v850 = vunpack.c.l.b16 %v816
      %v851 = vunpack.c.l.b16 %v817
      %v852 = vunpack.c.l.b16 %v818
      %v853 = vunpack.c.l.b16 %v819
      %v854 = vunpack.c.l.b16 %v820
      %v855 = vunpack.c.l.b16 %v821
      %v856 = vunpack.c.l.b16 %v822
      %v857 = vunpack.c.l.b16 %v823
      %v858 = vunpack.c.l.b16 %v824
      %v859 = vunpack.c.l.b16 %v825
      %v860 = vunpack.c.l.b16 %v826
      %v861 = vunpack.c.l.b16 %v827
      %v862 = vunpack.c.l.b16 %v828
      %v863 = vpack.c.b16 %v847, %v846
      %v864 = vpack.c.b16 %v849, %v848
      %v865 = vpack.c.b16 %v851, %v850
      %v866 = vpack.c.b16 %v853, %v852
      %v867 = vpack.c.b16 %v855, %v854
      %v868 = vpack.c.b16 %v857, %v856
      %v869 = vpack.c.b16 %v859, %v858
      %v870 = vpack.c.b16 %v861, %v860
      %v871 = vpack.c.b16 %v862, %v862
      %v873 = vshrl.u32 %v863, 16
      %v875 = vshll.u32 %v863, 16
      %v877 = vrot.slane %v875, 1
      %v878 = vor.u32 %v873, %v877
      %v880 = vshll.u32 %v864, 16
      %v882 = vrot.slane %v880, 1
      %v883 = vsel %vm530, %v878, %v882
      %v884 = vshrl.u32 %v864, 16
      %v886 = vor.u32 %v884, %v882
      %v888 = vshll.u32 %v865, 16
      %v890 = vrot.slane %v888, 1
      %v891 = vsel %vm530, %v886, %v890
      %v892 = vshrl.u32 %v865, 16
      %v894 = vor.u32 %v892, %v890
      %v896 = vshll.u32 %v866, 16
      %v898 = vrot.slane %v896, 1
      %v899 = vsel %vm530, %v894, %v898
      %v900 = vshrl.u32 %v866, 16
      %v902 = vor.u32 %v900, %v898
      %v904 = vshll.u32 %v867, 16
      %v906 = vrot.slane %v904, 1
      %v907 = vsel %vm530, %v902, %v906
      %v908 = vshrl.u32 %v867, 16
      %v910 = vor.u32 %v908, %v906
      %v912 = vshll.u32 %v868, 16
      %v914 = vrot.slane %v912, 1
      %v915 = vsel %vm530, %v910, %v914
      %v916 = vshrl.u32 %v868, 16
      %v918 = vor.u32 %v916, %v914
      %v920 = vshll.u32 %v869, 16
      %v922 = vrot.slane %v920, 1
      %v923 = vsel %vm530, %v918, %v922
      %v924 = vshrl.u32 %v869, 16
      %v926 = vor.u32 %v924, %v922
      %v928 = vshll.u32 %v870, 16
      %v930 = vrot.slane %v928, 1
      %v931 = vsel %vm530, %v926, %v930
      %v932 = vshrl.u32 %v870, 16
      %v934 = vor.u32 %v932, %v930
      %v936 = vshll.u32 %v871, 16
      %v938 = vrot.slane %v936, 1
      %v939 = vsel %vm530, %v934, %v938
      %940 = vrot.lane.b32.xlu0 %v883, 20
      %v941 = vpop.permute.xlu0 %940
      %942 = vrot.lane.b32.xlu0 %v891, 20
      %v943 = vpop.permute.xlu0 %942
      %944 = vrot.lane.b32.xlu0 %v899, 20
      %v945 = vpop.permute.xlu0 %944
      %946 = vrot.lane.b32.xlu0 %v907, 20
      %v947 = vpop.permute.xlu0 %946
      %948 = vrot.lane.b32.xlu0 %v915, 20
      %v949 = vpop.permute.xlu0 %948
      %950 = vrot.lane.b32.xlu0 %v923, 20
      %v951 = vpop.permute.xlu0 %950
      %952 = vrot.lane.b32.xlu0 %v931, 20
      %v953 = vpop.permute.xlu0 %952
      %954 = vrot.lane.b32.xlu0 %v939, 20
      %v955 = vpop.permute.xlu0 %954
      %vm964 = vcmask 195744
      %965 = vst.msk [vmem:[#allocation2] sm:$0xff] %vm964, %v941
      %966 = vst.msk [vmem:[#allocation2 + $0x8] sm:$0xff] %vm964, %v943
      %967 = vst.msk [vmem:[#allocation2 + $0x10] sm:$0xff] %vm964, %v945
      %968 = vst.msk [vmem:[#allocation2 + $0x18] sm:$0xff] %vm964, %v947
      %969 = vst.msk [vmem:[#allocation2 + $0x20] sm:$0xff] %vm964, %v949
      %970 = vst.msk [vmem:[#allocation2 + $0x28] sm:$0xff] %vm964, %v951
      %971 = vst.msk [vmem:[#allocation2 + $0x30] sm:$0xff] %vm964, %v953
      %972 = vst.msk [vmem:[#allocation2 + $0x38] sm:$0xff] %vm964, %v955
      %v973 = vld [vmem:[%s300 + $0x8] sm:$0xf]
      %v974 = vld [vmem:[%s300 + $0xc] sm:$0xf]
      %v975 = vld [vmem:[%s300 + $0x10] sm:$0xf]
      %v976 = vld [vmem:[%s300 + $0x14] sm:$0xf]
      %v977 = vld [vmem:[%s300 + $0x18] sm:$0xf]
      %v978 = vld [vmem:[%s300 + $0x1c] sm:$0xf]
      %v979 = vld [vmem:[%s300 + $0x20] sm:$0xf]
      %v980 = vld [vmem:[%s300 + $0x24] sm:$0xf]
      %v981 = vld [vmem:[%s300 + $0x28] sm:$0xf]
      %v982 = vld [vmem:[%s300 + $0x2c] sm:$0xf]
      %v983 = vld [vmem:[%s300 + $0x30] sm:$0xf]
      %v984 = vld [vmem:[%s300 + $0x34] sm:$0xf]
      %v985 = vld [vmem:[%s300 + $0x38] sm:$0xf]
      %v986 = vld [vmem:[%s300 + $0x3c] sm:$0xf]
      %v987 = vld [vmem:[%s300 + $0x40] sm:$0xf]
      %v988 = vld [vmem:[%s300 + $0x44] sm:$0xf]
      %v1005 = vunpack.c.l.b16 %v973
      %v1006 = vunpack.c.l.b16 %v974
      %v1007 = vunpack.c.l.b16 %v975
      %v1008 = vunpack.c.l.b16 %v976
      %v1009 = vunpack.c.l.b16 %v977
      %v1010 = vunpack.c.l.b16 %v978
      %v1011 = vunpack.c.l.b16 %v979
      %v1012 = vunpack.c.l.b16 %v980
      %v1013 = vunpack.c.l.b16 %v981
      %v1014 = vunpack.c.l.b16 %v982
      %v1015 = vunpack.c.l.b16 %v983
      %v1016 = vunpack.c.l.b16 %v984
      %v1017 = vunpack.c.l.b16 %v985
      %v1018 = vunpack.c.l.b16 %v986
      %v1019 = vunpack.c.l.b16 %v987
      %v1020 = vunpack.c.l.b16 %v988
      %v1021 = vpack.c.b16 %v1006, %v1005
      %v1022 = vpack.c.b16 %v1008, %v1007
      %v1023 = vpack.c.b16 %v1010, %v1009
      %v1024 = vpack.c.b16 %v1012, %v1011
      %v1025 = vpack.c.b16 %v1014, %v1013
      %v1026 = vpack.c.b16 %v1016, %v1015
      %v1027 = vpack.c.b16 %v1018, %v1017
      %v1028 = vpack.c.b16 %v1020, %v1019
      %1029 = vrot.lane.b32.xlu0 %v1021, 24
      %v1030 = vpop.permute.xlu0 %1029
      %1031 = vrot.lane.b32.xlu0 %v1022, 24
      %v1032 = vpop.permute.xlu0 %1031
      %1033 = vrot.lane.b32.xlu0 %v1023, 24
      %v1034 = vpop.permute.xlu0 %1033
      %1035 = vrot.lane.b32.xlu0 %v1024, 24
      %v1036 = vpop.permute.xlu0 %1035
      %1037 = vrot.lane.b32.xlu0 %v1025, 24
      %v1038 = vpop.permute.xlu0 %1037
      %1039 = vrot.lane.b32.xlu0 %v1026, 24
      %v1040 = vpop.permute.xlu0 %1039
      %1041 = vrot.lane.b32.xlu0 %v1027, 24
      %v1042 = vpop.permute.xlu0 %1041
      %1043 = vrot.lane.b32.xlu0 %v1028, 24
      %v1044 = vpop.permute.xlu0 %1043
      %vm1053 = vcmask 228544
      %1054 = vst.msk [vmem:[#allocation2] sm:$0xff] %vm1053, %v1030
      %1055 = vst.msk [vmem:[#allocation2 + $0x8] sm:$0xff] %vm1053, %v1032
      %1056 = vst.msk [vmem:[#allocation2 + $0x10] sm:$0xff] %vm1053, %v1034
      %1057 = vst.msk [vmem:[#allocation2 + $0x18] sm:$0xff] %vm1053, %v1036
      %1058 = vst.msk [vmem:[#allocation2 + $0x20] sm:$0xff] %vm1053, %v1038
      %1059 = vst.msk [vmem:[#allocation2 + $0x28] sm:$0xff] %vm1053, %v1040
      %1060 = vst.msk [vmem:[#allocation2 + $0x30] sm:$0xff] %vm1053, %v1042
      %1061 = vst.msk [vmem:[#allocation2 + $0x38] sm:$0xff] %vm1053, %v1044
      %v1062 = vld [vmem:[%s380 + $0x8] sm:$0xf]
      %v1063 = vld [vmem:[%s380 + $0xc] sm:$0xf]
      %v1064 = vld [vmem:[%s380 + $0x10] sm:$0xf]
      %v1065 = vld [vmem:[%s380 + $0x14] sm:$0xf]
      %v1066 = vld [vmem:[%s380 + $0x18] sm:$0xf]
      %v1067 = vld [vmem:[%s380 + $0x1c] sm:$0xf]
      %v1068 = vld [vmem:[%s380 + $0x20] sm:$0xf]
      %v1069 = vld [vmem:[%s380 + $0x24] sm:$0xf]
      %v1070 = vld [vmem:[%s380 + $0x28] sm:$0xf]
      %v1071 = vld [vmem:[%s380 + $0x2c] sm:$0xf]
      %v1072 = vld [vmem:[%s380 + $0x30] sm:$0xf]
      %v1073 = vld [vmem:[%s380 + $0x34] sm:$0xf]
      %v1074 = vld [vmem:[%s380 + $0x38] sm:$0xf]
      %v1075 = vld [vmem:[%s380 + $0x3c] sm:$0xf]
      %v1076 = vld [vmem:[%s380 + $0x40] sm:$0xf]
      %v1077 = vld [vmem:[%s380 + $0x44] sm:$0xf]
      %v1094 = vunpack.c.l.b16 %v1062
      %v1095 = vunpack.c.l.b16 %v1063
      %v1096 = vunpack.c.l.b16 %v1064
      %v1097 = vunpack.c.l.b16 %v1065
      %v1098 = vunpack.c.l.b16 %v1066
      %v1099 = vunpack.c.l.b16 %v1067
      %v1100 = vunpack.c.l.b16 %v1068
      %v1101 = vunpack.c.l.b16 %v1069
      %v1102 = vunpack.c.l.b16 %v1070
      %v1103 = vunpack.c.l.b16 %v1071
      %v1104 = vunpack.c.l.b16 %v1072
      %v1105 = vunpack.c.l.b16 %v1073
      %v1106 = vunpack.c.l.b16 %v1074
      %v1107 = vunpack.c.l.b16 %v1075
      %v1108 = vunpack.c.l.b16 %v1076
      %v1109 = vunpack.c.l.b16 %v1077
      %v1110 = vpack.c.b16 %v1095, %v1094
      %v1111 = vpack.c.b16 %v1097, %v1096
      %v1112 = vpack.c.b16 %v1099, %v1098
      %v1113 = vpack.c.b16 %v1101, %v1100
      %v1114 = vpack.c.b16 %v1103, %v1102
      %v1115 = vpack.c.b16 %v1105, %v1104
      %v1116 = vpack.c.b16 %v1107, %v1106
      %v1117 = vpack.c.b16 %v1109, %v1108
      %1118 = vrot.lane.b32.xlu0 %v1110, 28
      %v1119 = vpop.permute.xlu0 %1118
      %1120 = vrot.lane.b32.xlu0 %v1111, 28
      %v1121 = vpop.permute.xlu0 %1120
      %1122 = vrot.lane.b32.xlu0 %v1112, 28
      %v1123 = vpop.permute.xlu0 %1122
      %1124 = vrot.lane.b32.xlu0 %v1113, 28
      %v1125 = vpop.permute.xlu0 %1124
      %1126 = vrot.lane.b32.xlu0 %v1114, 28
      %v1127 = vpop.permute.xlu0 %1126
      %1128 = vrot.lane.b32.xlu0 %v1115, 28
      %v1129 = vpop.permute.xlu0 %1128
      %1130 = vrot.lane.b32.xlu0 %v1116, 28
      %v1131 = vpop.permute.xlu0 %1130
      %1132 = vrot.lane.b32.xlu0 %v1117, 28
      %v1133 = vpop.permute.xlu0 %1132
      %vm1142 = vcmask 261344
      %1143 = vst.msk [vmem:[#allocation2] sm:$0xff] %vm1142, %v1119
      %1144 = vst.msk [vmem:[#allocation2 + $0x8] sm:$0xff] %vm1142, %v1121
      %1145 = vst.msk [vmem:[#allocation2 + $0x10] sm:$0xff] %vm1142, %v1123
      %1146 = vst.msk [vmem:[#allocation2 + $0x18] sm:$0xff] %vm1142, %v1125
      %1147 = vst.msk [vmem:[#allocation2 + $0x20] sm:$0xff] %vm1142, %v1127
      %1148 = vst.msk [vmem:[#allocation2 + $0x28] sm:$0xff] %vm1142, %v1129
      %1149 = vst.msk [vmem:[#allocation2 + $0x30] sm:$0xff] %vm1142, %v1131
      %1150 = vst.msk [vmem:[#allocation2 + $0x38] sm:$0xff] %vm1142, %v1133
      %v1151 = vld [vmem:[%s300 + $0x8] sm:$0xf]
      %v1152 = vld [vmem:[%s300 + $0xc] sm:$0xf]
      %v1153 = vld [vmem:[%s300 + $0x10] sm:$0xf]
      %v1154 = vld [vmem:[%s300 + $0x14] sm:$0xf]
      %v1155 = vld [vmem:[%s300 + $0x18] sm:$0xf]
      %v1156 = vld [vmem:[%s300 + $0x1c] sm:$0xf]
      %v1157 = vld [vmem:[%s300 + $0x20] sm:$0xf]
      %v1158 = vld [vmem:[%s300 + $0x24] sm:$0xf]
      %v1159 = vld [vmem:[%s300 + $0x28] sm:$0xf]
      %v1160 = vld [vmem:[%s300 + $0x2c] sm:$0xf]
      %v1161 = vld [vmem:[%s300 + $0x30] sm:$0xf]
      %v1162 = vld [vmem:[%s300 + $0x34] sm:$0xf]
      %v1163 = vld [vmem:[%s300 + $0x38] sm:$0xf]
      %v1164 = vld [vmem:[%s300 + $0x3c] sm:$0xf]
      %v1165 = vld [vmem:[%s300 + $0x40] sm:$0xf]
      %v1166 = vld [vmem:[%s300 + $0x44] sm:$0xf]
      %v1167 = vld [vmem:[%s300 + $0x48] sm:$0x1]
      %v1185 = vunpack.c.l.b16 %v1151
      %v1186 = vunpack.c.l.b16 %v1152
      %v1187 = vunpack.c.l.b16 %v1153
      %v1188 = vunpack.c.l.b16 %v1154
      %v1189 = vunpack.c.l.b16 %v1155
      %v1190 = vunpack.c.l.b16 %v1156
      %v1191 = vunpack.c.l.b16 %v1157
      %v1192 = vunpack.c.l.b16 %v1158
      %v1193 = vunpack.c.l.b16 %v1159
      %v1194 = vunpack.c.l.b16 %v1160
      %v1195 = vunpack.c.l.b16 %v1161
      %v1196 = vunpack.c.l.b16 %v1162
      %v1197 = vunpack.c.l.b16 %v1163
      %v1198 = vunpack.c.l.b16 %v1164
      %v1199 = vunpack.c.l.b16 %v1165
      %v1200 = vunpack.c.l.b16 %v1166
      %v1201 = vunpack.c.l.b16 %v1167
      %v1202 = vpack.c.b16 %v1186, %v1185
      %v1203 = vpack.c.b16 %v1188, %v1187
      %v1204 = vpack.c.b16 %v1190, %v1189
      %v1205 = vpack.c.b16 %v1192, %v1191
      %v1206 = vpack.c.b16 %v1194, %v1193
      %v1207 = vpack.c.b16 %v1196, %v1195
      %v1208 = vpack.c.b16 %v1198, %v1197
      %v1209 = vpack.c.b16 %v1200, %v1199
      %v1210 = vpack.c.b16 %v1201, %v1201
      %v1212 = vshrl.u32 %v1202, 16
      %v1214 = vshll.u32 %v1202, 16
      %v1216 = vrot.slane %v1214, 1
      %v1217 = vor.u32 %v1212, %v1216
      %v1219 = vshll.u32 %v1203, 16
      %v1221 = vrot.slane %v1219, 1
      %v1222 = vsel %vm530, %v1217, %v1221
      %v1223 = vshrl.u32 %v1203, 16
      %v1225 = vor.u32 %v1223, %v1221
      %v1227 = vshll.u32 %v1204, 16
      %v1229 = vrot.slane %v1227, 1
      %v1230 = vsel %vm530, %v1225, %v1229
      %v1231 = vshrl.u32 %v1204, 16
      %v1233 = vor.u32 %v1231, %v1229
      %v1235 = vshll.u32 %v1205, 16
      %v1237 = vrot.slane %v1235, 1
      %v1238 = vsel %vm530, %v1233, %v1237
      %v1239 = vshrl.u32 %v1205, 16
      %v1241 = vor.u32 %v1239, %v1237
      %v1243 = vshll.u32 %v1206, 16
      %v1245 = vrot.slane %v1243, 1
      %v1246 = vsel %vm530, %v1241, %v1245
      %v1247 = vshrl.u32 %v1206, 16
      %v1249 = vor.u32 %v1247, %v1245
      %v1251 = vshll.u32 %v1207, 16
      %v1253 = vrot.slane %v1251, 1
      %v1254 = vsel %vm530, %v1249, %v1253
      %v1255 = vshrl.u32 %v1207, 16
      %v1257 = vor.u32 %v1255, %v1253
      %v1259 = vshll.u32 %v1208, 16
      %v1261 = vrot.slane %v1259, 1
      %v1262 = vsel %vm530, %v1257, %v1261
      %v1263 = vshrl.u32 %v1208, 16
      %v1265 = vor.u32 %v1263, %v1261
      %v1267 = vshll.u32 %v1209, 16
      %v1269 = vrot.slane %v1267, 1
      %v1270 = vsel %vm530, %v1265, %v1269
      %v1271 = vshrl.u32 %v1209, 16
      %v1273 = vor.u32 %v1271, %v1269
      %v1275 = vshll.u32 %v1210, 16
      %v1277 = vrot.slane %v1275, 1
      %v1278 = vsel %vm530, %v1273, %v1277
      %1279 = vrot.lane.b32.xlu0 %v1222, 32
      %v1280 = vpop.permute.xlu0 %1279
      %1281 = vrot.lane.b32.xlu0 %v1230, 32
      %v1282 = vpop.permute.xlu0 %1281
      %1283 = vrot.lane.b32.xlu0 %v1238, 32
      %v1284 = vpop.permute.xlu0 %1283
      %1285 = vrot.lane.b32.xlu0 %v1246, 32
      %v1286 = vpop.permute.xlu0 %1285
      %1287 = vrot.lane.b32.xlu0 %v1254, 32
      %v1288 = vpop.permute.xlu0 %1287
      %1289 = vrot.lane.b32.xlu0 %v1262, 32
      %v1290 = vpop.permute.xlu0 %1289
      %1291 = vrot.lane.b32.xlu0 %v1270, 32
      %v1292 = vpop.permute.xlu0 %1291
      %1293 = vrot.lane.b32.xlu0 %v1278, 32
      %v1294 = vpop.permute.xlu0 %1293
      %vm1303 = vcmask 294144
      %1304 = vst.msk [vmem:[#allocation2] sm:$0xff] %vm1303, %v1280
      %1305 = vst.msk [vmem:[#allocation2 + $0x8] sm:$0xff] %vm1303, %v1282
      %1306 = vst.msk [vmem:[#allocation2 + $0x10] sm:$0xff] %vm1303, %v1284
      %1307 = vst.msk [vmem:[#allocation2 + $0x18] sm:$0xff] %vm1303, %v1286
      %1308 = vst.msk [vmem:[#allocation2 + $0x20] sm:$0xff] %vm1303, %v1288
      %1309 = vst.msk [vmem:[#allocation2 + $0x28] sm:$0xff] %vm1303, %v1290
      %1310 = vst.msk [vmem:[#allocation2 + $0x30] sm:$0xff] %vm1303, %v1292
      %1311 = vst.msk [vmem:[#allocation2 + $0x38] sm:$0xff] %vm1303, %v1294
      %v1312 = vld [vmem:[#allocation2] sm:$0xff]
      %v1313 = vld [vmem:[#allocation2 + $0x8] sm:$0xff]
      %v1314 = vld [vmem:[#allocation2 + $0x10] sm:$0xff]
      %v1315 = vld [vmem:[#allocation2 + $0x18] sm:$0xff]
      %v1316 = vld [vmem:[#allocation2 + $0x20] sm:$0xff]
      %v1317 = vld [vmem:[#allocation2 + $0x28] sm:$0xff]
      %v1318 = vld [vmem:[#allocation2 + $0x30] sm:$0xff]
      %v1319 = vld [vmem:[#allocation2 + $0x38] sm:$0xff]
      %v1320 = vld [vmem:[%s1] sm:$0xf]
      %v1321 = vld [vmem:[%s1 + $0x4] sm:$0xf]
      %v1322 = vld [vmem:[%s1 + $0x8] sm:$0xf]
      %v1323 = vld [vmem:[%s1 + $0xc] sm:$0xf]
      %v1324 = vld [vmem:[%s1 + $0x10] sm:$0x3]
      %v1325 = vld [vmem:[%s4] sm:$0x1]
      %v1327 = vlaneseq
      %v1328 = vshrl.u32 %v1327, 7
      %v1329 = vsub.s32 0, %v1328
      %v1330 = vrot.slane %v1325, %v1329
      %v1337 = vunpack.c.l.b16 %v1320
      %v1338 = vunpack.c.l.b16 %v1321
      %v1339 = vunpack.c.l.b16 %v1322
      %v1340 = vunpack.c.l.b16 %v1323
      %v1341 = vunpack.c.l.b16 %v1324
      %v1342 = vpack.c.b16 %v1338, %v1337
      %v1343 = vpack.c.b16 %v1340, %v1339
      %v1344 = vpack.c.b16 %v1341, %v1341
      %vm1347 = vcmask 293888
      %v1349 = vsel %vm1347, %v1312, 0
      %v1352 = vsel %vm1347, %v1313, 0
      %v1355 = vsel %vm1347, %v1314, 0
      %v1358 = vsel %vm1347, %v1315, 0
      %v1361 = vsel %vm1347, %v1316, 0
      %v1364 = vsel %vm1347, %v1317, 0
      %v1367 = vsel %vm1347, %v1318, 0
      %v1370 = vsel %vm1347, %v1319, 0
      %vm1372 = vcmask 1041408
      %v1374 = vsel %vm1372, %v1344, 0
      %1376 = vmatprep.subr.bf16.mxu0 0
      %1377 = vmatpush1.bf16.msra.mxu0 %v1342
      %1378 = vmatprep.subr.bf16.mxu0 0
      %1379 = vmatpush1.bf16.msra.mxu0 %v1343
      %1380 = vmatprep.subr.bf16.mxu0 0
      %1381 = vmatpush1.bf16.msra.mxu0 %v1374
      %1382 = vmatprep.subr.bf16.mxu0 0
      %1383 = vmatpush1.bf16.msra.mxu0 0
      %1384 = vmatprep.subr.bf16.mxu0 0
      %1385 = vmatpush1.bf16.msra.mxu0 0
      %1386 = vmatprep.subr.bf16.mxu0 0
      %1387 = vmatpush1.bf16.msra.mxu0 0
      %1388 = vmatprep.subr.bf16.mxu0 0
      %1389 = vmatpush1.bf16.msra.mxu0 0
      %1390 = vmatprep.subr.bf16.mxu0 0
      %1391 = vmatpush1.bf16.msra.mxu0 0
      %1392 = vmatprep.subr.bf16.mxu0 0
      %1393 = vmatpush1.bf16.msra.mxu0 0
      %1394 = vmatprep.subr.bf16.mxu0 0
      %1395 = vmatpush1.bf16.msra.mxu0 0
      %1396 = vmatprep.subr.bf16.mxu0 0
      %1397 = vmatpush1.bf16.msra.mxu0 0
      %1398 = vmatprep.subr.bf16.mxu0 0
      %1399 = vmatpush1.bf16.msra.mxu0 0
      %1400 = vmatprep.subr.bf16.mxu0 0
      %1401 = vmatpush1.bf16.msra.mxu0 0
      %1402 = vmatprep.subr.bf16.mxu0 0
      %1403 = vmatpush1.bf16.msra.mxu0 0
      %1404 = vmatprep.subr.bf16.mxu0 0
      %1405 = vmatpush1.bf16.msra.mxu0 0
      %1406 = vmatprep.subr.bf16.mxu0 0
      %1407 = vmatpush1.bf16.msra.mxu0 0
      %1408 = vmatprep.mubr.bf16.mxu0 0
      %1409 = vmatmul.mubr.bf16.gmra.mrb[0].mxu0 %v1349
      %v1410 = vpop.f32.mrb[0].mxu0
      %v1411 = vadd.f32 %v1330, %v1410
      %v1412 = vpop.f32.mrb[0].mxu0
      %v1413 = vpop.f32.mrb[0].mxu0
      %v1414 = vadd.f32 %v1330, %v1413
      %v1415 = vpop.f32.mrb[0].mxu0
      %1416 = vmatprep.mubr.bf16.mxu0 0
      %1417 = vmatmul.mubr.bf16.gmra.mrb[0].mxu0 %v1352
      %v1418 = vpop.f32.mrb[0].mxu0
      %v1419 = vadd.f32 %v1330, %v1418
      %v1420 = vpop.f32.mrb[0].mxu0
      %v1421 = vpop.f32.mrb[0].mxu0
      %v1422 = vadd.f32 %v1330, %v1421
      %v1423 = vpop.f32.mrb[0].mxu0
      %1424 = vmatprep.mubr.bf16.mxu0 0
      %1425 = vmatmul.mubr.bf16.gmra.mrb[0].mxu0 %v1355
      %v1426 = vpop.f32.mrb[0].mxu0
      %v1427 = vadd.f32 %v1330, %v1426
      %v1428 = vpop.f32.mrb[0].mxu0
      %v1429 = vpop.f32.mrb[0].mxu0
      %v1430 = vadd.f32 %v1330, %v1429
      %v1431 = vpop.f32.mrb[0].mxu0
      %1432 = vmatprep.mubr.bf16.mxu0 0
      %1433 = vmatmul.mubr.bf16.gmra.mrb[0].mxu0 %v1358
      %v1434 = vpop.f32.mrb[0].mxu0
      %v1435 = vadd.f32 %v1330, %v1434
      %v1436 = vpop.f32.mrb[0].mxu0
      %v1437 = vpop.f32.mrb[0].mxu0
      %v1438 = vadd.f32 %v1330, %v1437
      %v1439 = vpop.f32.mrb[0].mxu0
      %1440 = vmatprep.mubr.bf16.mxu0 0
      %1441 = vmatmul.mubr.bf16.gmra.mrb[0].mxu0 %v1361
      %v1442 = vpop.f32.mrb[0].mxu0
      %v1443 = vadd.f32 %v1330, %v1442
      %v1444 = vpop.f32.mrb[0].mxu0
      %v1445 = vpop.f32.mrb[0].mxu0
      %v1446 = vadd.f32 %v1330, %v1445
      %v1447 = vpop.f32.mrb[0].mxu0
      %1448 = vmatprep.mubr.bf16.mxu0 0
      %1449 = vmatmul.mubr.bf16.gmra.mrb[0].mxu0 %v1364
      %v1450 = vpop.f32.mrb[0].mxu0
      %v1451 = vadd.f32 %v1330, %v1450
      %v1452 = vpop.f32.mrb[0].mxu0
      %v1453 = vpop.f32.mrb[0].mxu0
      %v1454 = vadd.f32 %v1330, %v1453
      %v1455 = vpop.f32.mrb[0].mxu0
      %1456 = vmatprep.mubr.bf16.mxu0 0
      %1457 = vmatmul.mubr.bf16.gmra.mrb[0].mxu0 %v1367
      %v1458 = vpop.f32.mrb[0].mxu0
      %v1459 = vadd.f32 %v1330, %v1458
      %v1460 = vpop.f32.mrb[0].mxu0
      %v1461 = vpop.f32.mrb[0].mxu0
      %v1462 = vadd.f32 %v1330, %v1461
      %v1463 = vpop.f32.mrb[0].mxu0
      %1464 = vmatprep.mubr.bf16.mxu0 0
      %1465 = vmatmul.mubr.bf16.gmra.mrb[0].mxu0 %v1370
      %v1466 = vpop.f32.mrb[0].mxu0
      %v1467 = vadd.f32 %v1330, %v1466
      %v1468 = vpop.f32.mrb[0].mxu0
      %v1469 = vpop.f32.mrb[0].mxu0
      %v1470 = vadd.f32 %v1330, %v1469
      %v1471 = vpop.f32.mrb[0].mxu0
      %1472 = vdwg.mxu0
      %v1473 = vmax.f32 %v1411, 0.0
      %v1474 = vmax.f32 %v1414, 0.0
      %v1475 = vmax.f32 %v1419, 0.0
      %v1476 = vmax.f32 %v1422, 0.0
      %v1477 = vmax.f32 %v1427, 0.0
      %v1478 = vmax.f32 %v1430, 0.0
      %v1479 = vmax.f32 %v1435, 0.0
      %v1480 = vmax.f32 %v1438, 0.0
      %v1481 = vmax.f32 %v1443, 0.0
      %v1482 = vmax.f32 %v1446, 0.0
      %v1483 = vmax.f32 %v1451, 0.0
      %v1484 = vmax.f32 %v1454, 0.0
      %v1485 = vmax.f32 %v1459, 0.0
      %v1486 = vmax.f32 %v1462, 0.0
      %v1487 = vmax.f32 %v1467, 0.0
      %v1488 = vmax.f32 %v1470, 0.0
      %v1489 = vld [vmem:[%s7] sm:$0xff]
      %v1490 = vld [vmem:[%s7 + $0x8] sm:$0xff]
      %v1491 = vld [vmem:[%s7 + $0x10] sm:$0xff]
      %v1492 = vld [vmem:[%s7 + $0x18] sm:$0xff]
      %v1493 = vld [vmem:[%s7 + $0x20] sm:$0xff]
      %v1494 = vld [vmem:[%s7 + $0x28] sm:$0xff]
      %v1495 = vld [vmem:[%s7 + $0x30] sm:$0xff]
      %v1496 = vld [vmem:[%s7 + $0x38] sm:$0xff]
      %v1497 = vld [vmem:[%s7 + $0x40] sm:$0xff]
      %v1498 = vld [vmem:[%s7 + $0x48] sm:$0xff]
      %v1499 = vld [vmem:[%s7 + $0x50] sm:$0xff]
      %v1500 = vld [vmem:[%s7 + $0x58] sm:$0xff]
      %v1501 = vld [vmem:[%s7 + $0x60] sm:$0xff]
      %v1502 = vld [vmem:[%s7 + $0x68] sm:$0xff]
      %v1503 = vld [vmem:[%s7 + $0x70] sm:$0xff]
      %v1504 = vld [vmem:[%s7 + $0x78] sm:$0xff]
      %1506 = vset.pattern.permute.xlu0 0
      %1507 = vperm.xlu0 %1506, %v1489
      %v1508 = vpop.permute.xlu0 %1507
      %1511 = vset.pattern.permute.xlu0 0
      %1512 = vperm.xlu0 %1511, %v1490
      %v1513 = vpop.permute.xlu0 %1512
      %1516 = vset.pattern.permute.xlu0 0
      %1517 = vperm.xlu0 %1516, %v1491
      %v1518 = vpop.permute.xlu0 %1517
      %1521 = vset.pattern.permute.xlu0 0
      %1522 = vperm.xlu0 %1521, %v1492
      %v1523 = vpop.permute.xlu0 %1522
      %1526 = vset.pattern.permute.xlu0 0
      %1527 = vperm.xlu0 %1526, %v1493
      %v1528 = vpop.permute.xlu0 %1527
      %1531 = vset.pattern.permute.xlu0 0
      %1532 = vperm.xlu0 %1531, %v1494
      %v1533 = vpop.permute.xlu0 %1532
      %1536 = vset.pattern.permute.xlu0 0
      %1537 = vperm.xlu0 %1536, %v1495
      %v1538 = vpop.permute.xlu0 %1537
      %1541 = vset.pattern.permute.xlu0 0
      %1542 = vperm.xlu0 %1541, %v1496
      %v1543 = vpop.permute.xlu0 %1542
      %1546 = vset.pattern.permute.xlu0 0
      %1547 = vperm.xlu0 %1546, %v1497
      %v1548 = vpop.permute.xlu0 %1547
      %1551 = vset.pattern.permute.xlu0 0
      %1552 = vperm.xlu0 %1551, %v1498
      %v1553 = vpop.permute.xlu0 %1552
      %1556 = vset.pattern.permute.xlu0 0
      %1557 = vperm.xlu0 %1556, %v1499
      %v1558 = vpop.permute.xlu0 %1557
      %1561 = vset.pattern.permute.xlu0 0
      %1562 = vperm.xlu0 %1561, %v1500
      %v1563 = vpop.permute.xlu0 %1562
      %1566 = vset.pattern.permute.xlu0 0
      %1567 = vperm.xlu0 %1566, %v1501
      %v1568 = vpop.permute.xlu0 %1567
      %1571 = vset.pattern.permute.xlu0 0
      %1572 = vperm.xlu0 %1571, %v1502
      %v1573 = vpop.permute.xlu0 %1572
      %1576 = vset.pattern.permute.xlu0 0
      %1577 = vperm.xlu0 %1576, %v1503
      %v1578 = vpop.permute.xlu0 %1577
      %1581 = vset.pattern.permute.xlu0 0
      %1582 = vperm.xlu0 %1581, %v1504
      %v1583 = vpop.permute.xlu0 %1582
      %v1585 = vmul.f32 %v1473, %v1508
      %v1586 = vmul.f32 %v1474, %v1513
      %v1587 = vmul.f32 %v1475, %v1518
      %v1588 = vmul.f32 %v1476, %v1523
      %v1589 = vmul.f32 %v1477, %v1528
      %v1590 = vmul.f32 %v1478, %v1533
      %v1591 = vmul.f32 %v1479, %v1538
      %v1592 = vmul.f32 %v1480, %v1543
      %v1593 = vmul.f32 %v1481, %v1548
      %v1594 = vmul.f32 %v1482, %v1553
      %v1595 = vmul.f32 %v1483, %v1558
      %v1596 = vmul.f32 %v1484, %v1563
      %v1597 = vmul.f32 %v1485, %v1568
      %v1598 = vmul.f32 %v1486, %v1573
      %v1599 = vmul.f32 %v1487, %v1578
      %v1600 = vmul.f32 %v1488, %v1583
      %v1601 = vpack.c.bf16 %v1586, %v1585
      %v1602 = vpack.c.bf16 %v1588, %v1587
      %v1603 = vpack.c.bf16 %v1590, %v1589
      %v1604 = vpack.c.bf16 %v1592, %v1591
      %v1605 = vpack.c.bf16 %v1594, %v1593
      %v1606 = vpack.c.bf16 %v1596, %v1595
      %v1607 = vpack.c.bf16 %v1598, %v1597
      %v1608 = vpack.c.bf16 %v1600, %v1599
      %1609 = vst [vmem:[#allocation3] sm:$0xff] 0
      %vm1610 = vcmask 1040384
      %vm1611 = vsmask.f32 256
      %vm1612 = vmand %vm1610, %vm1611
      %v1613 = vld [vmem:[#allocation3 + $0x48] sm:$0x1]
      %v1614 = vsel %vm1612, 0, %v1613
      %1615 = vst [vmem:[#allocation3 + $0x48] sm:$0x1] %v1614
      %v1617 = vshrl.u32 %v1601, 16
      %v1619 = vrot.slane %v1617, 7
      %v1620 = vshll.u32 %v1601, 16
      %v1622 = vor.u32 %v1619, %v1620
      %v1624 = vshrl.u32 %v1602, 16
      %v1626 = vrot.slane %v1624, 7
      %v1627 = vshll.u32 %v1602, 16
      %v1629 = vor.u32 %v1626, %v1627
      %v1630 = vsel %vm1611, %v1619, %v1629
      %v1632 = vshrl.u32 %v1603, 16
      %v1634 = vrot.slane %v1632, 7
      %v1635 = vshll.u32 %v1603, 16
      %v1637 = vor.u32 %v1634, %v1635
      %v1638 = vsel %vm1611, %v1626, %v1637
      %v1640 = vshrl.u32 %v1604, 16
      %v1642 = vrot.slane %v1640, 7
      %v1643 = vshll.u32 %v1604, 16
      %v1645 = vor.u32 %v1642, %v1643
      %v1646 = vsel %vm1611, %v1634, %v1645
      %v1648 = vshrl.u32 %v1605, 16
      %v1650 = vrot.slane %v1648, 7
      %v1651 = vshll.u32 %v1605, 16
      %v1653 = vor.u32 %v1650, %v1651
      %v1654 = vsel %vm1611, %v1642, %v1653
      %v1656 = vshrl.u32 %v1606, 16
      %v1658 = vrot.slane %v1656, 7
      %v1659 = vshll.u32 %v1606, 16
      %v1661 = vor.u32 %v1658, %v1659
      %v1662 = vsel %vm1611, %v1650, %v1661
      %v1664 = vshrl.u32 %v1607, 16
      %v1666 = vrot.slane %v1664, 7
      %v1667 = vshll.u32 %v1607, 16
      %v1669 = vor.u32 %v1666, %v1667
      %v1670 = vsel %vm1611, %v1658, %v1669
      %vm1678 = vcmask 1047552
      %vm1679 = vsmask.f32 7938
      %vm1680 = vmand %vm1678, %vm1679
      %v1681 = vld [vmem:[#allocation3 + $0x48] sm:$0xff]
      %v1682 = vsel %vm1680, %v1622, %v1681
      %1683 = vst [vmem:[#allocation3 + $0x48] sm:$0xff] %v1682
      %1684 = vst [vmem:[#allocation3 + $0x90] sm:$0xff] %v1630
      %1685 = vst [vmem:[#allocation3 + $0xd8] sm:$0xff] %v1638
      %1686 = vst [vmem:[#allocation3 + $0x120] sm:$0xff] %v1646
      %1687 = vst [vmem:[#allocation3 + $0x168] sm:$0xff] %v1654
      %1688 = vst [vmem:[#allocation3 + $0x1b0] sm:$0xff] %v1662
      %1689 = vst [vmem:[#allocation3 + $0x1f8] sm:$0xff] %v1670
      %1690 = vst [vmem:[#allocation3 + $0x8] sm:$0xff] 0
      %1691 = vst [vmem:[#allocation3 + $0x50] sm:$0xff] %v1601
      %1692 = vst [vmem:[#allocation3 + $0x98] sm:$0xff] %v1602
      %1693 = vst [vmem:[#allocation3 + $0xe0] sm:$0xff] %v1603
      %1694 = vst [vmem:[#allocation3 + $0x128] sm:$0xff] %v1604
      %1695 = vst [vmem:[#allocation3 + $0x170] sm:$0xff] %v1605
      %1696 = vst [vmem:[#allocation3 + $0x1b8] sm:$0xff] %v1606
      %1697 = vst [vmem:[#allocation3 + $0x200] sm:$0xff] %v1607
      %vm1698 = vmand %vm1678, %vm530
      %v1699 = vld [vmem:[#allocation3 + $0x10] sm:$0xff]
      %v1700 = vsel %vm1698, 0, %v1699
      %1701 = vst [vmem:[#allocation3 + $0x10] sm:$0xff] %v1700
      %v1702 = vrot.slane %v1620, 1
      %v1703 = vor.u32 %v1617, %v1702
      %v1704 = vrot.slane %v1627, 1
      %v1705 = vsel %vm530, %v1703, %v1704
      %v1706 = vor.u32 %v1624, %v1704
      %v1707 = vrot.slane %v1635, 1
      %v1708 = vsel %vm530, %v1706, %v1707
      %v1709 = vor.u32 %v1632, %v1707
      %v1710 = vrot.slane %v1643, 1
      %v1711 = vsel %vm530, %v1709, %v1710
      %v1712 = vor.u32 %v1640, %v1710
      %v1713 = vrot.slane %v1651, 1
      %v1714 = vsel %vm530, %v1712, %v1713
      %v1715 = vor.u32 %v1648, %v1713
      %v1716 = vrot.slane %v1659, 1
      %v1717 = vsel %vm530, %v1715, %v1716
      %v1718 = vor.u32 %v1656, %v1716
      %v1719 = vrot.slane %v1667, 1
      %v1720 = vsel %vm530, %v1718, %v1719
      %v1721 = vor.u32 %v1664, %v1719
      %v1723 = vshll.u32 %v1608, 16
      %v1725 = vrot.slane %v1723, 1
      %v1726 = vsel %vm530, %v1721, %v1725
      %vm1735 = vcmask 1047559
      %vm1736 = vsmask.f32 7966
      %vm1737 = vmand %vm1735, %vm1736
      %v1738 = vld [vmem:[#allocation3 + $0x10] sm:$0x80]
      %v1739 = vsel %vm1737, %v1702, %v1738
      %1740 = vst [vmem:[#allocation3 + $0x10] sm:$0x80] %v1739
      %1741 = vst [vmem:[#allocation3 + $0x58] sm:$0xff] %v1705
      %1742 = vst [vmem:[#allocation3 + $0xa0] sm:$0xff] %v1708
      %1743 = vst [vmem:[#allocation3 + $0xe8] sm:$0xff] %v1711
      %1744 = vst [vmem:[#allocation3 + $0x130] sm:$0xff] %v1714
      %1745 = vst [vmem:[#allocation3 + $0x178] sm:$0xff] %v1717
      %1746 = vst [vmem:[#allocation3 + $0x1c0] sm:$0xff] %v1720
      %1747 = vst [vmem:[#allocation3 + $0x208] sm:$0xff] %v1726
      %v1748 = vld [vmem:[#allocation3 + $0x18] sm:$0x1]
      %v1749 = vsel %vm1612, 0, %v1748
      %1750 = vst [vmem:[#allocation3 + $0x18] sm:$0x1] %v1749
      %v1751 = vshrl.u32 %v1608, 16
      %v1753 = vrot.slane %v1751, 7
      %v1754 = vor.u32 %v1753, %v1723
      %v1755 = vsel %vm1611, %v1666, %v1754
      %v1757 = vld [vmem:[#allocation3 + $0x18] sm:$0xff]
      %v1758 = vsel %vm1680, %v1622, %v1757
      %1759 = vst [vmem:[#allocation3 + $0x18] sm:$0xff] %v1758
      %1760 = vst [vmem:[#allocation3 + $0x60] sm:$0xff] %v1630
      %1761 = vst [vmem:[#allocation3 + $0xa8] sm:$0xff] %v1638
      %1762 = vst [vmem:[#allocation3 + $0xf0] sm:$0xff] %v1646
      %1763 = vst [vmem:[#allocation3 + $0x138] sm:$0xff] %v1654
      %1764 = vst [vmem:[#allocation3 + $0x180] sm:$0xff] %v1662
      %1765 = vst [vmem:[#allocation3 + $0x1c8] sm:$0xff] %v1670
      %1766 = vst [vmem:[#allocation3 + $0x210] sm:$0xff] %v1755
      %1767 = vst [vmem:[#allocation3 + $0x20] sm:$0xff] %v1601
      %1768 = vst [vmem:[#allocation3 + $0x68] sm:$0xff] %v1602
      %1769 = vst [vmem:[#allocation3 + $0xb0] sm:$0xff] %v1603
      %1770 = vst [vmem:[#allocation3 + $0xf8] sm:$0xff] %v1604
      %1771 = vst [vmem:[#allocation3 + $0x140] sm:$0xff] %v1605
      %1772 = vst [vmem:[#allocation3 + $0x188] sm:$0xff] %v1606
      %1773 = vst [vmem:[#allocation3 + $0x1d0] sm:$0xff] %v1607
      %1774 = vst [vmem:[#allocation3 + $0x218] sm:$0xff] %v1608
      %v1775 = vld [vmem:[#allocation3 + $0x220] sm:$0x80]
      %v1776 = vsel %vm1737, 0, %v1775
      %1777 = vst [vmem:[#allocation3 + $0x220] sm:$0x80] %v1776
      %v1778 = vor.u32 %v1751, %v1725
      %1780 = vst [vmem:[#allocation3 + $0x28] sm:$0xff] %v1705
      %1781 = vst [vmem:[#allocation3 + $0x70] sm:$0xff] %v1708
      %1782 = vst [vmem:[#allocation3 + $0xb8] sm:$0xff] %v1711
      %1783 = vst [vmem:[#allocation3 + $0x100] sm:$0xff] %v1714
      %1784 = vst [vmem:[#allocation3 + $0x148] sm:$0xff] %v1717
      %1785 = vst [vmem:[#allocation3 + $0x190] sm:$0xff] %v1720
      %1786 = vst [vmem:[#allocation3 + $0x1d8] sm:$0xff] %v1726
      %v1787 = vld [vmem:[#allocation3 + $0x220] sm:$0xff]
      %v1788 = vsel %vm1698, %v1778, %v1787
      %1789 = vst [vmem:[#allocation3 + $0x220] sm:$0xff] %v1788
      %v1790 = vld [vmem:[#allocation3 + $0x228] sm:$0xff]
      %v1791 = vsel %vm1680, 0, %v1790
      %1792 = vst [vmem:[#allocation3 + $0x228] sm:$0xff] %v1791
      %1794 = vst [vmem:[#allocation3 + $0x30] sm:$0xff] %v1630
      %1795 = vst [vmem:[#allocation3 + $0x78] sm:$0xff] %v1638
      %1796 = vst [vmem:[#allocation3 + $0xc0] sm:$0xff] %v1646
      %1797 = vst [vmem:[#allocation3 + $0x108] sm:$0xff] %v1654
      %1798 = vst [vmem:[#allocation3 + $0x150] sm:$0xff] %v1662
      %1799 = vst [vmem:[#allocation3 + $0x198] sm:$0xff] %v1670
      %1800 = vst [vmem:[#allocation3 + $0x1e0] sm:$0xff] %v1755
      %v1801 = vld [vmem:[#allocation3 + $0x228] sm:$0x1]
      %v1802 = vsel %vm1612, %v1753, %v1801
      %1803 = vst [vmem:[#allocation3 + $0x228] sm:$0x1] %v1802
      %1804 = vst [vmem:[#allocation3 + $0x230] sm:$0xff] 0
      %1805 = vst [vmem:[#allocation3 + $0x38] sm:$0xff] %v1602
      %1806 = vst [vmem:[#allocation3 + $0x80] sm:$0xff] %v1603
      %1807 = vst [vmem:[#allocation3 + $0xc8] sm:$0xff] %v1604
      %1808 = vst [vmem:[#allocation3 + $0x110] sm:$0xff] %v1605
      %1809 = vst [vmem:[#allocation3 + $0x158] sm:$0xff] %v1606
      %1810 = vst [vmem:[#allocation3 + $0x1a0] sm:$0xff] %v1607
      %1811 = vst [vmem:[#allocation3 + $0x1e8] sm:$0xff] %v1608
      %v1812 = vld [vmem:[#allocation3 + $0x1f0] sm:$0x80]
      %v1813 = vsel %vm1737, 0, %v1812
      %1814 = vst [vmem:[#allocation3 + $0x1f0] sm:$0x80] %v1813
      %1815 = vst [vmem:[#allocation3 + $0x238] sm:$0xff] 0
      %1816 = vst [vmem:[#allocation3 + $0x40] sm:$0xff] %v1708
      %1817 = vst [vmem:[#allocation3 + $0x88] sm:$0xff] %v1711
      %1818 = vst [vmem:[#allocation3 + $0xd0] sm:$0xff] %v1714
      %1819 = vst [vmem:[#allocation3 + $0x118] sm:$0xff] %v1717
      %1820 = vst [vmem:[#allocation3 + $0x160] sm:$0xff] %v1720
      %1821 = vst [vmem:[#allocation3 + $0x1a8] sm:$0xff] %v1726
      %v1822 = vld [vmem:[#allocation3 + $0x1f0] sm:$0xff]
      %v1823 = vsel %vm1698, %v1778, %v1822
      %1824 = vst [vmem:[#allocation3 + $0x1f0] sm:$0xff] %v1823
      %v1825 = vld [vmem:[#allocation3] sm:$0xff]
      %v1826 = vld [vmem:[#allocation3 + $0x8] sm:$0xff]
      %v1827 = vld [vmem:[#allocation3 + $0x10] sm:$0xff]
      %v1828 = vld [vmem:[#allocation3 + $0x18] sm:$0xff]
      %v1829 = vld [vmem:[#allocation3 + $0x20] sm:$0xff]
      %v1830 = vld [vmem:[#allocation3 + $0x28] sm:$0xff]
      %v1831 = vld [vmem:[#allocation3 + $0x30] sm:$0xff]
      %v1832 = vld [vmem:[#allocation3 + $0x38] sm:$0xff]
      %v1833 = vld [vmem:[#allocation3 + $0x40] sm:$0xff]
      %v1834 = vld [vmem:[#allocation3 + $0x48] sm:$0xff]
      %v1835 = vld [vmem:[#allocation3 + $0x50] sm:$0xff]
      %v1836 = vld [vmem:[#allocation3 + $0x58] sm:$0xff]
      %v1837 = vld [vmem:[#allocation3 + $0x60] sm:$0xff]
      %v1838 = vld [vmem:[#allocation3 + $0x68] sm:$0xff]
      %v1839 = vld [vmem:[#allocation3 + $0x70] sm:$0xff]
      %v1840 = vld [vmem:[#allocation3 + $0x78] sm:$0xff]
      %v1841 = vld [vmem:[#allocation3 + $0x80] sm:$0xff]
      %v1842 = vld [vmem:[#allocation3 + $0x88] sm:$0xff]
      %v1843 = vld [vmem:[#allocation3 + $0x90] sm:$0xff]
      %v1844 = vld [vmem:[#allocation3 + $0x98] sm:$0xff]
      %v1845 = vld [vmem:[#allocation3 + $0xa0] sm:$0xff]
      %v1846 = vld [vmem:[#allocation3 + $0xa8] sm:$0xff]
      %v1847 = vld [vmem:[#allocation3 + $0xb0] sm:$0xff]
      %v1848 = vld [vmem:[#allocation3 + $0xb8] sm:$0xff]
      %v1849 = vld [vmem:[#allocation3 + $0xc0] sm:$0xff]
      %v1850 = vld [vmem:[#allocation3 + $0xc8] sm:$0xff]
      %v1851 = vld [vmem:[#allocation3 + $0xd0] sm:$0xff]
      %v1852 = vld [vmem:[#allocation3 + $0xd8] sm:$0xff]
      %v1853 = vld [vmem:[#allocation3 + $0xe0] sm:$0xff]
      %v1854 = vld [vmem:[#allocation3 + $0xe8] sm:$0xff]
      %v1855 = vld [vmem:[#allocation3 + $0xf0] sm:$0xff]
      %v1856 = vld [vmem:[#allocation3 + $0xf8] sm:$0xff]
      %v1857 = vld [vmem:[#allocation3 + $0x100] sm:$0xff]
      %v1858 = vld [vmem:[#allocation3 + $0x108] sm:$0xff]
      %v1859 = vld [vmem:[#allocation3 + $0x110] sm:$0xff]
      %v1860 = vld [vmem:[#allocation3 + $0x118] sm:$0xff]
      %v1861 = vld [vmem:[#allocation3 + $0x120] sm:$0xff]
      %v1862 = vld [vmem:[#allocation3 + $0x128] sm:$0xff]
      %v1863 = vld [vmem:[#allocation3 + $0x130] sm:$0xff]
      %v1864 = vld [vmem:[#allocation3 + $0x138] sm:$0xff]
      %v1865 = vld [vmem:[#allocation3 + $0x140] sm:$0xff]
      %v1866 = vld [vmem:[#allocation3 + $0x148] sm:$0xff]
      %v1867 = vld [vmem:[#allocation3 + $0x150] sm:$0xff]
      %v1868 = vld [vmem:[#allocation3 + $0x158] sm:$0xff]
      %v1869 = vld [vmem:[#allocation3 + $0x160] sm:$0xff]
      %v1870 = vld [vmem:[#allocation3 + $0x168] sm:$0xff]
      %v1871 = vld [vmem:[#allocation3 + $0x170] sm:$0xff]
      %v1872 = vld [vmem:[#allocation3 + $0x178] sm:$0xff]
      %v1873 = vld [vmem:[#allocation3 + $0x180] sm:$0xff]
      %v1874 = vld [vmem:[#allocation3 + $0x188] sm:$0xff]
      %v1875 = vld [vmem:[#allocation3 + $0x190] sm:$0xff]
      %v1876 = vld [vmem:[#allocation3 + $0x198] sm:$0xff]
      %v1877 = vld [vmem:[#allocation3 + $0x1a0] sm:$0xff]
      %v1878 = vld [vmem:[#allocation3 + $0x1a8] sm:$0xff]
      %v1879 = vld [vmem:[#allocation3 + $0x1b0] sm:$0xff]
      %v1880 = vld [vmem:[#allocation3 + $0x1b8] sm:$0xff]
      %v1881 = vld [vmem:[#allocation3 + $0x1c0] sm:$0xff]
      %v1882 = vld [vmem:[#allocation3 + $0x1c8] sm:$0xff]
      %v1883 = vld [vmem:[#allocation3 + $0x1d0] sm:$0xff]
      %v1884 = vld [vmem:[#allocation3 + $0x1d8] sm:$0xff]
      %v1885 = vld [vmem:[#allocation3 + $0x1e0] sm:$0xff]
      %v1886 = vld [vmem:[#allocation3 + $0x1e8] sm:$0xff]
      %v1887 = vld [vmem:[#allocation3 + $0x1f0] sm:$0xff]
      %v1888 = vld [vmem:[#allocation3 + $0x1f8] sm:$0xff]
      %v1889 = vld [vmem:[#allocation3 + $0x200] sm:$0xff]
      %v1890 = vld [vmem:[#allocation3 + $0x208] sm:$0xff]
      %v1891 = vld [vmem:[#allocation3 + $0x210] sm:$0xff]
      %v1892 = vld [vmem:[#allocation3 + $0x218] sm:$0xff]
      %v1893 = vld [vmem:[#allocation3 + $0x220] sm:$0xff]
      %v1894 = vld [vmem:[#allocation3 + $0x228] sm:$0xff]
      %v1895 = vld [vmem:[#allocation3 + $0x230] sm:$0xff]
      %v1896 = vld [vmem:[#allocation3 + $0x238] sm:$0xff]
      %v1897 = vld [vmem:[%s2] sm:$0xf]
      %v1898 = vld [vmem:[%s2 + $0x4] sm:$0xf]
      %v1899 = vld [vmem:[%s2 + $0x8] sm:$0xf]
      %v1900 = vld [vmem:[%s2 + $0xc] sm:$0xf]
      %v1901 = vld [vmem:[%s2 + $0x10] sm:$0xf]
      %v1902 = vld [vmem:[%s2 + $0x14] sm:$0xf]
      %v1903 = vld [vmem:[%s2 + $0x18] sm:$0xf]
      %v1904 = vld [vmem:[%s2 + $0x1c] sm:$0xf]
      %v1905 = vld [vmem:[%s2 + $0x20] sm:$0xf]
      %v1906 = vld [vmem:[%s2 + $0x24] sm:$0xf]
      %v1907 = vld [vmem:[%s2 + $0x28] sm:$0xf]
      %v1908 = vld [vmem:[%s2 + $0x2c] sm:$0xf]
      %v1909 = vld [vmem:[%s2 + $0x30] sm:$0xf]
      %v1910 = vld [vmem:[%s2 + $0x34] sm:$0xf]
      %v1911 = vld [vmem:[%s2 + $0x38] sm:$0xf]
      %v1912 = vld [vmem:[%s2 + $0x3c] sm:$0xf]
      %v1913 = vld [vmem:[%s2 + $0x40] sm:$0xf]
      %v1914 = vld [vmem:[%s2 + $0x44] sm:$0xf]
      %v1915 = vld [vmem:[%s2 + $0x48] sm:$0xf]
      %v1916 = vld [vmem:[%s2 + $0x4c] sm:$0xf]
      %v1917 = vld [vmem:[%s2 + $0x50] sm:$0xf]
      %v1918 = vld [vmem:[%s2 + $0x54] sm:$0xf]
      %v1919 = vld [vmem:[%s2 + $0x58] sm:$0xf]
      %v1920 = vld [vmem:[%s2 + $0x5c] sm:$0xf]
      %v1921 = vld [vmem:[%s2 + $0x60] sm:$0xf]
      %v1922 = vld [vmem:[%s2 + $0x64] sm:$0xf]
      %v1923 = vld [vmem:[%s2 + $0x68] sm:$0xf]
      %v1924 = vld [vmem:[%s2 + $0x6c] sm:$0xf]
      %v1925 = vld [vmem:[%s2 + $0x70] sm:$0xf]
      %v1926 = vld [vmem:[%s2 + $0x74] sm:$0xf]
      %v1927 = vld [vmem:[%s2 + $0x78] sm:$0xf]
      %v1928 = vld [vmem:[%s2 + $0x7c] sm:$0xf]
      %v1929 = vld [vmem:[%s2 + $0x80] sm:$0xf]
      %v1930 = vld [vmem:[%s2 + $0x84] sm:$0xf]
      %v1931 = vld [vmem:[%s2 + $0x88] sm:$0xf]
      %v1932 = vld [vmem:[%s2 + $0x8c] sm:$0xf]
      %v1933 = vld [vmem:[%s2 + $0x90] sm:$0xf]
      %v1934 = vld [vmem:[%s2 + $0x94] sm:$0xf]
      %v1935 = vld [vmem:[%s2 + $0x98] sm:$0xf]
      %v1936 = vld [vmem:[%s2 + $0x9c] sm:$0xf]
      %v1937 = vld [vmem:[%s2 + $0xa0] sm:$0xf]
      %v1938 = vld [vmem:[%s2 + $0xa4] sm:$0xf]
      %v1939 = vld [vmem:[%s2 + $0xa8] sm:$0xf]
      %v1940 = vld [vmem:[%s2 + $0xac] sm:$0xf]
      %v1941 = vld [vmem:[%s2 + $0xb0] sm:$0xf]
      %v1942 = vld [vmem:[%s2 + $0xb4] sm:$0xf]
      %v1943 = vld [vmem:[%s2 + $0xb8] sm:$0xf]
      %v1944 = vld [vmem:[%s2 + $0xbc] sm:$0xf]
      %v1945 = vld [vmem:[%s2 + $0xc0] sm:$0xf]
      %v1946 = vld [vmem:[%s2 + $0xc4] sm:$0xf]
      %v1947 = vld [vmem:[%s2 + $0xc8] sm:$0xf]
      %v1948 = vld [vmem:[%s2 + $0xcc] sm:$0xf]
      %v1949 = vld [vmem:[%s2 + $0xd0] sm:$0xf]
      %v1950 = vld [vmem:[%s2 + $0xd4] sm:$0xf]
      %v1951 = vld [vmem:[%s2 + $0xd8] sm:$0xf]
      %v1952 = vld [vmem:[%s2 + $0xdc] sm:$0xf]
      %v1953 = vld [vmem:[%s2 + $0xe0] sm:$0xf]
      %v1954 = vld [vmem:[%s2 + $0xe4] sm:$0xf]
      %v1955 = vld [vmem:[%s2 + $0xe8] sm:$0xf]
      %v1956 = vld [vmem:[%s2 + $0xec] sm:$0xf]
      %v1957 = vld [vmem:[%s2 + $0xf0] sm:$0xf]
      %v1958 = vld [vmem:[%s2 + $0xf4] sm:$0xf]
      %v1959 = vld [vmem:[%s2 + $0xf8] sm:$0xf]
      %v1960 = vld [vmem:[%s2 + $0xfc] sm:$0xf]
      %v1961 = vld [vmem:[%s2 + $0x100] sm:$0xf]
      %v1962 = vld [vmem:[%s2 + $0x104] sm:$0xf]
      %v1963 = vld [vmem:[%s2 + $0x108] sm:$0xf]
      %v1964 = vld [vmem:[%s2 + $0x10c] sm:$0xf]
      %v1965 = vld [vmem:[%s2 + $0x110] sm:$0xf]
      %v1966 = vld [vmem:[%s2 + $0x114] sm:$0xf]
      %v1967 = vld [vmem:[%s2 + $0x118] sm:$0xf]
      %v1968 = vld [vmem:[%s2 + $0x11c] sm:$0xf]
      %v1969 = vld [vmem:[%s2 + $0x120] sm:$0xf]
      %v1970 = vld [vmem:[%s2 + $0x124] sm:$0xf]
      %v1971 = vld [vmem:[%s2 + $0x128] sm:$0xf]
      %v1972 = vld [vmem:[%s2 + $0x12c] sm:$0xf]
      %v1973 = vld [vmem:[%s2 + $0x130] sm:$0xf]
      %v1974 = vld [vmem:[%s2 + $0x134] sm:$0xf]
      %v1975 = vld [vmem:[%s2 + $0x138] sm:$0xf]
      %v1976 = vld [vmem:[%s2 + $0x13c] sm:$0xf]
      %v1977 = vld [vmem:[%s2 + $0x140] sm:$0xf]
      %v1978 = vld [vmem:[%s2 + $0x144] sm:$0xf]
      %v1979 = vld [vmem:[%s2 + $0x148] sm:$0xf]
      %v1980 = vld [vmem:[%s2 + $0x14c] sm:$0xf]
      %v1981 = vld [vmem:[%s2 + $0x150] sm:$0xf]
      %v1982 = vld [vmem:[%s2 + $0x154] sm:$0xf]
      %v1983 = vld [vmem:[%s2 + $0x158] sm:$0xf]
      %v1984 = vld [vmem:[%s2 + $0x15c] sm:$0xf]
      %v1985 = vld [vmem:[%s2 + $0x160] sm:$0xf]
      %v1986 = vld [vmem:[%s2 + $0x164] sm:$0xf]
      %v1987 = vld [vmem:[%s2 + $0x168] sm:$0xf]
      %v1988 = vld [vmem:[%s2 + $0x16c] sm:$0xf]
      %v1989 = vld [vmem:[%s2 + $0x170] sm:$0xf]
      %v1990 = vld [vmem:[%s2 + $0x174] sm:$0xf]
      %v1991 = vld [vmem:[%s2 + $0x178] sm:$0xf]
      %v1992 = vld [vmem:[%s2 + $0x17c] sm:$0xf]
      %v1993 = vld [vmem:[%s2 + $0x180] sm:$0xf]
      %v1994 = vld [vmem:[%s2 + $0x184] sm:$0xf]
      %v1995 = vld [vmem:[%s2 + $0x188] sm:$0xf]
      %v1996 = vld [vmem:[%s2 + $0x18c] sm:$0xf]
      %v1997 = vld [vmem:[%s2 + $0x190] sm:$0xf]
      %v1998 = vld [vmem:[%s2 + $0x194] sm:$0xf]
      %v1999 = vld [vmem:[%s2 + $0x198] sm:$0xf]
      %v2000 = vld [vmem:[%s2 + $0x19c] sm:$0xf]
      %v2001 = vld [vmem:[%s2 + $0x1a0] sm:$0xf]
      %v2002 = vld [vmem:[%s2 + $0x1a4] sm:$0xf]
      %v2003 = vld [vmem:[%s2 + $0x1a8] sm:$0xf]
      %v2004 = vld [vmem:[%s2 + $0x1ac] sm:$0xf]
      %v2005 = vld [vmem:[%s2 + $0x1b0] sm:$0xf]
      %v2006 = vld [vmem:[%s2 + $0x1b4] sm:$0xf]
      %v2007 = vld [vmem:[%s2 + $0x1b8] sm:$0xf]
      %v2008 = vld [vmem:[%s2 + $0x1bc] sm:$0xf]
      %v2009 = vld [vmem:[%s2 + $0x1c0] sm:$0xf]
      %v2010 = vld [vmem:[%s2 + $0x1c4] sm:$0xf]
      %v2011 = vld [vmem:[%s2 + $0x1c8] sm:$0xf]
      %v2012 = vld [vmem:[%s2 + $0x1cc] sm:$0xf]
      %v2013 = vld [vmem:[%s2 + $0x1d0] sm:$0xf]
      %v2014 = vld [vmem:[%s2 + $0x1d4] sm:$0xf]
      %v2015 = vld [vmem:[%s2 + $0x1d8] sm:$0xf]
      %v2016 = vld [vmem:[%s2 + $0x1dc] sm:$0xf]
      %v2017 = vld [vmem:[%s2 + $0x1e0] sm:$0xf]
      %v2018 = vld [vmem:[%s2 + $0x1e4] sm:$0xf]
      %v2019 = vld [vmem:[%s2 + $0x1e8] sm:$0xf]
      %v2020 = vld [vmem:[%s2 + $0x1ec] sm:$0xf]
      %v2021 = vld [vmem:[%s2 + $0x1f0] sm:$0xf]
      %v2022 = vld [vmem:[%s2 + $0x1f4] sm:$0xf]
      %v2023 = vld [vmem:[%s2 + $0x1f8] sm:$0xf]
      %v2024 = vld [vmem:[%s2 + $0x1fc] sm:$0xf]
      %v2025 = vld [vmem:[%s2 + $0x200] sm:$0xf]
      %v2026 = vld [vmem:[%s2 + $0x204] sm:$0xf]
      %v2027 = vld [vmem:[%s2 + $0x208] sm:$0xf]
      %v2028 = vld [vmem:[%s2 + $0x20c] sm:$0xf]
      %v2029 = vld [vmem:[%s2 + $0x210] sm:$0xf]
      %v2030 = vld [vmem:[%s2 + $0x214] sm:$0xf]
      %v2031 = vld [vmem:[%s2 + $0x218] sm:$0xf]
      %v2032 = vld [vmem:[%s2 + $0x21c] sm:$0xf]
      %v2033 = vld [vmem:[%s2 + $0x220] sm:$0xf]
      %v2034 = vld [vmem:[%s2 + $0x224] sm:$0xf]
      %v2035 = vld [vmem:[%s2 + $0x228] sm:$0xf]
      %v2036 = vld [vmem:[%s2 + $0x22c] sm:$0xf]
      %v2037 = vld [vmem:[%s2 + $0x230] sm:$0xf]
      %v2038 = vld [vmem:[%s2 + $0x234] sm:$0xf]
      %v2039 = vld [vmem:[%s2 + $0x238] sm:$0xf]
      %v2040 = vld [vmem:[%s2 + $0x23c] sm:$0xf]
      %v2041 = vld [vmem:[%s5] sm:$0x1]
      %v2043 = vlaneseq
      %v2044 = vshrl.u32 %v2043, 7
      %v2045 = vsub.s32 0, %v2044
      %v2046 = vrot.slane %v2041, %v2045
      %v2192 = vunpack.c.l.b16 %v1897
      %v2193 = vunpack.c.l.b16 %v1898
      %v2194 = vunpack.c.l.b16 %v1899
      %v2195 = vunpack.c.l.b16 %v1900
      %v2196 = vunpack.c.l.b16 %v1901
      %v2197 = vunpack.c.l.b16 %v1902
      %v2198 = vunpack.c.l.b16 %v1903
      %v2199 = vunpack.c.l.b16 %v1904
      %v2200 = vunpack.c.l.b16 %v1905
      %v2201 = vunpack.c.l.b16 %v1906
      %v2202 = vunpack.c.l.b16 %v1907
      %v2203 = vunpack.c.l.b16 %v1908
      %v2204 = vunpack.c.l.b16 %v1909
      %v2205 = vunpack.c.l.b16 %v1910
      %v2206 = vunpack.c.l.b16 %v1911
      %v2207 = vunpack.c.l.b16 %v1912
      %v2208 = vunpack.c.l.b16 %v1913
      %v2209 = vunpack.c.l.b16 %v1914
      %v2210 = vunpack.c.l.b16 %v1915
      %v2211 = vunpack.c.l.b16 %v1916
      %v2212 = vunpack.c.l.b16 %v1917
      %v2213 = vunpack.c.l.b16 %v1918
      %v2214 = vunpack.c.l.b16 %v1919
      %v2215 = vunpack.c.l.b16 %v1920
      %v2216 = vunpack.c.l.b16 %v1921
      %v2217 = vunpack.c.l.b16 %v1922
      %v2218 = vunpack.c.l.b16 %v1923
      %v2219 = vunpack.c.l.b16 %v1924
      %v2220 = vunpack.c.l.b16 %v1925
      %v2221 = vunpack.c.l.b16 %v1926
      %v2222 = vunpack.c.l.b16 %v1927
      %v2223 = vunpack.c.l.b16 %v1928
      %v2224 = vunpack.c.l.b16 %v1929
      %v2225 = vunpack.c.l.b16 %v1930
      %v2226 = vunpack.c.l.b16 %v1931
      %v2227 = vunpack.c.l.b16 %v1932
      %v2228 = vunpack.c.l.b16 %v1933
      %v2229 = vunpack.c.l.b16 %v1934
      %v2230 = vunpack.c.l.b16 %v1935
      %v2231 = vunpack.c.l.b16 %v1936
      %v2232 = vunpack.c.l.b16 %v1937
      %v2233 = vunpack.c.l.b16 %v1938
      %v2234 = vunpack.c.l.b16 %v1939
      %v2235 = vunpack.c.l.b16 %v1940
      %v2236 = vunpack.c.l.b16 %v1941
      %v2237 = vunpack.c.l.b16 %v1942
      %v2238 = vunpack.c.l.b16 %v1943
      %v2239 = vunpack.c.l.b16 %v1944
      %v2240 = vunpack.c.l.b16 %v1945
      %v2241 = vunpack.c.l.b16 %v1946
      %v2242 = vunpack.c.l.b16 %v1947
      %v2243 = vunpack.c.l.b16 %v1948
      %v2244 = vunpack.c.l.b16 %v1949
      %v2245 = vunpack.c.l.b16 %v1950
      %v2246 = vunpack.c.l.b16 %v1951
      %v2247 = vunpack.c.l.b16 %v1952
      %v2248 = vunpack.c.l.b16 %v1953
      %v2249 = vunpack.c.l.b16 %v1954
      %v2250 = vunpack.c.l.b16 %v1955
      %v2251 = vunpack.c.l.b16 %v1956
      %v2252 = vunpack.c.l.b16 %v1957
      %v2253 = vunpack.c.l.b16 %v1958
      %v2254 = vunpack.c.l.b16 %v1959
      %v2255 = vunpack.c.l.b16 %v1960
      %v2256 = vunpack.c.l.b16 %v1961
      %v2257 = vunpack.c.l.b16 %v1962
      %v2258 = vunpack.c.l.b16 %v1963
      %v2259 = vunpack.c.l.b16 %v1964
      %v2260 = vunpack.c.l.b16 %v1965
      %v2261 = vunpack.c.l.b16 %v1966
      %v2262 = vunpack.c.l.b16 %v1967
      %v2263 = vunpack.c.l.b16 %v1968
      %v2264 = vunpack.c.l.b16 %v1969
      %v2265 = vunpack.c.l.b16 %v1970
      %v2266 = vunpack.c.l.b16 %v1971
      %v2267 = vunpack.c.l.b16 %v1972
      %v2268 = vunpack.c.l.b16 %v1973
      %v2269 = vunpack.c.l.b16 %v1974
      %v2270 = vunpack.c.l.b16 %v1975
      %v2271 = vunpack.c.l.b16 %v1976
      %v2272 = vunpack.c.l.b16 %v1977
      %v2273 = vunpack.c.l.b16 %v1978
      %v2274 = vunpack.c.l.b16 %v1979
      %v2275 = vunpack.c.l.b16 %v1980
      %v2276 = vunpack.c.l.b16 %v1981
      %v2277 = vunpack.c.l.b16 %v1982
      %v2278 = vunpack.c.l.b16 %v1983
      %v2279 = vunpack.c.l.b16 %v1984
      %v2280 = vunpack.c.l.b16 %v1985
      %v2281 = vunpack.c.l.b16 %v1986
      %v2282 = vunpack.c.l.b16 %v1987
      %v2283 = vunpack.c.l.b16 %v1988
      %v2284 = vunpack.c.l.b16 %v1989
      %v2285 = vunpack.c.l.b16 %v1990
      %v2286 = vunpack.c.l.b16 %v1991
      %v2287 = vunpack.c.l.b16 %v1992
      %v2288 = vunpack.c.l.b16 %v1993
      %v2289 = vunpack.c.l.b16 %v1994
      %v2290 = vunpack.c.l.b16 %v1995
      %v2291 = vunpack.c.l.b16 %v1996
      %v2292 = vunpack.c.l.b16 %v1997
      %v2293 = vunpack.c.l.b16 %v1998
      %v2294 = vunpack.c.l.b16 %v1999
      %v2295 = vunpack.c.l.b16 %v2000
      %v2296 = vunpack.c.l.b16 %v2001
      %v2297 = vunpack.c.l.b16 %v2002
      %v2298 = vunpack.c.l.b16 %v2003
      %v2299 = vunpack.c.l.b16 %v2004
      %v2300 = vunpack.c.l.b16 %v2005
      %v2301 = vunpack.c.l.b16 %v2006
      %v2302 = vunpack.c.l.b16 %v2007
      %v2303 = vunpack.c.l.b16 %v2008
      %v2304 = vunpack.c.l.b16 %v2009
      %v2305 = vunpack.c.l.b16 %v2010
      %v2306 = vunpack.c.l.b16 %v2011
      %v2307 = vunpack.c.l.b16 %v2012
      %v2308 = vunpack.c.l.b16 %v2013
      %v2309 = vunpack.c.l.b16 %v2014
      %v2310 = vunpack.c.l.b16 %v2015
      %v2311 = vunpack.c.l.b16 %v2016
      %v2312 = vunpack.c.l.b16 %v2017
      %v2313 = vunpack.c.l.b16 %v2018
      %v2314 = vunpack.c.l.b16 %v2019
      %v2315 = vunpack.c.l.b16 %v2020
      %v2316 = vunpack.c.l.b16 %v2021
      %v2317 = vunpack.c.l.b16 %v2022
      %v2318 = vunpack.c.l.b16 %v2023
      %v2319 = vunpack.c.l.b16 %v2024
      %v2320 = vunpack.c.l.b16 %v2025
      %v2321 = vunpack.c.l.b16 %v2026
      %v2322 = vunpack.c.l.b16 %v2027
      %v2323 = vunpack.c.l.b16 %v2028
      %v2324 = vunpack.c.l.b16 %v2029
      %v2325 = vunpack.c.l.b16 %v2030
      %v2326 = vunpack.c.l.b16 %v2031
      %v2327 = vunpack.c.l.b16 %v2032
      %v2328 = vunpack.c.l.b16 %v2033
      %v2329 = vunpack.c.l.b16 %v2034
      %v2330 = vunpack.c.l.b16 %v2035
      %v2331 = vunpack.c.l.b16 %v2036
      %v2332 = vunpack.c.l.b16 %v2037
      %v2333 = vunpack.c.l.b16 %v2038
      %v2334 = vunpack.c.l.b16 %v2039
      %v2335 = vunpack.c.l.b16 %v2040
      %v2336 = vpack.c.b16 %v2193, %v2192
      %v2337 = vpack.c.b16 %v2195, %v2194
      %v2338 = vpack.c.b16 %v2197, %v2196
      %v2339 = vpack.c.b16 %v2199, %v2198
      %v2340 = vpack.c.b16 %v2201, %v2200
      %v2341 = vpack.c.b16 %v2203, %v2202
      %v2342 = vpack.c.b16 %v2205, %v2204
      %v2343 = vpack.c.b16 %v2207, %v2206
      %v2344 = vpack.c.b16 %v2209, %v2208
      %v2345 = vpack.c.b16 %v2211, %v2210
      %v2346 = vpack.c.b16 %v2213, %v2212
      %v2347 = vpack.c.b16 %v2215, %v2214
      %v2348 = vpack.c.b16 %v2217, %v2216
      %v2349 = vpack.c.b16 %v2219, %v2218
      %v2350 = vpack.c.b16 %v2221, %v2220
      %v2351 = vpack.c.b16 %v2223, %v2222
      %v2352 = vpack.c.b16 %v2225, %v2224
      %v2353 = vpack.c.b16 %v2227, %v2226
      %v2354 = vpack.c.b16 %v2229, %v2228
      %v2355 = vpack.c.b16 %v2231, %v2230
      %v2356 = vpack.c.b16 %v2233, %v2232
      %v2357 = vpack.c.b16 %v2235, %v2234
      %v2358 = vpack.c.b16 %v2237, %v2236
      %v2359 = vpack.c.b16 %v2239, %v2238
      %v2360 = vpack.c.b16 %v2241, %v2240
      %v2361 = vpack.c.b16 %v2243, %v2242
      %v2362 = vpack.c.b16 %v2245, %v2244
      %v2363 = vpack.c.b16 %v2247, %v2246
      %v2364 = vpack.c.b16 %v2249, %v2248
      %v2365 = vpack.c.b16 %v2251, %v2250
      %v2366 = vpack.c.b16 %v2253, %v2252
      %v2367 = vpack.c.b16 %v2255, %v2254
      %v2368 = vpack.c.b16 %v2257, %v2256
      %v2369 = vpack.c.b16 %v2259, %v2258
      %v2370 = vpack.c.b16 %v2261, %v2260
      %v2371 = vpack.c.b16 %v2263, %v2262
      %v2372 = vpack.c.b16 %v2265, %v2264
      %v2373 = vpack.c.b16 %v2267, %v2266
      %v2374 = vpack.c.b16 %v2269, %v2268
      %v2375 = vpack.c.b16 %v2271, %v2270
      %v2376 = vpack.c.b16 %v2273, %v2272
      %v2377 = vpack.c.b16 %v2275, %v2274
      %v2378 = vpack.c.b16 %v2277, %v2276
      %v2379 = vpack.c.b16 %v2279, %v2278
      %v2380 = vpack.c.b16 %v2281, %v2280
      %v2381 = vpack.c.b16 %v2283, %v2282
      %v2382 = vpack.c.b16 %v2285, %v2284
      %v2383 = vpack.c.b16 %v2287, %v2286
      %v2384 = vpack.c.b16 %v2289, %v2288
      %v2385 = vpack.c.b16 %v2291, %v2290
      %v2386 = vpack.c.b16 %v2293, %v2292
      %v2387 = vpack.c.b16 %v2295, %v2294
      %v2388 = vpack.c.b16 %v2297, %v2296
      %v2389 = vpack.c.b16 %v2299, %v2298
      %v2390 = vpack.c.b16 %v2301, %v2300
      %v2391 = vpack.c.b16 %v2303, %v2302
      %v2392 = vpack.c.b16 %v2305, %v2304
      %v2393 = vpack.c.b16 %v2307, %v2306
      %v2394 = vpack.c.b16 %v2309, %v2308
      %v2395 = vpack.c.b16 %v2311, %v2310
      %v2396 = vpack.c.b16 %v2313, %v2312
      %v2397 = vpack.c.b16 %v2315, %v2314
      %v2398 = vpack.c.b16 %v2317, %v2316
      %v2399 = vpack.c.b16 %v2319, %v2318
      %v2400 = vpack.c.b16 %v2321, %v2320
      %v2401 = vpack.c.b16 %v2323, %v2322
      %v2402 = vpack.c.b16 %v2325, %v2324
      %v2403 = vpack.c.b16 %v2327, %v2326
      %v2404 = vpack.c.b16 %v2329, %v2328
      %v2405 = vpack.c.b16 %v2331, %v2330
      %v2406 = vpack.c.b16 %v2333, %v2332
      %v2407 = vpack.c.b16 %v2335, %v2334
      %2480 = vmatprep.subr.bf16.mxu0 0
      %2481 = vmatpush1.bf16.msra.mxu0 %v2336
      %2482 = vmatprep.subr.bf16.mxu0 0
      %2483 = vmatpush1.bf16.msra.mxu0 %v2337
      %2484 = vmatprep.subr.bf16.mxu0 0
      %2485 = vmatpush1.bf16.msra.mxu0 %v2338
      %2486 = vmatprep.subr.bf16.mxu0 0
      %2487 = vmatpush1.bf16.msra.mxu0 %v2339
      %2488 = vmatprep.subr.bf16.mxu0 0
      %2489 = vmatpush1.bf16.msra.mxu0 %v2340
      %2490 = vmatprep.subr.bf16.mxu0 0
      %2491 = vmatpush1.bf16.msra.mxu0 %v2341
      %2492 = vmatprep.subr.bf16.mxu0 0
      %2493 = vmatpush1.bf16.msra.mxu0 %v2342
      %2494 = vmatprep.subr.bf16.mxu0 0
      %2495 = vmatpush1.bf16.msra.mxu0 %v2343
      %2496 = vmatprep.subr.bf16.mxu0 0
      %2497 = vmatpush1.bf16.msra.mxu0 %v2344
      %2498 = vmatprep.subr.bf16.mxu0 0
      %2499 = vmatpush1.bf16.msra.mxu0 %v2345
      %2500 = vmatprep.subr.bf16.mxu0 0
      %2501 = vmatpush1.bf16.msra.mxu0 %v2346
      %2502 = vmatprep.subr.bf16.mxu0 0
      %2503 = vmatpush1.bf16.msra.mxu0 %v2347
      %2504 = vmatprep.subr.bf16.mxu0 0
      %2505 = vmatpush1.bf16.msra.mxu0 %v2348
      %2506 = vmatprep.subr.bf16.mxu0 0
      %2507 = vmatpush1.bf16.msra.mxu0 %v2349
      %2508 = vmatprep.subr.bf16.mxu0 0
      %2509 = vmatpush1.bf16.msra.mxu0 %v2350
      %2510 = vmatprep.subr.bf16.mxu0 0
      %2511 = vmatpush1.bf16.msra.mxu0 %v2351
      %2512 = vmatprep.mubr.bf16.mxu0 %v1826
      %2513 = vmatmul.mubr.bf16.gmra.mrb[0].mxu0 %v1825
      %v2514 = vpop.f32.mrb[0].mxu0
      %v2515 = vadd.f32 %v2046, %v2514
      %v2516 = vpop.f32.mrb[0].mxu0
      %v2517 = vpop.f32.mrb[0].mxu0
      %v2518 = vadd.f32 %v2046, %v2517
      %v2519 = vpop.f32.mrb[0].mxu0
      %2520 = vmatprep.mubr.bf16.mxu0 %v1835
      %2521 = vmatmul.mubr.bf16.gmra.mrb[0].mxu0 %v1834
      %v2522 = vpop.f32.mrb[0].mxu0
      %v2523 = vadd.f32 %v2046, %v2522
      %v2524 = vpop.f32.mrb[0].mxu0
      %v2525 = vpop.f32.mrb[0].mxu0
      %v2526 = vadd.f32 %v2046, %v2525
      %v2527 = vpop.f32.mrb[0].mxu0
      %2528 = vmatprep.mubr.bf16.mxu0 %v1844
      %2529 = vmatmul.mubr.bf16.gmra.mrb[0].mxu0 %v1843
      %v2530 = vpop.f32.mrb[0].mxu0
      %v2531 = vadd.f32 %v2046, %v2530
      %v2532 = vpop.f32.mrb[0].mxu0
      %v2533 = vpop.f32.mrb[0].mxu0
      %v2534 = vadd.f32 %v2046, %v2533
      %v2535 = vpop.f32.mrb[0].mxu0
      %2536 = vmatprep.mubr.bf16.mxu0 %v1853
      %2537 = vmatmul.mubr.bf16.gmra.mrb[0].mxu0 %v1852
      %v2538 = vpop.f32.mrb[0].mxu0
      %v2539 = vadd.f32 %v2046, %v2538
      %v2540 = vpop.f32.mrb[0].mxu0
      %v2541 = vpop.f32.mrb[0].mxu0
      %v2542 = vadd.f32 %v2046, %v2541
      %v2543 = vpop.f32.mrb[0].mxu0
      %2544 = vmatprep.mubr.bf16.mxu0 %v1862
      %2545 = vmatmul.mubr.bf16.gmra.mrb[0].mxu0 %v1861
      %v2546 = vpop.f32.mrb[0].mxu0
      %v2547 = vadd.f32 %v2046, %v2546
      %v2548 = vpop.f32.mrb[0].mxu0
      %v2549 = vpop.f32.mrb[0].mxu0
      %v2550 = vadd.f32 %v2046, %v2549
      %v2551 = vpop.f32.mrb[0].mxu0
      %2552 = vmatprep.mubr.bf16.mxu0 %v1871
      %2553 = vmatmul.mubr.bf16.gmra.mrb[0].mxu0 %v1870
      %v2554 = vpop.f32.mrb[0].mxu0
      %v2555 = vadd.f32 %v2046, %v2554
      %v2556 = vpop.f32.mrb[0].mxu0
      %v2557 = vpop.f32.mrb[0].mxu0
      %v2558 = vadd.f32 %v2046, %v2557
      %v2559 = vpop.f32.mrb[0].mxu0
      %2560 = vmatprep.mubr.bf16.mxu0 %v1880
      %2561 = vmatmul.mubr.bf16.gmra.mrb[0].mxu0 %v1879
      %v2562 = vpop.f32.mrb[0].mxu0
      %v2563 = vadd.f32 %v2046, %v2562
      %v2564 = vpop.f32.mrb[0].mxu0
      %v2565 = vpop.f32.mrb[0].mxu0
      %v2566 = vadd.f32 %v2046, %v2565
      %v2567 = vpop.f32.mrb[0].mxu0
      %2568 = vmatprep.mubr.bf16.mxu0 %v1889
      %2569 = vmatmul.mubr.bf16.gmra.mrb[0].mxu0 %v1888
      %v2570 = vpop.f32.mrb[0].mxu0
      %v2571 = vadd.f32 %v2046, %v2570
      %v2572 = vpop.f32.mrb[0].mxu0
      %v2573 = vpop.f32.mrb[0].mxu0
      %v2574 = vadd.f32 %v2046, %v2573
      %v2575 = vpop.f32.mrb[0].mxu0
      %2576 = vdwg.mxu0
      %2577 = vmatprep.subr.bf16.mxu0 0
      %2578 = vmatpush1.bf16.msra.mxu0 %v2352
      %2579 = vmatprep.subr.bf16.mxu0 0
      %2580 = vmatpush1.bf16.msra.mxu0 %v2353
      %2581 = vmatprep.subr.bf16.mxu0 0
      %2582 = vmatpush1.bf16.msra.mxu0 %v2354
      %2583 = vmatprep.subr.bf16.mxu0 0
      %2584 = vmatpush1.bf16.msra.mxu0 %v2355
      %2585 = vmatprep.subr.bf16.mxu0 0
      %2586 = vmatpush1.bf16.msra.mxu0 %v2356
      %2587 = vmatprep.subr.bf16.mxu0 0
      %2588 = vmatpush1.bf16.msra.mxu0 %v2357
      %2589 = vmatprep.subr.bf16.mxu0 0
      %2590 = vmatpush1.bf16.msra.mxu0 %v2358
      %2591 = vmatprep.subr.bf16.mxu0 0
      %2592 = vmatpush1.bf16.msra.mxu0 %v2359
      %2593 = vmatprep.subr.bf16.mxu0 0
      %2594 = vmatpush1.bf16.msra.mxu0 %v2360
      %2595 = vmatprep.subr.bf16.mxu0 0
      %2596 = vmatpush1.bf16.msra.mxu0 %v2361
      %2597 = vmatprep.subr.bf16.mxu0 0
      %2598 = vmatpush1.bf16.msra.mxu0 %v2362
      %2599 = vmatprep.subr.bf16.mxu0 0
      %2600 = vmatpush1.bf16.msra.mxu0 %v2363
      %2601 = vmatprep.subr.bf16.mxu0 0
      %2602 = vmatpush1.bf16.msra.mxu0 %v2364
      %2603 = vmatprep.subr.bf16.mxu0 0
      %2604 = vmatpush1.bf16.msra.mxu0 %v2365
      %2605 = vmatprep.subr.bf16.mxu0 0
      %2606 = vmatpush1.bf16.msra.mxu0 %v2366
      %2607 = vmatprep.subr.bf16.mxu0 0
      %2608 = vmatpush1.bf16.msra.mxu0 %v2367
      %2609 = vmatprep.mubr.bf16.mxu0 %v1828
      %2610 = vmatmul.mubr.bf16.gmra.mrb[0].mxu0 %v1827
      %v2611 = vpop.f32.mrb[0].mxu0
      %v2612 = vadd.f32 %v2515, %v2611
      %v2613 = vpop.f32.mrb[0].mxu0
      %v2614 = vpop.f32.mrb[0].mxu0
      %v2615 = vadd.f32 %v2518, %v2614
      %v2616 = vpop.f32.mrb[0].mxu0
      %2617 = vmatprep.mubr.bf16.mxu0 %v1837
      %2618 = vmatmul.mubr.bf16.gmra.mrb[0].mxu0 %v1836
      %v2619 = vpop.f32.mrb[0].mxu0
      %v2620 = vadd.f32 %v2523, %v2619
      %v2621 = vpop.f32.mrb[0].mxu0
      %v2622 = vpop.f32.mrb[0].mxu0
      %v2623 = vadd.f32 %v2526, %v2622
      %v2624 = vpop.f32.mrb[0].mxu0
      %2625 = vmatprep.mubr.bf16.mxu0 %v1846
      %2626 = vmatmul.mubr.bf16.gmra.mrb[0].mxu0 %v1845
      %v2627 = vpop.f32.mrb[0].mxu0
      %v2628 = vadd.f32 %v2531, %v2627
      %v2629 = vpop.f32.mrb[0].mxu0
      %v2630 = vpop.f32.mrb[0].mxu0
      %v2631 = vadd.f32 %v2534, %v2630
      %v2632 = vpop.f32.mrb[0].mxu0
      %2633 = vmatprep.mubr.bf16.mxu0 %v1855
      %2634 = vmatmul.mubr.bf16.gmra.mrb[0].mxu0 %v1854
      %v2635 = vpop.f32.mrb[0].mxu0
      %v2636 = vadd.f32 %v2539, %v2635
      %v2637 = vpop.f32.mrb[0].mxu0
      %v2638 = vpop.f32.mrb[0].mxu0
      %v2639 = vadd.f32 %v2542, %v2638
      %v2640 = vpop.f32.mrb[0].mxu0
      %2641 = vmatprep.mubr.bf16.mxu0 %v1864
      %2642 = vmatmul.mubr.bf16.gmra.mrb[0].mxu0 %v1863
      %v2643 = vpop.f32.mrb[0].mxu0
      %v2644 = vadd.f32 %v2547, %v2643
      %v2645 = vpop.f32.mrb[0].mxu0
      %v2646 = vpop.f32.mrb[0].mxu0
      %v2647 = vadd.f32 %v2550, %v2646
      %v2648 = vpop.f32.mrb[0].mxu0
      %2649 = vmatprep.mubr.bf16.mxu0 %v1873
      %2650 = vmatmul.mubr.bf16.gmra.mrb[0].mxu0 %v1872
      %v2651 = vpop.f32.mrb[0].mxu0
      %v2652 = vadd.f32 %v2555, %v2651
      %v2653 = vpop.f32.mrb[0].mxu0
      %v2654 = vpop.f32.mrb[0].mxu0
      %v2655 = vadd.f32 %v2558, %v2654
      %v2656 = vpop.f32.mrb[0].mxu0
      %2657 = vmatprep.mubr.bf16.mxu0 %v1882
      %2658 = vmatmul.mubr.bf16.gmra.mrb[0].mxu0 %v1881
      %v2659 = vpop.f32.mrb[0].mxu0
      %v2660 = vadd.f32 %v2563, %v2659
      %v2661 = vpop.f32.mrb[0].mxu0
      %v2662 = vpop.f32.mrb[0].mxu0
      %v2663 = vadd.f32 %v2566, %v2662
      %v2664 = vpop.f32.mrb[0].mxu0
      %2665 = vmatprep.mubr.bf16.mxu0 %v1891
      %2666 = vmatmul.mubr.bf16.gmra.mrb[0].mxu0 %v1890
      %v2667 = vpop.f32.mrb[0].mxu0
      %v2668 = vadd.f32 %v2571, %v2667
      %v2669 = vpop.f32.mrb[0].mxu0
      %v2670 = vpop.f32.mrb[0].mxu0
      %v2671 = vadd.f32 %v2574, %v2670
      %v2672 = vpop.f32.mrb[0].mxu0
      %2673 = vdwg.mxu0
      %2674 = vmatprep.subr.bf16.mxu0 0
      %2675 = vmatpush1.bf16.msra.mxu0 %v2368
      %2676 = vmatprep.subr.bf16.mxu0 0
      %2677 = vmatpush1.bf16.msra.mxu0 %v2369
      %2678 = vmatprep.subr.bf16.mxu0 0
      %2679 = vmatpush1.bf16.msra.mxu0 %v2370
      %2680 = vmatprep.subr.bf16.mxu0 0
      %2681 = vmatpush1.bf16.msra.mxu0 %v2371
      %2682 = vmatprep.subr.bf16.mxu0 0
      %2683 = vmatpush1.bf16.msra.mxu0 %v2372
      %2684 = vmatprep.subr.bf16.mxu0 0
      %2685 = vmatpush1.bf16.msra.mxu0 %v2373
      %2686 = vmatprep.subr.bf16.mxu0 0
      %2687 = vmatpush1.bf16.msra.mxu0 %v2374
      %2688 = vmatprep.subr.bf16.mxu0 0
      %2689 = vmatpush1.bf16.msra.mxu0 %v2375
      %2690 = vmatprep.subr.bf16.mxu0 0
      %2691 = vmatpush1.bf16.msra.mxu0 %v2376
      %2692 = vmatprep.subr.bf16.mxu0 0
      %2693 = vmatpush1.bf16.msra.mxu0 %v2377
      %2694 = vmatprep.subr.bf16.mxu0 0
      %2695 = vmatpush1.bf16.msra.mxu0 %v2378
      %2696 = vmatprep.subr.bf16.mxu0 0
      %2697 = vmatpush1.bf16.msra.mxu0 %v2379
      %2698 = vmatprep.subr.bf16.mxu0 0
      %2699 = vmatpush1.bf16.msra.mxu0 %v2380
      %2700 = vmatprep.subr.bf16.mxu0 0
      %2701 = vmatpush1.bf16.msra.mxu0 %v2381
      %2702 = vmatprep.subr.bf16.mxu0 0
      %2703 = vmatpush1.bf16.msra.mxu0 %v2382
      %2704 = vmatprep.subr.bf16.mxu0 0
      %2705 = vmatpush1.bf16.msra.mxu0 %v2383
      %2706 = vmatprep.mubr.bf16.mxu0 %v1830
      %2707 = vmatmul.mubr.bf16.gmra.mrb[0].mxu0 %v1829
      %v2708 = vpop.f32.mrb[0].mxu0
      %v2709 = vadd.f32 %v2612, %v2708
      %v2710 = vpop.f32.mrb[0].mxu0
      %v2711 = vpop.f32.mrb[0].mxu0
      %v2712 = vadd.f32 %v2615, %v2711
      %v2713 = vpop.f32.mrb[0].mxu0
      %2714 = vmatprep.mubr.bf16.mxu0 %v1839
      %2715 = vmatmul.mubr.bf16.gmra.mrb[0].mxu0 %v1838
      %v2716 = vpop.f32.mrb[0].mxu0
      %v2717 = vadd.f32 %v2620, %v2716
      %v2718 = vpop.f32.mrb[0].mxu0
      %v2719 = vpop.f32.mrb[0].mxu0
      %v2720 = vadd.f32 %v2623, %v2719
      %v2721 = vpop.f32.mrb[0].mxu0
      %2722 = vmatprep.mubr.bf16.mxu0 %v1848
      %2723 = vmatmul.mubr.bf16.gmra.mrb[0].mxu0 %v1847
      %v2724 = vpop.f32.mrb[0].mxu0
      %v2725 = vadd.f32 %v2628, %v2724
      %v2726 = vpop.f32.mrb[0].mxu0
      %v2727 = vpop.f32.mrb[0].mxu0
      %v2728 = vadd.f32 %v2631, %v2727
      %v2729 = vpop.f32.mrb[0].mxu0
      %2730 = vmatprep.mubr.bf16.mxu0 %v1857
      %2731 = vmatmul.mubr.bf16.gmra.mrb[0].mxu0 %v1856
      %v2732 = vpop.f32.mrb[0].mxu0
      %v2733 = vadd.f32 %v2636, %v2732
      %v2734 = vpop.f32.mrb[0].mxu0
      %v2735 = vpop.f32.mrb[0].mxu0
      %v2736 = vadd.f32 %v2639, %v2735
      %v2737 = vpop.f32.mrb[0].mxu0
      %2738 = vmatprep.mubr.bf16.mxu0 %v1866
      %2739 = vmatmul.mubr.bf16.gmra.mrb[0].mxu0 %v1865
      %v2740 = vpop.f32.mrb[0].mxu0
      %v2741 = vadd.f32 %v2644, %v2740
      %v2742 = vpop.f32.mrb[0].mxu0
      %v2743 = vpop.f32.mrb[0].mxu0
      %v2744 = vadd.f32 %v2647, %v2743
      %v2745 = vpop.f32.mrb[0].mxu0
      %2746 = vmatprep.mubr.bf16.mxu0 %v1875
      %2747 = vmatmul.mubr.bf16.gmra.mrb[0].mxu0 %v1874
      %v2748 = vpop.f32.mrb[0].mxu0
      %v2749 = vadd.f32 %v2652, %v2748
      %v2750 = vpop.f32.mrb[0].mxu0
      %v2751 = vpop.f32.mrb[0].mxu0
      %v2752 = vadd.f32 %v2655, %v2751
      %v2753 = vpop.f32.mrb[0].mxu0
      %2754 = vmatprep.mubr.bf16.mxu0 %v1884
      %2755 = vmatmul.mubr.bf16.gmra.mrb[0].mxu0 %v1883
      %v2756 = vpop.f32.mrb[0].mxu0
      %v2757 = vadd.f32 %v2660, %v2756
      %v2758 = vpop.f32.mrb[0].mxu0
      %v2759 = vpop.f32.mrb[0].mxu0
      %v2760 = vadd.f32 %v2663, %v2759
      %v2761 = vpop.f32.mrb[0].mxu0
      %2762 = vmatprep.mubr.bf16.mxu0 %v1893
      %2763 = vmatmul.mubr.bf16.gmra.mrb[0].mxu0 %v1892
      %v2764 = vpop.f32.mrb[0].mxu0
      %v2765 = vadd.f32 %v2668, %v2764
      %v2766 = vpop.f32.mrb[0].mxu0
      %v2767 = vpop.f32.mrb[0].mxu0
      %v2768 = vadd.f32 %v2671, %v2767
      %v2769 = vpop.f32.mrb[0].mxu0
      %2770 = vdwg.mxu0
      %2771 = vmatprep.subr.bf16.mxu0 0
      %2772 = vmatpush1.bf16.msra.mxu0 %v2384
      %2773 = vmatprep.subr.bf16.mxu0 0
      %2774 = vmatpush1.bf16.msra.mxu0 %v2385
      %2775 = vmatprep.subr.bf16.mxu0 0
      %2776 = vmatpush1.bf16.msra.mxu0 %v2386
      %2777 = vmatprep.subr.bf16.mxu0 0
      %2778 = vmatpush1.bf16.msra.mxu0 %v2387
      %2779 = vmatprep.subr.bf16.mxu0 0
      %2780 = vmatpush1.bf16.msra.mxu0 %v2388
      %2781 = vmatprep.subr.bf16.mxu0 0
      %2782 = vmatpush1.bf16.msra.mxu0 %v2389
      %2783 = vmatprep.subr.bf16.mxu0 0
      %2784 = vmatpush1.bf16.msra.mxu0 %v2390
      %2785 = vmatprep.subr.bf16.mxu0 0
      %2786 = vmatpush1.bf16.msra.mxu0 %v2391
      %2787 = vmatprep.subr.bf16.mxu0 0
      %2788 = vmatpush1.bf16.msra.mxu0 %v2392
      %2789 = vmatprep.subr.bf16.mxu0 0
      %2790 = vmatpush1.bf16.msra.mxu0 %v2393
      %2791 = vmatprep.subr.bf16.mxu0 0
      %2792 = vmatpush1.bf16.msra.mxu0 %v2394
      %2793 = vmatprep.subr.bf16.mxu0 0
      %2794 = vmatpush1.bf16.msra.mxu0 %v2395
      %2795 = vmatprep.subr.bf16.mxu0 0
      %2796 = vmatpush1.bf16.msra.mxu0 %v2396
      %2797 = vmatprep.subr.bf16.mxu0 0
      %2798 = vmatpush1.bf16.msra.mxu0 %v2397
      %2799 = vmatprep.subr.bf16.mxu0 0
      %2800 = vmatpush1.bf16.msra.mxu0 %v2398
      %2801 = vmatprep.subr.bf16.mxu0 0
      %2802 = vmatpush1.bf16.msra.mxu0 %v2399
      %2803 = vmatprep.mubr.bf16.mxu0 %v1832
      %2804 = vmatmul.mubr.bf16.gmra.mrb[0].mxu0 %v1831
      %v2805 = vpop.f32.mrb[0].mxu0
      %v2806 = vadd.f32 %v2709, %v2805
      %v2807 = vpop.f32.mrb[0].mxu0
      %v2808 = vpop.f32.mrb[0].mxu0
      %v2809 = vadd.f32 %v2712, %v2808
      %v2810 = vpop.f32.mrb[0].mxu0
      %2811 = vmatprep.mubr.bf16.mxu0 %v1841
      %2812 = vmatmul.mubr.bf16.gmra.mrb[0].mxu0 %v1840
      %v2813 = vpop.f32.mrb[0].mxu0
      %v2814 = vadd.f32 %v2717, %v2813
      %v2815 = vpop.f32.mrb[0].mxu0
      %v2816 = vpop.f32.mrb[0].mxu0
      %v2817 = vadd.f32 %v2720, %v2816
      %v2818 = vpop.f32.mrb[0].mxu0
      %2819 = vmatprep.mubr.bf16.mxu0 %v1850
      %2820 = vmatmul.mubr.bf16.gmra.mrb[0].mxu0 %v1849
      %v2821 = vpop.f32.mrb[0].mxu0
      %v2822 = vadd.f32 %v2725, %v2821
      %v2823 = vpop.f32.mrb[0].mxu0
      %v2824 = vpop.f32.mrb[0].mxu0
      %v2825 = vadd.f32 %v2728, %v2824
      %v2826 = vpop.f32.mrb[0].mxu0
      %2827 = vmatprep.mubr.bf16.mxu0 %v1859
      %2828 = vmatmul.mubr.bf16.gmra.mrb[0].mxu0 %v1858
      %v2829 = vpop.f32.mrb[0].mxu0
      %v2830 = vadd.f32 %v2733, %v2829
      %v2831 = vpop.f32.mrb[0].mxu0
      %v2832 = vpop.f32.mrb[0].mxu0
      %v2833 = vadd.f32 %v2736, %v2832
      %v2834 = vpop.f32.mrb[0].mxu0
      %2835 = vmatprep.mubr.bf16.mxu0 %v1868
      %2836 = vmatmul.mubr.bf16.gmra.mrb[0].mxu0 %v1867
      %v2837 = vpop.f32.mrb[0].mxu0
      %v2838 = vadd.f32 %v2741, %v2837
      %v2839 = vpop.f32.mrb[0].mxu0
      %v2840 = vpop.f32.mrb[0].mxu0
      %v2841 = vadd.f32 %v2744, %v2840
      %v2842 = vpop.f32.mrb[0].mxu0
      %2843 = vmatprep.mubr.bf16.mxu0 %v1877
      %2844 = vmatmul.mubr.bf16.gmra.mrb[0].mxu0 %v1876
      %v2845 = vpop.f32.mrb[0].mxu0
      %v2846 = vadd.f32 %v2749, %v2845
      %v2847 = vpop.f32.mrb[0].mxu0
      %v2848 = vpop.f32.mrb[0].mxu0
      %v2849 = vadd.f32 %v2752, %v2848
      %v2850 = vpop.f32.mrb[0].mxu0
      %2851 = vmatprep.mubr.bf16.mxu0 %v1886
      %2852 = vmatmul.mubr.bf16.gmra.mrb[0].mxu0 %v1885
      %v2853 = vpop.f32.mrb[0].mxu0
      %v2854 = vadd.f32 %v2757, %v2853
      %v2855 = vpop.f32.mrb[0].mxu0
      %v2856 = vpop.f32.mrb[0].mxu0
      %v2857 = vadd.f32 %v2760, %v2856
      %v2858 = vpop.f32.mrb[0].mxu0
      %2859 = vmatprep.mubr.bf16.mxu0 %v1895
      %2860 = vmatmul.mubr.bf16.gmra.mrb[0].mxu0 %v1894
      %v2861 = vpop.f32.mrb[0].mxu0
      %v2862 = vadd.f32 %v2765, %v2861
      %v2863 = vpop.f32.mrb[0].mxu0
      %v2864 = vpop.f32.mrb[0].mxu0
      %v2865 = vadd.f32 %v2768, %v2864
      %v2866 = vpop.f32.mrb[0].mxu0
      %2867 = vdwg.mxu0
      %2868 = vmatprep.subr.bf16.mxu0 0
      %2869 = vmatpush1.bf16.msra.mxu0 %v2400
      %2870 = vmatprep.subr.bf16.mxu0 0
      %2871 = vmatpush1.bf16.msra.mxu0 %v2401
      %2872 = vmatprep.subr.bf16.mxu0 0
      %2873 = vmatpush1.bf16.msra.mxu0 %v2402
      %2874 = vmatprep.subr.bf16.mxu0 0
      %2875 = vmatpush1.bf16.msra.mxu0 %v2403
      %2876 = vmatprep.subr.bf16.mxu0 0
      %2877 = vmatpush1.bf16.msra.mxu0 %v2404
      %2878 = vmatprep.subr.bf16.mxu0 0
      %2879 = vmatpush1.bf16.msra.mxu0 %v2405
      %2880 = vmatprep.subr.bf16.mxu0 0
      %2881 = vmatpush1.bf16.msra.mxu0 %v2406
      %2882 = vmatprep.subr.bf16.mxu0 0
      %2883 = vmatpush1.bf16.msra.mxu0 %v2407
      %2884 = vmatprep.subr.bf16.mxu0 0
      %2885 = vmatpush1.bf16.msra.mxu0 0
      %2886 = vmatprep.subr.bf16.mxu0 0
      %2887 = vmatpush1.bf16.msra.mxu0 0
      %2888 = vmatprep.subr.bf16.mxu0 0
      %2889 = vmatpush1.bf16.msra.mxu0 0
      %2890 = vmatprep.subr.bf16.mxu0 0
      %2891 = vmatpush1.bf16.msra.mxu0 0
      %2892 = vmatprep.subr.bf16.mxu0 0
      %2893 = vmatpush1.bf16.msra.mxu0 0
      %2894 = vmatprep.subr.bf16.mxu0 0
      %2895 = vmatpush1.bf16.msra.mxu0 0
      %2896 = vmatprep.subr.bf16.mxu0 0
      %2897 = vmatpush1.bf16.msra.mxu0 0
      %2898 = vmatprep.subr.bf16.mxu0 0
      %2899 = vmatpush1.bf16.msra.mxu0 0
      %2900 = vmatprep.mubr.bf16.mxu0 0
      %2901 = vmatmul.mubr.bf16.gmra.mrb[0].mxu0 %v1833
      %v2902 = vpop.f32.mrb[0].mxu0
      %v2903 = vadd.f32 %v2806, %v2902
      %v2904 = vpop.f32.mrb[0].mxu0
      %v2905 = vpop.f32.mrb[0].mxu0
      %v2906 = vadd.f32 %v2809, %v2905
      %v2907 = vpop.f32.mrb[0].mxu0
      %2908 = vmatprep.mubr.bf16.mxu0 0
      %2909 = vmatmul.mubr.bf16.gmra.mrb[0].mxu0 %v1842
      %v2910 = vpop.f32.mrb[0].mxu0
      %v2911 = vadd.f32 %v2814, %v2910
      %v2912 = vpop.f32.mrb[0].mxu0
      %v2913 = vpop.f32.mrb[0].mxu0
      %v2914 = vadd.f32 %v2817, %v2913
      %v2915 = vpop.f32.mrb[0].mxu0
      %2916 = vmatprep.mubr.bf16.mxu0 0
      %2917 = vmatmul.mubr.bf16.gmra.mrb[0].mxu0 %v1851
      %v2918 = vpop.f32.mrb[0].mxu0
      %v2919 = vadd.f32 %v2822, %v2918
      %v2920 = vpop.f32.mrb[0].mxu0
      %v2921 = vpop.f32.mrb[0].mxu0
      %v2922 = vadd.f32 %v2825, %v2921
      %v2923 = vpop.f32.mrb[0].mxu0
      %2924 = vmatprep.mubr.bf16.mxu0 0
      %2925 = vmatmul.mubr.bf16.gmra.mrb[0].mxu0 %v1860
      %v2926 = vpop.f32.mrb[0].mxu0
      %v2927 = vadd.f32 %v2830, %v2926
      %v2928 = vpop.f32.mrb[0].mxu0
      %v2929 = vpop.f32.mrb[0].mxu0
      %v2930 = vadd.f32 %v2833, %v2929
      %v2931 = vpop.f32.mrb[0].mxu0
      %2932 = vmatprep.mubr.bf16.mxu0 0
      %2933 = vmatmul.mubr.bf16.gmra.mrb[0].mxu0 %v1869
      %v2934 = vpop.f32.mrb[0].mxu0
      %v2935 = vadd.f32 %v2838, %v2934
      %v2936 = vpop.f32.mrb[0].mxu0
      %v2937 = vpop.f32.mrb[0].mxu0
      %v2938 = vadd.f32 %v2841, %v2937
      %v2939 = vpop.f32.mrb[0].mxu0
      %2940 = vmatprep.mubr.bf16.mxu0 0
      %2941 = vmatmul.mubr.bf16.gmra.mrb[0].mxu0 %v1878
      %v2942 = vpop.f32.mrb[0].mxu0
      %v2943 = vadd.f32 %v2846, %v2942
      %v2944 = vpop.f32.mrb[0].mxu0
      %v2945 = vpop.f32.mrb[0].mxu0
      %v2946 = vadd.f32 %v2849, %v2945
      %v2947 = vpop.f32.mrb[0].mxu0
      %2948 = vmatprep.mubr.bf16.mxu0 0
      %2949 = vmatmul.mubr.bf16.gmra.mrb[0].mxu0 %v1887
      %v2950 = vpop.f32.mrb[0].mxu0
      %v2951 = vadd.f32 %v2854, %v2950
      %v2952 = vpop.f32.mrb[0].mxu0
      %v2953 = vpop.f32.mrb[0].mxu0
      %v2954 = vadd.f32 %v2857, %v2953
      %v2955 = vpop.f32.mrb[0].mxu0
      %2956 = vmatprep.mubr.bf16.mxu0 0
      %2957 = vmatmul.mubr.bf16.gmra.mrb[0].mxu0 %v1896
      %v2958 = vpop.f32.mrb[0].mxu0
      %v2959 = vadd.f32 %v2862, %v2958
      %v2960 = vpop.f32.mrb[0].mxu0
      %v2961 = vpop.f32.mrb[0].mxu0
      %v2962 = vadd.f32 %v2865, %v2961
      %v2963 = vpop.f32.mrb[0].mxu0
      %2964 = vdwg.mxu0
      %v2965 = vld [vmem:[%s722] sm:$0xf]
      %v2966 = vld [vmem:[%s722 + $0x4] sm:$0xf]
      %v2967 = vld [vmem:[%s722 + $0x8] sm:$0xf]
      %v2968 = vld [vmem:[%s722 + $0xc] sm:$0xf]
      %v2969 = vld [vmem:[%s722 + $0x10] sm:$0xf]
      %v2970 = vld [vmem:[%s722 + $0x14] sm:$0xf]
      %v2971 = vld [vmem:[%s722 + $0x18] sm:$0xf]
      %v2972 = vld [vmem:[%s722 + $0x1c] sm:$0xf]
      %v2973 = vld [vmem:[%s722 + $0x20] sm:$0xf]
      %v2974 = vld [vmem:[%s722 + $0x24] sm:$0xf]
      %v2975 = vld [vmem:[%s722 + $0x28] sm:$0xf]
      %v2976 = vld [vmem:[%s722 + $0x2c] sm:$0xf]
      %v2977 = vld [vmem:[%s722 + $0x30] sm:$0xf]
      %v2978 = vld [vmem:[%s722 + $0x34] sm:$0xf]
      %v2979 = vld [vmem:[%s722 + $0x38] sm:$0xf]
      %v2980 = vld [vmem:[%s722 + $0x3c] sm:$0xf]
      %v2981 = vld [vmem:[%s3] sm:$0x3]
      %v2982 = vld [vmem:[%s6] sm:$0x1]
      %v2984 = vlaneseq
      %v2985 = vshrl.u32 %v2984, 7
      %v2986 = vsub.s32 0, %v2985
      %v2987 = vrot.slane %v2982, %v2986
      %v3005 = vunpack.c.l.b16 %v2965
      %v3006 = vunpack.c.l.b16 %v2966
      %v3007 = vunpack.c.l.b16 %v2967
      %v3008 = vunpack.c.l.b16 %v2968
      %v3009 = vunpack.c.l.b16 %v2969
      %v3010 = vunpack.c.l.b16 %v2970
      %v3011 = vunpack.c.l.b16 %v2971
      %v3012 = vunpack.c.l.b16 %v2972
      %v3013 = vunpack.c.l.b16 %v2973
      %v3014 = vunpack.c.l.b16 %v2974
      %v3015 = vunpack.c.l.b16 %v2975
      %v3016 = vunpack.c.l.b16 %v2976
      %v3017 = vunpack.c.l.b16 %v2977
      %v3018 = vunpack.c.l.b16 %v2978
      %v3019 = vunpack.c.l.b16 %v2979
      %v3020 = vunpack.c.l.b16 %v2980
      %v3021 = vpack.c.b16 %v3006, %v3005
      %v3022 = vpack.c.b16 %v3008, %v3007
      %v3023 = vpack.c.b16 %v3010, %v3009
      %v3024 = vpack.c.b16 %v3012, %v3011
      %v3025 = vpack.c.b16 %v3014, %v3013
      %v3026 = vpack.c.b16 %v3016, %v3015
      %v3027 = vpack.c.b16 %v3018, %v3017
      %v3028 = vpack.c.b16 %v3020, %v3019
      %v3030 = vsel %vm371, %v3021, 0
      %v3033 = vsel %vm371, %v3022, 0
      %v3036 = vsel %vm371, %v3023, 0
      %v3039 = vsel %vm371, %v3024, 0
      %v3042 = vsel %vm371, %v3025, 0
      %v3045 = vsel %vm371, %v3026, 0
      %v3048 = vsel %vm371, %v3027, 0
      %v3051 = vsel %vm371, %v3028, 0
      %v3054 = vsel %vm1372, %v2981, 0
      %3056 = vmatprep.subr.bf16.mxu0 0
      %3057 = vmatpush1.bf16.msra.mxu0 %v3054
      %3058 = vmatprep.subr.bf16.mxu0 0
      %3059 = vmatpush1.bf16.msra.mxu0 0
      %3060 = vmatprep.subr.bf16.mxu0 0
      %3061 = vmatpush1.bf16.msra.mxu0 0
      %3062 = vmatprep.subr.bf16.mxu0 0
      %3063 = vmatpush1.bf16.msra.mxu0 0
      %3064 = vmatprep.subr.bf16.mxu0 0
      %3065 = vmatpush1.bf16.msra.mxu0 0
      %3066 = vmatprep.subr.bf16.mxu0 0
      %3067 = vmatpush1.bf16.msra.mxu0 0
      %3068 = vmatprep.subr.bf16.mxu0 0
      %3069 = vmatpush1.bf16.msra.mxu0 0
      %3070 = vmatprep.subr.bf16.mxu0 0
      %3071 = vmatpush1.bf16.msra.mxu0 0
      %3072 = vmatprep.subr.bf16.mxu0 0
      %3073 = vmatpush1.bf16.msra.mxu0 0
      %3074 = vmatprep.subr.bf16.mxu0 0
      %3075 = vmatpush1.bf16.msra.mxu0 0
      %3076 = vmatprep.subr.bf16.mxu0 0
      %3077 = vmatpush1.bf16.msra.mxu0 0
      %3078 = vmatprep.subr.bf16.mxu0 0
      %3079 = vmatpush1.bf16.msra.mxu0 0
      %3080 = vmatprep.subr.bf16.mxu0 0
      %3081 = vmatpush1.bf16.msra.mxu0 0
      %3082 = vmatprep.subr.bf16.mxu0 0
      %3083 = vmatpush1.bf16.msra.mxu0 0
      %3084 = vmatprep.subr.bf16.mxu0 0
      %3085 = vmatpush1.bf16.msra.mxu0 0
      %3086 = vmatprep.subr.bf16.mxu0 0
      %3087 = vmatpush1.bf16.msra.mxu0 0
      %3088 = vmatprep.mubr.bf16.mxu0 0
      %3089 = vmatmul.mubr.bf16.gmra.mrb[0].mxu0 %v3030
      %v3090 = vpop.f32.mrb[0].mxu0
      %v3091 = vadd.f32 %v2987, %v3090
      %v3092 = vpop.f32.mrb[0].mxu0
      %v3093 = vpop.f32.mrb[0].mxu0
      %v3094 = vadd.f32 %v2987, %v3093
      %v3095 = vpop.f32.mrb[0].mxu0
      %3096 = vmatprep.mubr.bf16.mxu0 0
      %3097 = vmatmul.mubr.bf16.gmra.mrb[0].mxu0 %v3033
      %v3098 = vpop.f32.mrb[0].mxu0
      %v3099 = vadd.f32 %v2987, %v3098
      %v3100 = vpop.f32.mrb[0].mxu0
      %v3101 = vpop.f32.mrb[0].mxu0
      %v3102 = vadd.f32 %v2987, %v3101
      %v3103 = vpop.f32.mrb[0].mxu0
      %3104 = vmatprep.mubr.bf16.mxu0 0
      %3105 = vmatmul.mubr.bf16.gmra.mrb[0].mxu0 %v3036
      %v3106 = vpop.f32.mrb[0].mxu0
      %v3107 = vadd.f32 %v2987, %v3106
      %v3108 = vpop.f32.mrb[0].mxu0
      %v3109 = vpop.f32.mrb[0].mxu0
      %v3110 = vadd.f32 %v2987, %v3109
      %v3111 = vpop.f32.mrb[0].mxu0
      %3112 = vmatprep.mubr.bf16.mxu0 0
      %3113 = vmatmul.mubr.bf16.gmra.mrb[0].mxu0 %v3039
      %v3114 = vpop.f32.mrb[0].mxu0
      %v3115 = vadd.f32 %v2987, %v3114
      %v3116 = vpop.f32.mrb[0].mxu0
      %v3117 = vpop.f32.mrb[0].mxu0
      %v3118 = vadd.f32 %v2987, %v3117
      %v3119 = vpop.f32.mrb[0].mxu0
      %3120 = vmatprep.mubr.bf16.mxu0 0
      %3121 = vmatmul.mubr.bf16.gmra.mrb[0].mxu0 %v3042
      %v3122 = vpop.f32.mrb[0].mxu0
      %v3123 = vadd.f32 %v2987, %v3122
      %v3124 = vpop.f32.mrb[0].mxu0
      %v3125 = vpop.f32.mrb[0].mxu0
      %v3126 = vadd.f32 %v2987, %v3125
      %v3127 = vpop.f32.mrb[0].mxu0
      %3128 = vmatprep.mubr.bf16.mxu0 0
      %3129 = vmatmul.mubr.bf16.gmra.mrb[0].mxu0 %v3045
      %v3130 = vpop.f32.mrb[0].mxu0
      %v3131 = vadd.f32 %v2987, %v3130
      %v3132 = vpop.f32.mrb[0].mxu0
      %v3133 = vpop.f32.mrb[0].mxu0
      %v3134 = vadd.f32 %v2987, %v3133
      %v3135 = vpop.f32.mrb[0].mxu0
      %3136 = vmatprep.mubr.bf16.mxu0 0
      %3137 = vmatmul.mubr.bf16.gmra.mrb[0].mxu0 %v3048
      %v3138 = vpop.f32.mrb[0].mxu0
      %v3139 = vadd.f32 %v2987, %v3138
      %v3140 = vpop.f32.mrb[0].mxu0
      %v3141 = vpop.f32.mrb[0].mxu0
      %v3142 = vadd.f32 %v2987, %v3141
      %v3143 = vpop.f32.mrb[0].mxu0
      %3144 = vmatprep.mubr.bf16.mxu0 0
      %3145 = vmatmul.mubr.bf16.gmra.mrb[0].mxu0 %v3051
      %v3146 = vpop.f32.mrb[0].mxu0
      %v3147 = vadd.f32 %v2987, %v3146
      %v3148 = vpop.f32.mrb[0].mxu0
      %v3149 = vpop.f32.mrb[0].mxu0
      %v3150 = vadd.f32 %v2987, %v3149
      %v3151 = vpop.f32.mrb[0].mxu0
      %3152 = vdwg.mxu0
      %v3153 = vadd.f32 %v2903, %v3091
      %v3154 = vadd.f32 %v2906, %v3094
      %v3155 = vadd.f32 %v2911, %v3099
      %v3156 = vadd.f32 %v2914, %v3102
      %v3157 = vadd.f32 %v2919, %v3107
      %v3158 = vadd.f32 %v2922, %v3110
      %v3159 = vadd.f32 %v2927, %v3115
      %v3160 = vadd.f32 %v2930, %v3118
      %v3161 = vadd.f32 %v2935, %v3123
      %v3162 = vadd.f32 %v2938, %v3126
      %v3163 = vadd.f32 %v2943, %v3131
      %v3164 = vadd.f32 %v2946, %v3134
      %v3165 = vadd.f32 %v2951, %v3139
      %v3166 = vadd.f32 %v2954, %v3142
      %v3167 = vadd.f32 %v2959, %v3147
      %v3168 = vadd.f32 %v2962, %v3150
      %v3169 = vmax.f32 %v3153, 0.0
      %v3170 = vmax.f32 %v3154, 0.0
      %v3171 = vmax.f32 %v3155, 0.0
      %v3172 = vmax.f32 %v3156, 0.0
      %v3173 = vmax.f32 %v3157, 0.0
      %v3174 = vmax.f32 %v3158, 0.0
      %v3175 = vmax.f32 %v3159, 0.0
      %v3176 = vmax.f32 %v3160, 0.0
      %v3177 = vmax.f32 %v3161, 0.0
      %v3178 = vmax.f32 %v3162, 0.0
      %v3179 = vmax.f32 %v3163, 0.0
      %v3180 = vmax.f32 %v3164, 0.0
      %v3181 = vmax.f32 %v3165, 0.0
      %v3182 = vmax.f32 %v3166, 0.0
      %v3183 = vmax.f32 %v3167, 0.0
      %v3184 = vmax.f32 %v3168, 0.0
      %v3185 = vpack.c.bf16 %v3170, %v3169
      %v3186 = vpack.c.bf16 %v3172, %v3171
      %v3187 = vpack.c.bf16 %v3174, %v3173
      %v3188 = vpack.c.bf16 %v3176, %v3175
      %v3189 = vpack.c.bf16 %v3178, %v3177
      %v3190 = vpack.c.bf16 %v3180, %v3179
      %v3191 = vpack.c.bf16 %v3182, %v3181
      %v3192 = vpack.c.bf16 %v3184, %v3183
      %v3201 = vunpack.c.l.b16 %v3185
      %v3202 = vunpack.c.h.b16 %v3185
      %v3203 = vunpack.c.l.b16 %v3186
      %v3204 = vunpack.c.h.b16 %v3186
      %v3205 = vunpack.c.l.b16 %v3187
      %v3206 = vunpack.c.h.b16 %v3187
      %v3207 = vunpack.c.l.b16 %v3188
      %v3208 = vunpack.c.h.b16 %v3188
      %v3209 = vunpack.c.l.b16 %v3189
      %v3210 = vunpack.c.h.b16 %v3189
      %v3211 = vunpack.c.l.b16 %v3190
      %v3212 = vunpack.c.h.b16 %v3190
      %v3213 = vunpack.c.l.b16 %v3191
      %v3214 = vunpack.c.h.b16 %v3191
      %v3215 = vunpack.c.l.b16 %v3192
      %v3216 = vunpack.c.h.b16 %v3192
      %v3217 = vpack.c.b16 %v3201, %v3201
      %v3218 = vpack.c.b16 %v3202, %v3202
      %v3219 = vpack.c.b16 %v3203, %v3203
      %v3220 = vpack.c.b16 %v3204, %v3204
      %v3221 = vpack.c.b16 %v3205, %v3205
      %v3222 = vpack.c.b16 %v3206, %v3206
      %v3223 = vpack.c.b16 %v3207, %v3207
      %v3224 = vpack.c.b16 %v3208, %v3208
      %v3225 = vpack.c.b16 %v3209, %v3209
      %v3226 = vpack.c.b16 %v3210, %v3210
      %v3227 = vpack.c.b16 %v3211, %v3211
      %v3228 = vpack.c.b16 %v3212, %v3212
      %v3229 = vpack.c.b16 %v3213, %v3213
      %v3230 = vpack.c.b16 %v3214, %v3214
      %v3231 = vpack.c.b16 %v3215, %v3215
      %v3232 = vpack.c.b16 %v3216, %v3216
      %3249 = vst [vmem:[%s305] sm:$0xf] %v3217
      %3250 = vst [vmem:[%s305 + $0x4] sm:$0xf] %v3218
      %3251 = vst [vmem:[%s305 + $0x8] sm:$0xf] %v3219
      %3252 = vst [vmem:[%s305 + $0xc] sm:$0xf] %v3220
      %3253 = vst [vmem:[%s305 + $0x10] sm:$0xf] %v3221
      %3254 = vst [vmem:[%s305 + $0x14] sm:$0xf] %v3222
      %3255 = vst [vmem:[%s305 + $0x18] sm:$0xf] %v3223
      %3256 = vst [vmem:[%s305 + $0x1c] sm:$0xf] %v3224
      %3257 = vst [vmem:[%s305 + $0x20] sm:$0xf] %v3225
      %3258 = vst [vmem:[%s305 + $0x24] sm:$0xf] %v3226
      %3259 = vst [vmem:[%s305 + $0x28] sm:$0xf] %v3227
      %3260 = vst [vmem:[%s305 + $0x2c] sm:$0xf] %v3228
      %3261 = vst [vmem:[%s305 + $0x30] sm:$0xf] %v3229
      %3262 = vst [vmem:[%s305 + $0x34] sm:$0xf] %v3230
      %3263 = vst [vmem:[%s305 + $0x38] sm:$0xf] %v3231
      %3264 = vst [vmem:[%s305 + $0x3c] sm:$0xf] %v3232
      %p3265 = scmp.lt.s32.totalorder %s19, 1
      %s3266 = scalar_select %p3265, %s19, 1
      %s3267 = smul.addr %s3266, 16
      %s3268 = smul.addr %s3267, 4
      %s3269 = scalar_lea.vmem %s8, %s3268
      // Predicated region
      $region53: #{basic_block_forward.1} parent=51 // pred_check
        %p3270 = pneg %p210
      $region54: #{basic_block_forward.1} parent=51 // pred_check_branch
        %3272 = sbr.rel (%p3270) target = $region56
      $region55: #{basic_block_forward.1} parent=51 // pred_region
        _
      $region56: #{basic_block_forward.1} parent=51 // pred_fallthru
        _
    $region52: #{basic_block_forward.1} parent=5 // pred_fallthru
      _
    %p3273 = scmp.le.s32.totalorder 2, %s14
    // Predicated region
    $region57: #{basic_block_forward.1} parent=5 // pred_check
      %p3274 = pneg %p3273
    $region58: #{basic_block_forward.1} parent=5 // pred_check_branch
      %3276 = sbr.rel (%p3274) target = $region60
    $region59: #{basic_block_forward.1} parent=5 // pred_region
      %s3277 = ssub.s32 %s14, 2
      // Predicated region
      $region61: #{basic_block_forward.1} parent=59 // pred_check
        %p3278 = pneg %p216
      $region62: #{basic_block_forward.1} parent=59 // pred_check_branch
        %3280 = sbr.rel (%p3278) target = $region64
      $region63: #{basic_block_forward.1} parent=59 // pred_region
        %p3281 = scmp.lt.s32.totalorder %s20, 1
        %s3282 = scalar_select %p3281, %s20, 1
        %s3283 = smul.addr %s3282, 16
        %s3284 = smul.addr %s3283, 4
        %s3285 = scalar_lea.vmem %s8, %s3284
      $region64: #{basic_block_forward.1} parent=59 // pred_fallthru
        _
    $region60: #{basic_block_forward.1} parent=5 // pred_fallthru
      _
  $region6: #{basic_block_forward.1} parent=0 // loop_footer
    %s18 = sadd.s32 1, %s14
  $region7: #{basic_block_forward.1} parent=0 // loop_footer_branch
    %13 = sbr.rel target = $region3
  $region8: #{basic_block_forward.1} parent=0 // loop_exit
    _

</llo_original>
